<compile_context>
chip_gen: v7x
topology: tpu7x:2x2x1
jax: 0.10.0
libtpu: 0.0.40
codegen_flags: <defaults>
</compile_context>

<pallas_src>
import functools

import numpy as np
import jax
import jax.numpy as jnp
from jax.experimental import pallas as pl
from jax.experimental.pallas import tpu as pltpu  # noqa: F401  (imported per convention)


# ------------------------------ in-kernel helpers ----------------------------

def _softplus(v):
    # matches torch.nn.functional.softplus (beta=1, threshold=20)
    return jnp.where(v > 20.0, v, jnp.log(1.0 + jnp.exp(jnp.minimum(v, 20.0))))


def _rot_lanes(slab, k):
    """rotated[:, p] = slab[:, (p + k) % L] for static k (slice+concat; unambiguous
    direction — a single pltpu.roll would also work here)."""
    L = slab.shape[1]
    kk = k % L
    if kk == 0:
        return slab
    return jnp.concatenate([slab[:, kk:], slab[:, :kk]], axis=1)


# --------------------------------- fused kernel -------------------------------

def _fused_attention_kernel(x_ref, masks_ref, camM_ref,
                            w1_ref, b1_ref, w2_ref, b2_ref,
                            wqkv_ref, bqkv_ref, wo_ref, bo_ref,
                            cg1_ref, cb1_ref, kg1_ref, kb1_ref,
                            cg2_ref, cb2_ref, kg2_ref, kb2_ref,
                            out_ref, *, B, Cin, Cout, H, W, D, eps):
    S = H * W
    BS = B * S
    G = S // Cin

    # ---- hoisted loads (JAX does not CSE broadcasts inside unrolled loops) ----
    masks = masks_ref[...]                                   # (9, S)
    masks_b = jnp.concatenate([masks] * B, axis=1)           # (9, B*S)
    masks_2b = jnp.concatenate([masks_b, masks_b], axis=1)   # (9, 2*B*S)
    w1 = w1_ref[...]
    w2 = w2_ref[...]
    b1 = b1_ref[...]
    b2 = b2_ref[...]
    bqkv = bqkv_ref[...]
    bo = bo_ref[...]
    camM = camM_ref[...]

    def conv3x3(slab, w9, bias, mask_slab):
        """3x3 / stride 1 / pad 1 conv on a lane-stacked (Cin, L) slab, L = n_images*S.
        Shifted taps are built in-register (rotate + border mask) and contracted in ONE
        matmul with contraction dim 9*Cin."""
        taps = []
        for kh in range(3):
            for kw in range(3):
                t = kh * 3 + kw
                shift = (kh - 1) * W + (kw - 1)
                tap = _rot_lanes(slab, shift)
                if shift != 0:                      # centre tap needs no mask
                    tap = tap * mask_slab[t:t + 1, :]
                taps.append(tap)
        patches = jnp.concatenate(taps, axis=0)     # (9*Cin, L)
        return jnp.dot(w9, patches, preferred_element_type=jnp.float32) + bias

    def bn_relu(h, g, beta):
        # Training-mode BatchNorm2d: biased variance over batch+spatial, per channel.
        # TODO(synk): running-stat updates of nn.BatchNorm2d are stateful and do not
        # affect the forward output; they are intentionally omitted.
        mean = jnp.mean(h, axis=1, keepdims=True)
        var = jnp.mean(jnp.square(h - mean), axis=1, keepdims=True)
        return jnp.maximum((h - mean) * jax.lax.rsqrt(var + eps) * g + beta, 0.0)

    # ---- Conv1 + per-branch BN1 + ReLU (whole batch on the lane axis) ----
    x_slab = jnp.concatenate([x_ref[b] for b in range(B)], axis=1)        # (Cin, B*S)
    h1 = conv3x3(x_slab, w1, b1, masks_b)                                 # (Cin, B*S)
    a_cam = bn_relu(h1, cg1_ref[...], cb1_ref[...])
    a_kam = bn_relu(h1, kg1_ref[...], kb1_ref[...])

    # ---- Channel attention ----
    # The original "transpose" is a reshape of (C,S) to (S,C); reproduce that scramble
    # lane-densely:  (rx @ camM)[j, d*G+t] = rx[j, t*Cin+d], then reassemble blocks.
    rx_stack = jnp.concatenate([a_cam[:, b * S:(b + 1) * S] for b in range(B)],
                               axis=0)                                     # (B*Cin, S)
    y_stack = jnp.dot(rx_stack, camM, preferred_element_type=jnp.float32)  # (B*Cin, S)
    cam_blocks = []
    for b in range(B):
        rx = rx_stack[b * Cin:(b + 1) * Cin, :]                            # (Cin, S)
        y = y_stack[b * Cin:(b + 1) * Cin, :]
        # txT[d, j*G + t] = rx[j, t*Cin + d] = y[j, d*G + t]   (lane-dense "tx^T")
        txT = jnp.concatenate(
            [jnp.concatenate([y[j:j + 1, d * G:(d + 1) * G] for j in range(Cin)], axis=1)
             for d in range(Cin)], axis=0)                                 # (Cin, S)
        wgt = jax.lax.dot_general(rx, txT, (((1,), (1,)), ((), ())),
                                  preferred_element_type=jnp.float32)      # (Cin, Cin)
        cam_blocks.append(rx + jnp.dot(wgt, rx, preferred_element_type=jnp.float32))
    cam_feat = jnp.concatenate(cam_blocks, axis=1)                         # (Cin, B*S)

    # ---- Kernel attention (fused QKV, batched over B on the sublane axis) ----
    kx_stack = jnp.concatenate([a_kam[:, b * S:(b + 1) * S] for b in range(B)],
                               axis=0)                                     # (B*Cin, S)
    qkv = jnp.dot(kx_stack, wqkv_ref[...],
                  preferred_element_type=jnp.float32) + bqkv               # (B*Cin, 3D)
    sk = _softplus(qkv[:, 0:D])
    sq = _softplus(qkv[:, D:2 * D])
    val = qkv[:, 2 * D:3 * D]
    res_blocks = []
    for b in range(B):
        sqb = sq[b * Cin:(b + 1) * Cin, :]
        skb = sk[b * Cin:(b + 1) * Cin, :]
        vb = val[b * Cin:(b + 1) * Cin, :]
        attw = jax.lax.dot_general(sqb, skb, (((1,), (1,)), ((), ())),
                                   preferred_element_type=jnp.float32)     # (Cin, Cin)
        res_blocks.append(jnp.dot(attw, vb, preferred_element_type=jnp.float32))
    res_stack = jnp.concatenate(res_blocks, axis=0)                        # (B*Cin, D)
    kam_stack = jnp.dot(res_stack, wo_ref[...],
                        preferred_element_type=jnp.float32) + bo           # (B*Cin, S)
    kam_feat = jnp.concatenate([kam_stack[b * Cin:(b + 1) * Cin, :] for b in range(B)],
                               axis=1)                                     # (Cin, B*S)

    # ---- Conv2 (both branches in ONE matmul) + per-branch BN2 + ReLU + final add ----
    both = jnp.concatenate([cam_feat, kam_feat], axis=1)                   # (Cin, 2*B*S)
    conv_both = conv3x3(both, w2, b2, masks_2b)                            # (Cout, 2*B*S)
    cam_o = bn_relu(conv_both[:, :BS], cg2_ref[...], cb2_ref[...])
    kam_o = bn_relu(conv_both[:, BS:], kg2_ref[...], kb2_ref[...])
    out = cam_o + kam_o                                                    # (Cout, B*S)
    for b in range(B):
        out_ref[b] = out[:, b * S:(b + 1) * S]


# ---------------------------- module-level forward ----------------------------

@jax.jit
def attention_forward(x, prep):
    B, Cin, H, W = x.shape
    S = H * W
    Cout = prep["w2_9"].shape[0]
    D = prep["wo_t"].shape[0]

    # TODO(synk): BatchNorm couples the batch elements, so the fused kernel runs as a single
    # whole-array invocation (one TensorCore); at these sizes it is launch-bound anyway.
    kern = functools.partial(_fused_attention_kernel,
                             B=B, Cin=Cin, Cout=Cout, H=H, W=W, D=D, eps=1e-5)
    out = pl.pallas_call(
        kern,
        out_shape=jax.ShapeDtypeStruct((B, Cout, S), jnp.float32),
    )(x.reshape(B, Cin, S), prep["masks9"], prep["camM"],
      prep["w1_9"], prep["b1"], prep["w2_9"], prep["b2"],
      prep["wqkv"], prep["bqkv"], prep["wo_t"], prep["bo"],
      prep["cam_g1"], prep["cam_b1"], prep["kam_g1"], prep["kam_b1"],
      prep["cam_g2"], prep["cam_b2"], prep["kam_g2"], prep["kam_b2"])
    return out.reshape(B, Cout, H, W)


# ------------------------------ parameter handling ----------------------------

def init_params(key, in_channels, out_channels, input_size):
    d_model = int(input_size ** 0.5)
    ks = jax.random.split(key, 12)

    def u(k, shape, fan_in):
        bound = 1.0 / (fan_in ** 0.5)
        return jax.random.uniform(k, shape, jnp.float32, -bound, bound)

    return {
        "conv1_w": u(ks[0], (in_channels, in_channels, 3, 3), in_channels * 9),
        "conv1_b": u(ks[1], (in_channels,), in_channels * 9),
        "conv2_w": u(ks[2], (out_channels, in_channels, 3, 3), in_channels * 9),
        "conv2_b": u(ks[3], (out_channels,), in_channels * 9),
        "Wk": u(ks[4], (d_model, input_size), input_size),
        "bk": u(ks[5], (d_model,), input_size),
        "Wq": u(ks[6], (d_model, input_size), input_size),
        "bq": u(ks[7], (d_model,), input_size),
        "Wv": u(ks[8], (d_model, input_size), input_size),
        "bv": u(ks[9], (d_model,), input_size),
        "Wo": u(ks[10], (input_size, d_model), d_model),
        "bo": u(ks[11], (input_size,), d_model),
        "cam_bn1_g": jnp.ones((in_channels,), jnp.float32),
        "cam_bn1_b": jnp.zeros((in_channels,), jnp.float32),
        "cam_bn2_g": jnp.ones((out_channels,), jnp.float32),
        "cam_bn2_b": jnp.zeros((out_channels,), jnp.float32),
        "kam_bn1_g": jnp.ones((in_channels,), jnp.float32),
        "kam_bn1_b": jnp.zeros((in_channels,), jnp.float32),
        "kam_bn2_g": jnp.ones((out_channels,), jnp.float32),
        "kam_bn2_b": jnp.zeros((out_channels,), jnp.float32),
    }


def prepare_params(p, H, W):
    """One-time (outside the hot path) repacking of weights into kernel-ready layouts."""
    S = H * W
    Cin = p["conv1_w"].shape[0]
    Cout = p["conv2_w"].shape[0]
    D = p["Wk"].shape[0]
    assert S % Cin == 0, "CAM reshape-'transpose' decomposition needs (H*W) % in_channels == 0"
    G = S // Cin

    # Conv weights packed for the fused 9-tap matmul: column index = (kh*3 + kw)*Cin + cin.
    w1_9 = p["conv1_w"].transpose(0, 2, 3, 1).reshape(Cin, 9 * Cin)
    w2_9 = p["conv2_w"].transpose(0, 2, 3, 1).reshape(Cout, 9 * Cin)

    # Fused QKV projection (key | query | value) and transposed fc_out weight.
    wqkv = jnp.concatenate([p["Wk"].T, p["Wq"].T, p["Wv"].T], axis=1)        # (S, 3D)
    bqkv = jnp.concatenate([p["bk"], p["bq"], p["bv"]]).reshape(1, 3 * D)

    # Per-tap validity masks: zero every output position whose 3x3 neighbour lies outside
    # the image (handles row boundaries AND top/bottom edges, so no padded scratch needed).
    hh = np.arange(S) // W
    ww = np.arange(S) % W
    masks = np.zeros((9, S), np.float32)
    for kh in range(3):
        for kw in range(3):
            dh, dw = kh - 1, kw - 1
            masks[kh * 3 + kw] = ((hh + dh >= 0) & (hh + dh < H) &
                                  (ww + dw >= 0) & (ww + dw < W))

    # Permutation matrix implementing the CAM reshape-"transpose" scramble lane-densely:
    #   (rx @ camM)[j, d*G + t] = rx[j, t*Cin + d]
    camM = np.zeros((S, S), np.float32)
    for t in range(G):
        for d in range(Cin):
            camM[t * Cin + d, d * G + t] = 1.0

    return {
        "w1_9": w1_9, "b1": p["conv1_b"].reshape(Cin, 1),
        "w2_9": w2_9, "b2": p["conv2_b"].reshape(Cout, 1),
        "wqkv": wqkv, "bqkv": bqkv,
        "wo_t": p["Wo"].T, "bo": p["bo"].reshape(1, S),
        "cam_g1": p["cam_bn1_g"].reshape(Cin, 1), "cam_b1": p["cam_bn1_b"].reshape(Cin, 1),
        "kam_g1": p["kam_bn1_g"].reshape(Cin, 1), "kam_b1": p["kam_bn1_b"].reshape(Cin, 1),
        "cam_g2": p["cam_bn2_g"].reshape(Cout, 1), "cam_b2": p["cam_bn2_b"].reshape(Cout, 1),
        "kam_g2": p["kam_bn2_g"].reshape(Cout, 1), "kam_b2": p["kam_bn2_b"].reshape(Cout, 1),
        "masks9": jnp.asarray(masks),
        "camM": jnp.asarray(camM),
    }


# ------------------------------ pure-JAX reference ----------------------------

def reference_forward(x, p):
    hi = jax.lax.Precision.HIGHEST

    def conv(y, w, b):
        out = jax.lax.conv_general_dilated(
            y, w, window_strides=(1, 1), padding=((1, 1), (1, 1)),
            dimension_numbers=("NCHW", "OIHW", "NCHW"), precision=hi)
        return out + b[None, :, None, None]

    def bnr(y, g, bta, eps=1e-5):
        mean = jnp.mean(y, axis=(0, 2, 3), keepdims=True)
        var = jnp.mean(jnp.square(y - mean), axis=(0, 2, 3), keepdims=True)
        z = ((y - mean) / jnp.sqrt(var + eps) * g[None, :, None, None]
             + bta[None, :, None, None])
        return jnp.maximum(z, 0.0)

    def softplus(v):
        return jnp.where(v > 20.0, v, jnp.log1p(jnp.exp(jnp.minimum(v, 20.0))))

    def cam(y):
        B, C, H, W = y.shape
        rx = y.reshape(B, C, H * W)
        tx = rx.reshape(B, H * W, C)
        w = jnp.einsum("bcs,bsd->bcd", rx, tx, precision=hi)
        wv = jnp.einsum("bcd,bds->bcs", w, rx, precision=hi)
        return (rx + wv).reshape(B, C, H, W)

    def kam(y):
        B, C, H, W = y.shape
        rx = y.reshape(B, C, H * W)
        key = jnp.einsum("bcs,ds->bcd", rx, p["Wk"], precision=hi) + p["bk"]
        query = jnp.einsum("bcs,ds->bcd", rx, p["Wq"], precision=hi) + p["bq"]
        value = jnp.einsum("bcs,ds->bcd", rx, p["Wv"], precision=hi) + p["bv"]
        sk = jnp.transpose(softplus(key), (0, 2, 1))
        sq = softplus(query)
        w = jnp.einsum("bcd,bdh->bch", sq, sk, precision=hi)
        res = jnp.einsum("bch,bhd->bcd", w, value, precision=hi)
        out = jnp.einsum("bcd,sd->bcs", res, p["Wo"], precision=hi) + p["bo"]
        return out.reshape(B, C, H, W)

    h1 = conv(x, p["conv1_w"], p["conv1_b"])
    a = bnr(h1, p["cam_bn1_g"], p["cam_bn1_b"])
    a = cam(a)
    a = conv(a, p["conv2_w"], p["conv2_b"])
    a = bnr(a, p["cam_bn2_g"], p["cam_bn2_b"])
    k = bnr(h1, p["kam_bn1_g"], p["kam_bn1_b"])
    k = kam(k)
    k = conv(k, p["conv2_w"], p["conv2_b"])
    k = bnr(k, p["kam_bn2_g"], p["kam_bn2_b"])
    return a + k


# ------------------------------------ main ------------------------------------

if __name__ == "__main__":
    B, Cin, Cout, H, W = 2, 4, 8, 16, 16          # input_size = H*W = 256, d_model = 16
    root = jax.random.PRNGKey(0)
    pkey, xkey = jax.random.split(root)
    params = init_params(pkey, Cin, Cout, H * W)
    prep = prepare_params(params, H, W)
    x = jax.random.normal(xkey, (B, Cin, H, W), jnp.float32)

    out = jax.block_until_ready(attention_forward(x, prep))
    ref = jax.block_until_ready(reference_forward(x, params))

    assert out.shape == (B, Cout, H, W), out.shape
    max_err = float(jnp.max(jnp.abs(out - ref)))
    if not bool(jnp.all(jnp.isfinite(out))) or max_err > 5e-2:
        raise AssertionError(f"kernel/reference mismatch: max_err={max_err}")
    print("KERNEL_OK")
</pallas_src>

<mosaic_0001>
module attributes {stable_mosaic.version = 11 : i64} {
  func.func @_fused_attention_kernel(%arg0: memref<2x4x256xf32, #tpu.memory_space<vmem>>, %arg1: memref<9x256xf32, #tpu.memory_space<vmem>>, %arg2: memref<256x256xf32, #tpu.memory_space<vmem>>, %arg3: memref<4x36xf32, #tpu.memory_space<vmem>>, %arg4: memref<4x1xf32, #tpu.memory_space<vmem>>, %arg5: memref<8x36xf32, #tpu.memory_space<vmem>>, %arg6: memref<8x1xf32, #tpu.memory_space<vmem>>, %arg7: memref<256x48xf32, #tpu.memory_space<vmem>>, %arg8: memref<1x48xf32, #tpu.memory_space<vmem>>, %arg9: memref<16x256xf32, #tpu.memory_space<vmem>>, %arg10: memref<1x256xf32, #tpu.memory_space<vmem>>, %arg11: memref<4x1xf32, #tpu.memory_space<vmem>>, %arg12: memref<4x1xf32, #tpu.memory_space<vmem>>, %arg13: memref<4x1xf32, #tpu.memory_space<vmem>>, %arg14: memref<4x1xf32, #tpu.memory_space<vmem>>, %arg15: memref<8x1xf32, #tpu.memory_space<vmem>>, %arg16: memref<8x1xf32, #tpu.memory_space<vmem>>, %arg17: memref<8x1xf32, #tpu.memory_space<vmem>>, %arg18: memref<8x1xf32, #tpu.memory_space<vmem>>, %arg19: memref<2x8x256xf32, #tpu.memory_space<vmem>>) attributes {dimension_semantics = [], scalar_prefetch = 0 : i64, scratch_operands = 0 : i64, tpu.core_type = #tpu.core_type<tc>} {
    %c0 = arith.constant 0 : index
    %c0_0 = arith.constant 0 : index
    %0 = vector.load %arg1[%c0, %c0_0] : memref<9x256xf32, #tpu.memory_space<vmem>>, vector<9x256xf32>
    %1 = tpu.concatenate %0, %0 in 1 : vector<9x256xf32>, vector<9x256xf32> -> vector<9x512xf32>
    %2 = tpu.concatenate %1, %1 in 1 : vector<9x512xf32>, vector<9x512xf32> -> vector<9x1024xf32>
    %c0_1 = arith.constant 0 : index
    %c0_2 = arith.constant 0 : index
    %3 = vector.load %arg3[%c0_1, %c0_2] : memref<4x36xf32, #tpu.memory_space<vmem>>, vector<4x36xf32>
    %c0_3 = arith.constant 0 : index
    %c0_4 = arith.constant 0 : index
    %4 = vector.load %arg5[%c0_3, %c0_4] : memref<8x36xf32, #tpu.memory_space<vmem>>, vector<8x36xf32>
    %c0_5 = arith.constant 0 : index
    %c0_6 = arith.constant 0 : index
    %5 = vector.load %arg4[%c0_5, %c0_6] : memref<4x1xf32, #tpu.memory_space<vmem>>, vector<4x1xf32>
    %c0_7 = arith.constant 0 : index
    %c0_8 = arith.constant 0 : index
    %6 = vector.load %arg6[%c0_7, %c0_8] : memref<8x1xf32, #tpu.memory_space<vmem>>, vector<8x1xf32>
    %c0_9 = arith.constant 0 : index
    %c0_10 = arith.constant 0 : index
    %7 = vector.load %arg8[%c0_9, %c0_10] : memref<1x48xf32, #tpu.memory_space<vmem>>, vector<1x48xf32>
    %c0_11 = arith.constant 0 : index
    %c0_12 = arith.constant 0 : index
    %8 = vector.load %arg10[%c0_11, %c0_12] : memref<1x256xf32, #tpu.memory_space<vmem>>, vector<1x256xf32>
    %c0_13 = arith.constant 0 : index
    %c0_14 = arith.constant 0 : index
    %9 = vector.load %arg2[%c0_13, %c0_14] : memref<256x256xf32, #tpu.memory_space<vmem>>, vector<256x256xf32>
    %c0_15 = arith.constant 0 : index
    %c0_16 = arith.constant 0 : index
    %c0_17 = arith.constant 0 : index
    %10 = vector.load %arg0[%c0_15, %c0_16, %c0_17] : memref<2x4x256xf32, #tpu.memory_space<vmem>>, vector<1x4x256xf32>
    %11 = vector.shape_cast %10 : vector<1x4x256xf32> to vector<4x256xf32>
    %c1 = arith.constant 1 : index
    %c0_18 = arith.constant 0 : index
    %c0_19 = arith.constant 0 : index
    %12 = vector.load %arg0[%c1, %c0_18, %c0_19] : memref<2x4x256xf32, #tpu.memory_space<vmem>>, vector<1x4x256xf32>
    %13 = vector.shape_cast %12 : vector<1x4x256xf32> to vector<4x256xf32>
    %14 = tpu.concatenate %11, %13 in 1 : vector<4x256xf32>, vector<4x256xf32> -> vector<4x512xf32>
    %15 = vector.extract_strided_slice %14 {offsets = [0, 495], sizes = [4, 17], strides = [1, 1]} : vector<4x512xf32> to vector<4x17xf32>
    %16 = vector.extract_strided_slice %14 {offsets = [0, 0], sizes = [4, 495], strides = [1, 1]} : vector<4x512xf32> to vector<4x495xf32>
    %17 = tpu.concatenate %15, %16 in 1 : vector<4x17xf32>, vector<4x495xf32> -> vector<4x512xf32>
    %18 = vector.extract_strided_slice %1 {offsets = [0, 0], sizes = [1, 512], strides = [1, 1]} : vector<9x512xf32> to vector<1x512xf32>
    %19 = vector.broadcast %18 : vector<1x512xf32> to vector<4x512xf32>
    %20 = arith.mulf %17, %19 : vector<4x512xf32>
    %21 = vector.extract_strided_slice %14 {offsets = [0, 496], sizes = [4, 16], strides = [1, 1]} : vector<4x512xf32> to vector<4x16xf32>
    %22 = vector.extract_strided_slice %14 {offsets = [0, 0], sizes = [4, 496], strides = [1, 1]} : vector<4x512xf32> to vector<4x496xf32>
    %23 = tpu.concatenate %21, %22 in 1 : vector<4x16xf32>, vector<4x496xf32> -> vector<4x512xf32>
    %24 = vector.extract_strided_slice %1 {offsets = [1, 0], sizes = [1, 512], strides = [1, 1]} : vector<9x512xf32> to vector<1x512xf32>
    %25 = vector.broadcast %24 : vector<1x512xf32> to vector<4x512xf32>
    %26 = arith.mulf %23, %25 : vector<4x512xf32>
    %27 = vector.extract_strided_slice %14 {offsets = [0, 497], sizes = [4, 15], strides = [1, 1]} : vector<4x512xf32> to vector<4x15xf32>
    %28 = vector.extract_strided_slice %14 {offsets = [0, 0], sizes = [4, 497], strides = [1, 1]} : vector<4x512xf32> to vector<4x497xf32>
    %29 = tpu.concatenate %27, %28 in 1 : vector<4x15xf32>, vector<4x497xf32> -> vector<4x512xf32>
    %30 = vector.extract_strided_slice %1 {offsets = [2, 0], sizes = [1, 512], strides = [1, 1]} : vector<9x512xf32> to vector<1x512xf32>
    %31 = vector.broadcast %30 : vector<1x512xf32> to vector<4x512xf32>
    %32 = arith.mulf %29, %31 : vector<4x512xf32>
    %33 = vector.extract_strided_slice %14 {offsets = [0, 511], sizes = [4, 1], strides = [1, 1]} : vector<4x512xf32> to vector<4x1xf32>
    %34 = vector.extract_strided_slice %14 {offsets = [0, 0], sizes = [4, 511], strides = [1, 1]} : vector<4x512xf32> to vector<4x511xf32>
    %35 = tpu.concatenate %33, %34 in 1 : vector<4x1xf32>, vector<4x511xf32> -> vector<4x512xf32>
    %36 = vector.extract_strided_slice %1 {offsets = [3, 0], sizes = [1, 512], strides = [1, 1]} : vector<9x512xf32> to vector<1x512xf32>
    %37 = vector.broadcast %36 : vector<1x512xf32> to vector<4x512xf32>
    %38 = arith.mulf %35, %37 : vector<4x512xf32>
    %39 = vector.extract_strided_slice %14 {offsets = [0, 1], sizes = [4, 511], strides = [1, 1]} : vector<4x512xf32> to vector<4x511xf32>
    %40 = vector.extract_strided_slice %14 {offsets = [0, 0], sizes = [4, 1], strides = [1, 1]} : vector<4x512xf32> to vector<4x1xf32>
    %41 = tpu.concatenate %39, %40 in 1 : vector<4x511xf32>, vector<4x1xf32> -> vector<4x512xf32>
    %42 = vector.extract_strided_slice %1 {offsets = [5, 0], sizes = [1, 512], strides = [1, 1]} : vector<9x512xf32> to vector<1x512xf32>
    %43 = vector.broadcast %42 : vector<1x512xf32> to vector<4x512xf32>
    %44 = arith.mulf %41, %43 : vector<4x512xf32>
    %45 = vector.extract_strided_slice %14 {offsets = [0, 15], sizes = [4, 497], strides = [1, 1]} : vector<4x512xf32> to vector<4x497xf32>
    %46 = vector.extract_strided_slice %14 {offsets = [0, 0], sizes = [4, 15], strides = [1, 1]} : vector<4x512xf32> to vector<4x15xf32>
    %47 = tpu.concatenate %45, %46 in 1 : vector<4x497xf32>, vector<4x15xf32> -> vector<4x512xf32>
    %48 = vector.extract_strided_slice %1 {offsets = [6, 0], sizes = [1, 512], strides = [1, 1]} : vector<9x512xf32> to vector<1x512xf32>
    %49 = vector.broadcast %48 : vector<1x512xf32> to vector<4x512xf32>
    %50 = arith.mulf %47, %49 : vector<4x512xf32>
    %51 = vector.extract_strided_slice %14 {offsets = [0, 16], sizes = [4, 496], strides = [1, 1]} : vector<4x512xf32> to vector<4x496xf32>
    %52 = vector.extract_strided_slice %14 {offsets = [0, 0], sizes = [4, 16], strides = [1, 1]} : vector<4x512xf32> to vector<4x16xf32>
    %53 = tpu.concatenate %51, %52 in 1 : vector<4x496xf32>, vector<4x16xf32> -> vector<4x512xf32>
    %54 = vector.extract_strided_slice %1 {offsets = [7, 0], sizes = [1, 512], strides = [1, 1]} : vector<9x512xf32> to vector<1x512xf32>
    %55 = vector.broadcast %54 : vector<1x512xf32> to vector<4x512xf32>
    %56 = arith.mulf %53, %55 : vector<4x512xf32>
    %57 = vector.extract_strided_slice %14 {offsets = [0, 17], sizes = [4, 495], strides = [1, 1]} : vector<4x512xf32> to vector<4x495xf32>
    %58 = vector.extract_strided_slice %14 {offsets = [0, 0], sizes = [4, 17], strides = [1, 1]} : vector<4x512xf32> to vector<4x17xf32>
    %59 = tpu.concatenate %57, %58 in 1 : vector<4x495xf32>, vector<4x17xf32> -> vector<4x512xf32>
    %60 = vector.extract_strided_slice %1 {offsets = [8, 0], sizes = [1, 512], strides = [1, 1]} : vector<9x512xf32> to vector<1x512xf32>
    %61 = vector.broadcast %60 : vector<1x512xf32> to vector<4x512xf32>
    %62 = arith.mulf %59, %61 : vector<4x512xf32>
    %63 = tpu.concatenate %20, %26, %32, %38, %14, %44, %50, %56, %62 in 0 : vector<4x512xf32>, vector<4x512xf32>, vector<4x512xf32>, vector<4x512xf32>, vector<4x512xf32>, vector<4x512xf32>, vector<4x512xf32>, vector<4x512xf32>, vector<4x512xf32> -> vector<36x512xf32>
    %cst = arith.constant dense<0.000000e+00> : vector<4x512xf32>
    %64 = tpu.matmul %3, %63, %cst {dimension_numbers = #tpu.dot_dimension_numbers<[1], [0], [0], [1], [0, 0, 1, 1], [], []>} : vector<4x36xf32>, vector<36x512xf32>, vector<4x512xf32> -> vector<4x512xf32>
    %65 = vector.broadcast %5 : vector<4x1xf32> to vector<4x512xf32>
    %66 = arith.addf %64, %65 : vector<4x512xf32>
    %c0_20 = arith.constant 0 : index
    %c0_21 = arith.constant 0 : index
    %67 = vector.load %arg11[%c0_20, %c0_21] : memref<4x1xf32, #tpu.memory_space<vmem>>, vector<4x1xf32>
    %c0_22 = arith.constant 0 : index
    %c0_23 = arith.constant 0 : index
    %68 = vector.load %arg12[%c0_22, %c0_23] : memref<4x1xf32, #tpu.memory_space<vmem>>, vector<4x1xf32>
    %cst_24 = arith.constant dense<0.000000e+00> : vector<4xf32>
    %69 = vector.multi_reduction <add>, %66, %cst_24 [1] : vector<4x512xf32> to vector<4xf32>
    %70 = vector.shape_cast %69 : vector<4xf32> to vector<4x1xf32>
    %cst_25 = arith.constant 5.120000e+02 : f32
    %71 = vector.broadcast %cst_25 : f32 to vector<4x1xf32>
    %72 = arith.divf %70, %71 : vector<4x1xf32>
    %73 = vector.broadcast %72 : vector<4x1xf32> to vector<4x512xf32>
    %74 = arith.subf %66, %73 : vector<4x512xf32>
    %75 = arith.mulf %74, %74 : vector<4x512xf32>
    %cst_26 = arith.constant dense<0.000000e+00> : vector<4xf32>
    %76 = vector.multi_reduction <add>, %75, %cst_26 [1] : vector<4x512xf32> to vector<4xf32>
    %77 = vector.shape_cast %76 : vector<4xf32> to vector<4x1xf32>
    %cst_27 = arith.constant 5.120000e+02 : f32
    %78 = vector.broadcast %cst_27 : f32 to vector<4x1xf32>
    %79 = arith.divf %77, %78 : vector<4x1xf32>
    %80 = vector.broadcast %72 : vector<4x1xf32> to vector<4x512xf32>
    %81 = arith.subf %66, %80 : vector<4x512xf32>
    %cst_28 = arith.constant 9.99999974E-6 : f32
    %82 = vector.broadcast %cst_28 : f32 to vector<4x1xf32>
    %83 = arith.addf %79, %82 : vector<4x1xf32>
    %84 = math.rsqrt %83 : vector<4x1xf32>
    %85 = vector.broadcast %84 : vector<4x1xf32> to vector<4x512xf32>
    %86 = arith.mulf %81, %85 : vector<4x512xf32>
    %87 = vector.broadcast %67 : vector<4x1xf32> to vector<4x512xf32>
    %88 = arith.mulf %86, %87 : vector<4x512xf32>
    %89 = vector.broadcast %68 : vector<4x1xf32> to vector<4x512xf32>
    %90 = arith.addf %88, %89 : vector<4x512xf32>
    %cst_29 = arith.constant 0.000000e+00 : f32
    %91 = vector.broadcast %cst_29 : f32 to vector<4x512xf32>
    %92 = arith.maximumf %90, %91 : vector<4x512xf32>
    %c0_30 = arith.constant 0 : index
    %c0_31 = arith.constant 0 : index
    %93 = vector.load %arg13[%c0_30, %c0_31] : memref<4x1xf32, #tpu.memory_space<vmem>>, vector<4x1xf32>
    %c0_32 = arith.constant 0 : index
    %c0_33 = arith.constant 0 : index
    %94 = vector.load %arg14[%c0_32, %c0_33] : memref<4x1xf32, #tpu.memory_space<vmem>>, vector<4x1xf32>
    %cst_34 = arith.constant dense<0.000000e+00> : vector<4xf32>
    %95 = vector.multi_reduction <add>, %66, %cst_34 [1] : vector<4x512xf32> to vector<4xf32>
    %96 = vector.shape_cast %95 : vector<4xf32> to vector<4x1xf32>
    %cst_35 = arith.constant 5.120000e+02 : f32
    %97 = vector.broadcast %cst_35 : f32 to vector<4x1xf32>
    %98 = arith.divf %96, %97 : vector<4x1xf32>
    %99 = vector.broadcast %98 : vector<4x1xf32> to vector<4x512xf32>
    %100 = arith.subf %66, %99 : vector<4x512xf32>
    %101 = arith.mulf %100, %100 : vector<4x512xf32>
    %cst_36 = arith.constant dense<0.000000e+00> : vector<4xf32>
    %102 = vector.multi_reduction <add>, %101, %cst_36 [1] : vector<4x512xf32> to vector<4xf32>
    %103 = vector.shape_cast %102 : vector<4xf32> to vector<4x1xf32>
    %cst_37 = arith.constant 5.120000e+02 : f32
    %104 = vector.broadcast %cst_37 : f32 to vector<4x1xf32>
    %105 = arith.divf %103, %104 : vector<4x1xf32>
    %106 = vector.broadcast %98 : vector<4x1xf32> to vector<4x512xf32>
    %107 = arith.subf %66, %106 : vector<4x512xf32>
    %cst_38 = arith.constant 9.99999974E-6 : f32
    %108 = vector.broadcast %cst_38 : f32 to vector<4x1xf32>
    %109 = arith.addf %105, %108 : vector<4x1xf32>
    %110 = math.rsqrt %109 : vector<4x1xf32>
    %111 = vector.broadcast %110 : vector<4x1xf32> to vector<4x512xf32>
    %112 = arith.mulf %107, %111 : vector<4x512xf32>
    %113 = vector.broadcast %93 : vector<4x1xf32> to vector<4x512xf32>
    %114 = arith.mulf %112, %113 : vector<4x512xf32>
    %115 = vector.broadcast %94 : vector<4x1xf32> to vector<4x512xf32>
    %116 = arith.addf %114, %115 : vector<4x512xf32>
    %cst_39 = arith.constant 0.000000e+00 : f32
    %117 = vector.broadcast %cst_39 : f32 to vector<4x512xf32>
    %118 = arith.maximumf %116, %117 : vector<4x512xf32>
    %119 = vector.extract_strided_slice %92 {offsets = [0, 0], sizes = [4, 256], strides = [1, 1]} : vector<4x512xf32> to vector<4x256xf32>
    %120 = vector.extract_strided_slice %92 {offsets = [0, 256], sizes = [4, 256], strides = [1, 1]} : vector<4x512xf32> to vector<4x256xf32>
    %121 = tpu.concatenate %119, %120 in 0 : vector<4x256xf32>, vector<4x256xf32> -> vector<8x256xf32>
    %cst_40 = arith.constant dense<0.000000e+00> : vector<8x256xf32>
    %122 = tpu.matmul %121, %9, %cst_40 {dimension_numbers = #tpu.dot_dimension_numbers<[1], [0], [0], [1], [0, 0, 1, 1], [], []>} : vector<8x256xf32>, vector<256x256xf32>, vector<8x256xf32> -> vector<8x256xf32>
    %123 = vector.extract_strided_slice %121 {offsets = [0, 0], sizes = [4, 256], strides = [1, 1]} : vector<8x256xf32> to vector<4x256xf32>
    %124 = vector.extract_strided_slice %122 {offsets = [0, 0], sizes = [4, 256], strides = [1, 1]} : vector<8x256xf32> to vector<4x256xf32>
    %125 = vector.extract_strided_slice %124 {offsets = [0, 0], sizes = [1, 64], strides = [1, 1]} : vector<4x256xf32> to vector<1x64xf32>
    %126 = vector.extract_strided_slice %124 {offsets = [1, 0], sizes = [1, 64], strides = [1, 1]} : vector<4x256xf32> to vector<1x64xf32>
    %127 = vector.extract_strided_slice %124 {offsets = [2, 0], sizes = [1, 64], strides = [1, 1]} : vector<4x256xf32> to vector<1x64xf32>
    %128 = vector.extract_strided_slice %124 {offsets = [3, 0], sizes = [1, 64], strides = [1, 1]} : vector<4x256xf32> to vector<1x64xf32>
    %129 = tpu.concatenate %125, %126, %127, %128 in 1 : vector<1x64xf32>, vector<1x64xf32>, vector<1x64xf32>, vector<1x64xf32> -> vector<1x256xf32>
    %130 = vector.extract_strided_slice %124 {offsets = [0, 64], sizes = [1, 64], strides = [1, 1]} : vector<4x256xf32> to vector<1x64xf32>
    %131 = vector.extract_strided_slice %124 {offsets = [1, 64], sizes = [1, 64], strides = [1, 1]} : vector<4x256xf32> to vector<1x64xf32>
    %132 = vector.extract_strided_slice %124 {offsets = [2, 64], sizes = [1, 64], strides = [1, 1]} : vector<4x256xf32> to vector<1x64xf32>
    %133 = vector.extract_strided_slice %124 {offsets = [3, 64], sizes = [1, 64], strides = [1, 1]} : vector<4x256xf32> to vector<1x64xf32>
    %134 = tpu.concatenate %130, %131, %132, %133 in 1 : vector<1x64xf32>, vector<1x64xf32>, vector<1x64xf32>, vector<1x64xf32> -> vector<1x256xf32>
    %135 = vector.extract_strided_slice %124 {offsets = [0, 128], sizes = [1, 64], strides = [1, 1]} : vector<4x256xf32> to vector<1x64xf32>
    %136 = vector.extract_strided_slice %124 {offsets = [1, 128], sizes = [1, 64], strides = [1, 1]} : vector<4x256xf32> to vector<1x64xf32>
    %137 = vector.extract_strided_slice %124 {offsets = [2, 128], sizes = [1, 64], strides = [1, 1]} : vector<4x256xf32> to vector<1x64xf32>
    %138 = vector.extract_strided_slice %124 {offsets = [3, 128], sizes = [1, 64], strides = [1, 1]} : vector<4x256xf32> to vector<1x64xf32>
    %139 = tpu.concatenate %135, %136, %137, %138 in 1 : vector<1x64xf32>, vector<1x64xf32>, vector<1x64xf32>, vector<1x64xf32> -> vector<1x256xf32>
    %140 = vector.extract_strided_slice %124 {offsets = [0, 192], sizes = [1, 64], strides = [1, 1]} : vector<4x256xf32> to vector<1x64xf32>
    %141 = vector.extract_strided_slice %124 {offsets = [1, 192], sizes = [1, 64], strides = [1, 1]} : vector<4x256xf32> to vector<1x64xf32>
    %142 = vector.extract_strided_slice %124 {offsets = [2, 192], sizes = [1, 64], strides = [1, 1]} : vector<4x256xf32> to vector<1x64xf32>
    %143 = vector.extract_strided_slice %124 {offsets = [3, 192], sizes = [1, 64], strides = [1, 1]} : vector<4x256xf32> to vector<1x64xf32>
    %144 = tpu.concatenate %140, %141, %142, %143 in 1 : vector<1x64xf32>, vector<1x64xf32>, vector<1x64xf32>, vector<1x64xf32> -> vector<1x256xf32>
    %145 = tpu.concatenate %129, %134, %139, %144 in 0 : vector<1x256xf32>, vector<1x256xf32>, vector<1x256xf32>, vector<1x256xf32> -> vector<4x256xf32>
    %cst_41 = arith.constant dense<0.000000e+00> : vector<4x4xf32>
    %146 = tpu.matmul %123, %145, %cst_41 {dimension_numbers = #tpu.dot_dimension_numbers<[1], [1], [0], [0], [0, 0, 1, 0], [], []>} : vector<4x256xf32>, vector<4x256xf32>, vector<4x4xf32> -> vector<4x4xf32>
    %cst_42 = arith.constant dense<0.000000e+00> : vector<4x256xf32>
    %147 = tpu.matmul %146, %123, %cst_42 {dimension_numbers = #tpu.dot_dimension_numbers<[1], [0], [0], [1], [0, 0, 1, 1], [], []>} : vector<4x4xf32>, vector<4x256xf32>, vector<4x256xf32> -> vector<4x256xf32>
    %148 = arith.addf %123, %147 : vector<4x256xf32>
    %149 = vector.extract_strided_slice %121 {offsets = [4, 0], sizes = [4, 256], strides = [1, 1]} : vector<8x256xf32> to vector<4x256xf32>
    %150 = vector.extract_strided_slice %122 {offsets = [4, 0], sizes = [4, 256], strides = [1, 1]} : vector<8x256xf32> to vector<4x256xf32>
    %151 = vector.extract_strided_slice %150 {offsets = [0, 0], sizes = [1, 64], strides = [1, 1]} : vector<4x256xf32> to vector<1x64xf32>
    %152 = vector.extract_strided_slice %150 {offsets = [1, 0], sizes = [1, 64], strides = [1, 1]} : vector<4x256xf32> to vector<1x64xf32>
    %153 = vector.extract_strided_slice %150 {offsets = [2, 0], sizes = [1, 64], strides = [1, 1]} : vector<4x256xf32> to vector<1x64xf32>
    %154 = vector.extract_strided_slice %150 {offsets = [3, 0], sizes = [1, 64], strides = [1, 1]} : vector<4x256xf32> to vector<1x64xf32>
    %155 = tpu.concatenate %151, %152, %153, %154 in 1 : vector<1x64xf32>, vector<1x64xf32>, vector<1x64xf32>, vector<1x64xf32> -> vector<1x256xf32>
    %156 = vector.extract_strided_slice %150 {offsets = [0, 64], sizes = [1, 64], strides = [1, 1]} : vector<4x256xf32> to vector<1x64xf32>
    %157 = vector.extract_strided_slice %150 {offsets = [1, 64], sizes = [1, 64], strides = [1, 1]} : vector<4x256xf32> to vector<1x64xf32>
    %158 = vector.extract_strided_slice %150 {offsets = [2, 64], sizes = [1, 64], strides = [1, 1]} : vector<4x256xf32> to vector<1x64xf32>
    %159 = vector.extract_strided_slice %150 {offsets = [3, 64], sizes = [1, 64], strides = [1, 1]} : vector<4x256xf32> to vector<1x64xf32>
    %160 = tpu.concatenate %156, %157, %158, %159 in 1 : vector<1x64xf32>, vector<1x64xf32>, vector<1x64xf32>, vector<1x64xf32> -> vector<1x256xf32>
    %161 = vector.extract_strided_slice %150 {offsets = [0, 128], sizes = [1, 64], strides = [1, 1]} : vector<4x256xf32> to vector<1x64xf32>
    %162 = vector.extract_strided_slice %150 {offsets = [1, 128], sizes = [1, 64], strides = [1, 1]} : vector<4x256xf32> to vector<1x64xf32>
    %163 = vector.extract_strided_slice %150 {offsets = [2, 128], sizes = [1, 64], strides = [1, 1]} : vector<4x256xf32> to vector<1x64xf32>
    %164 = vector.extract_strided_slice %150 {offsets = [3, 128], sizes = [1, 64], strides = [1, 1]} : vector<4x256xf32> to vector<1x64xf32>
    %165 = tpu.concatenate %161, %162, %163, %164 in 1 : vector<1x64xf32>, vector<1x64xf32>, vector<1x64xf32>, vector<1x64xf32> -> vector<1x256xf32>
    %166 = vector.extract_strided_slice %150 {offsets = [0, 192], sizes = [1, 64], strides = [1, 1]} : vector<4x256xf32> to vector<1x64xf32>
    %167 = vector.extract_strided_slice %150 {offsets = [1, 192], sizes = [1, 64], strides = [1, 1]} : vector<4x256xf32> to vector<1x64xf32>
    %168 = vector.extract_strided_slice %150 {offsets = [2, 192], sizes = [1, 64], strides = [1, 1]} : vector<4x256xf32> to vector<1x64xf32>
    %169 = vector.extract_strided_slice %150 {offsets = [3, 192], sizes = [1, 64], strides = [1, 1]} : vector<4x256xf32> to vector<1x64xf32>
    %170 = tpu.concatenate %166, %167, %168, %169 in 1 : vector<1x64xf32>, vector<1x64xf32>, vector<1x64xf32>, vector<1x64xf32> -> vector<1x256xf32>
    %171 = tpu.concatenate %155, %160, %165, %170 in 0 : vector<1x256xf32>, vector<1x256xf32>, vector<1x256xf32>, vector<1x256xf32> -> vector<4x256xf32>
    %cst_43 = arith.constant dense<0.000000e+00> : vector<4x4xf32>
    %172 = tpu.matmul %149, %171, %cst_43 {dimension_numbers = #tpu.dot_dimension_numbers<[1], [1], [0], [0], [0, 0, 1, 0], [], []>} : vector<4x256xf32>, vector<4x256xf32>, vector<4x4xf32> -> vector<4x4xf32>
    %cst_44 = arith.constant dense<0.000000e+00> : vector<4x256xf32>
    %173 = tpu.matmul %172, %149, %cst_44 {dimension_numbers = #tpu.dot_dimension_numbers<[1], [0], [0], [1], [0, 0, 1, 1], [], []>} : vector<4x4xf32>, vector<4x256xf32>, vector<4x256xf32> -> vector<4x256xf32>
    %174 = arith.addf %149, %173 : vector<4x256xf32>
    %175 = tpu.concatenate %148, %174 in 1 : vector<4x256xf32>, vector<4x256xf32> -> vector<4x512xf32>
    %176 = vector.extract_strided_slice %118 {offsets = [0, 0], sizes = [4, 256], strides = [1, 1]} : vector<4x512xf32> to vector<4x256xf32>
    %177 = vector.extract_strided_slice %118 {offsets = [0, 256], sizes = [4, 256], strides = [1, 1]} : vector<4x512xf32> to vector<4x256xf32>
    %178 = tpu.concatenate %176, %177 in 0 : vector<4x256xf32>, vector<4x256xf32> -> vector<8x256xf32>
    %c0_45 = arith.constant 0 : index
    %c0_46 = arith.constant 0 : index
    %179 = vector.load %arg7[%c0_45, %c0_46] : memref<256x48xf32, #tpu.memory_space<vmem>>, vector<256x48xf32>
    %cst_47 = arith.constant dense<0.000000e+00> : vector<8x48xf32>
    %180 = tpu.matmul %178, %179, %cst_47 {dimension_numbers = #tpu.dot_dimension_numbers<[1], [0], [0], [1], [0, 0, 1, 1], [], []>} : vector<8x256xf32>, vector<256x48xf32>, vector<8x48xf32> -> vector<8x48xf32>
    %181 = vector.broadcast %7 : vector<1x48xf32> to vector<8x48xf32>
    %182 = arith.addf %180, %181 : vector<8x48xf32>
    %183 = vector.extract_strided_slice %182 {offsets = [0, 0], sizes = [8, 16], strides = [1, 1]} : vector<8x48xf32> to vector<8x16xf32>
    %cst_48 = arith.constant 2.000000e+01 : f32
    %184 = vector.broadcast %cst_48 : f32 to vector<8x16xf32>
    %185 = arith.cmpf ogt, %183, %184 : vector<8x16xf32>
    %cst_49 = arith.constant 2.000000e+01 : f32
    %186 = vector.broadcast %cst_49 : f32 to vector<8x16xf32>
    %187 = arith.minimumf %183, %186 : vector<8x16xf32>
    %188 = math.exp %187 : vector<8x16xf32>
    %cst_50 = arith.constant 1.000000e+00 : f32
    %189 = vector.broadcast %cst_50 : f32 to vector<8x16xf32>
    %190 = arith.addf %189, %188 : vector<8x16xf32>
    %191 = math.log %190 : vector<8x16xf32>
    %192 = arith.select %185, %183, %191 : vector<8x16xi1>, vector<8x16xf32>
    %193 = vector.extract_strided_slice %182 {offsets = [0, 16], sizes = [8, 16], strides = [1, 1]} : vector<8x48xf32> to vector<8x16xf32>
    %cst_51 = arith.constant 2.000000e+01 : f32
    %194 = vector.broadcast %cst_51 : f32 to vector<8x16xf32>
    %195 = arith.cmpf ogt, %193, %194 : vector<8x16xf32>
    %cst_52 = arith.constant 2.000000e+01 : f32
    %196 = vector.broadcast %cst_52 : f32 to vector<8x16xf32>
    %197 = arith.minimumf %193, %196 : vector<8x16xf32>
    %198 = math.exp %197 : vector<8x16xf32>
    %cst_53 = arith.constant 1.000000e+00 : f32
    %199 = vector.broadcast %cst_53 : f32 to vector<8x16xf32>
    %200 = arith.addf %199, %198 : vector<8x16xf32>
    %201 = math.log %200 : vector<8x16xf32>
    %202 = arith.select %195, %193, %201 : vector<8x16xi1>, vector<8x16xf32>
    %203 = vector.extract_strided_slice %182 {offsets = [0, 32], sizes = [8, 16], strides = [1, 1]} : vector<8x48xf32> to vector<8x16xf32>
    %204 = vector.extract_strided_slice %202 {offsets = [0, 0], sizes = [4, 16], strides = [1, 1]} : vector<8x16xf32> to vector<4x16xf32>
    %205 = vector.extract_strided_slice %192 {offsets = [0, 0], sizes = [4, 16], strides = [1, 1]} : vector<8x16xf32> to vector<4x16xf32>
    %206 = vector.extract_strided_slice %203 {offsets = [0, 0], sizes = [4, 16], strides = [1, 1]} : vector<8x16xf32> to vector<4x16xf32>
    %cst_54 = arith.constant dense<0.000000e+00> : vector<4x4xf32>
    %207 = tpu.matmul %204, %205, %cst_54 {dimension_numbers = #tpu.dot_dimension_numbers<[1], [1], [0], [0], [0, 0, 1, 0], [], []>} : vector<4x16xf32>, vector<4x16xf32>, vector<4x4xf32> -> vector<4x4xf32>
    %cst_55 = arith.constant dense<0.000000e+00> : vector<4x16xf32>
    %208 = tpu.matmul %207, %206, %cst_55 {dimension_numbers = #tpu.dot_dimension_numbers<[1], [0], [0], [1], [0, 0, 1, 1], [], []>} : vector<4x4xf32>, vector<4x16xf32>, vector<4x16xf32> -> vector<4x16xf32>
    %209 = vector.extract_strided_slice %202 {offsets = [4, 0], sizes = [4, 16], strides = [1, 1]} : vector<8x16xf32> to vector<4x16xf32>
    %210 = vector.extract_strided_slice %192 {offsets = [4, 0], sizes = [4, 16], strides = [1, 1]} : vector<8x16xf32> to vector<4x16xf32>
    %211 = vector.extract_strided_slice %203 {offsets = [4, 0], sizes = [4, 16], strides = [1, 1]} : vector<8x16xf32> to vector<4x16xf32>
    %cst_56 = arith.constant dense<0.000000e+00> : vector<4x4xf32>
    %212 = tpu.matmul %209, %210, %cst_56 {dimension_numbers = #tpu.dot_dimension_numbers<[1], [1], [0], [0], [0, 0, 1, 0], [], []>} : vector<4x16xf32>, vector<4x16xf32>, vector<4x4xf32> -> vector<4x4xf32>
    %cst_57 = arith.constant dense<0.000000e+00> : vector<4x16xf32>
    %213 = tpu.matmul %212, %211, %cst_57 {dimension_numbers = #tpu.dot_dimension_numbers<[1], [0], [0], [1], [0, 0, 1, 1], [], []>} : vector<4x4xf32>, vector<4x16xf32>, vector<4x16xf32> -> vector<4x16xf32>
    %214 = tpu.concatenate %208, %213 in 0 : vector<4x16xf32>, vector<4x16xf32> -> vector<8x16xf32>
    %c0_58 = arith.constant 0 : index
    %c0_59 = arith.constant 0 : index
    %215 = vector.load %arg9[%c0_58, %c0_59] : memref<16x256xf32, #tpu.memory_space<vmem>>, vector<16x256xf32>
    %cst_60 = arith.constant dense<0.000000e+00> : vector<8x256xf32>
    %216 = tpu.matmul %214, %215, %cst_60 {dimension_numbers = #tpu.dot_dimension_numbers<[1], [0], [0], [1], [0, 0, 1, 1], [], []>} : vector<8x16xf32>, vector<16x256xf32>, vector<8x256xf32> -> vector<8x256xf32>
    %217 = vector.broadcast %8 : vector<1x256xf32> to vector<8x256xf32>
    %218 = arith.addf %216, %217 : vector<8x256xf32>
    %219 = vector.extract_strided_slice %218 {offsets = [0, 0], sizes = [4, 256], strides = [1, 1]} : vector<8x256xf32> to vector<4x256xf32>
    %220 = vector.extract_strided_slice %218 {offsets = [4, 0], sizes = [4, 256], strides = [1, 1]} : vector<8x256xf32> to vector<4x256xf32>
    %221 = tpu.concatenate %219, %220 in 1 : vector<4x256xf32>, vector<4x256xf32> -> vector<4x512xf32>
    %222 = tpu.concatenate %175, %221 in 1 : vector<4x512xf32>, vector<4x512xf32> -> vector<4x1024xf32>
    %223 = vector.extract_strided_slice %222 {offsets = [0, 1007], sizes = [4, 17], strides = [1, 1]} : vector<4x1024xf32> to vector<4x17xf32>
    %224 = vector.extract_strided_slice %222 {offsets = [0, 0], sizes = [4, 1007], strides = [1, 1]} : vector<4x1024xf32> to vector<4x1007xf32>
    %225 = tpu.concatenate %223, %224 in 1 : vector<4x17xf32>, vector<4x1007xf32> -> vector<4x1024xf32>
    %226 = vector.extract_strided_slice %2 {offsets = [0, 0], sizes = [1, 1024], strides = [1, 1]} : vector<9x1024xf32> to vector<1x1024xf32>
    %227 = vector.broadcast %226 : vector<1x1024xf32> to vector<4x1024xf32>
    %228 = arith.mulf %225, %227 : vector<4x1024xf32>
    %229 = vector.extract_strided_slice %222 {offsets = [0, 1008], sizes = [4, 16], strides = [1, 1]} : vector<4x1024xf32> to vector<4x16xf32>
    %230 = vector.extract_strided_slice %222 {offsets = [0, 0], sizes = [4, 1008], strides = [1, 1]} : vector<4x1024xf32> to vector<4x1008xf32>
    %231 = tpu.concatenate %229, %230 in 1 : vector<4x16xf32>, vector<4x1008xf32> -> vector<4x1024xf32>
    %232 = vector.extract_strided_slice %2 {offsets = [1, 0], sizes = [1, 1024], strides = [1, 1]} : vector<9x1024xf32> to vector<1x1024xf32>
    %233 = vector.broadcast %232 : vector<1x1024xf32> to vector<4x1024xf32>
    %234 = arith.mulf %231, %233 : vector<4x1024xf32>
    %235 = vector.extract_strided_slice %222 {offsets = [0, 1009], sizes = [4, 15], strides = [1, 1]} : vector<4x1024xf32> to vector<4x15xf32>
    %236 = vector.extract_strided_slice %222 {offsets = [0, 0], sizes = [4, 1009], strides = [1, 1]} : vector<4x1024xf32> to vector<4x1009xf32>
    %237 = tpu.concatenate %235, %236 in 1 : vector<4x15xf32>, vector<4x1009xf32> -> vector<4x1024xf32>
    %238 = vector.extract_strided_slice %2 {offsets = [2, 0], sizes = [1, 1024], strides = [1, 1]} : vector<9x1024xf32> to vector<1x1024xf32>
    %239 = vector.broadcast %238 : vector<1x1024xf32> to vector<4x1024xf32>
    %240 = arith.mulf %237, %239 : vector<4x1024xf32>
    %241 = vector.extract_strided_slice %222 {offsets = [0, 1023], sizes = [4, 1], strides = [1, 1]} : vector<4x1024xf32> to vector<4x1xf32>
    %242 = vector.extract_strided_slice %222 {offsets = [0, 0], sizes = [4, 1023], strides = [1, 1]} : vector<4x1024xf32> to vector<4x1023xf32>
    %243 = tpu.concatenate %241, %242 in 1 : vector<4x1xf32>, vector<4x1023xf32> -> vector<4x1024xf32>
    %244 = vector.extract_strided_slice %2 {offsets = [3, 0], sizes = [1, 1024], strides = [1, 1]} : vector<9x1024xf32> to vector<1x1024xf32>
    %245 = vector.broadcast %244 : vector<1x1024xf32> to vector<4x1024xf32>
    %246 = arith.mulf %243, %245 : vector<4x1024xf32>
    %247 = vector.extract_strided_slice %222 {offsets = [0, 1], sizes = [4, 1023], strides = [1, 1]} : vector<4x1024xf32> to vector<4x1023xf32>
    %248 = vector.extract_strided_slice %222 {offsets = [0, 0], sizes = [4, 1], strides = [1, 1]} : vector<4x1024xf32> to vector<4x1xf32>
    %249 = tpu.concatenate %247, %248 in 1 : vector<4x1023xf32>, vector<4x1xf32> -> vector<4x1024xf32>
    %250 = vector.extract_strided_slice %2 {offsets = [5, 0], sizes = [1, 1024], strides = [1, 1]} : vector<9x1024xf32> to vector<1x1024xf32>
    %251 = vector.broadcast %250 : vector<1x1024xf32> to vector<4x1024xf32>
    %252 = arith.mulf %249, %251 : vector<4x1024xf32>
    %253 = vector.extract_strided_slice %222 {offsets = [0, 15], sizes = [4, 1009], strides = [1, 1]} : vector<4x1024xf32> to vector<4x1009xf32>
    %254 = vector.extract_strided_slice %222 {offsets = [0, 0], sizes = [4, 15], strides = [1, 1]} : vector<4x1024xf32> to vector<4x15xf32>
    %255 = tpu.concatenate %253, %254 in 1 : vector<4x1009xf32>, vector<4x15xf32> -> vector<4x1024xf32>
    %256 = vector.extract_strided_slice %2 {offsets = [6, 0], sizes = [1, 1024], strides = [1, 1]} : vector<9x1024xf32> to vector<1x1024xf32>
    %257 = vector.broadcast %256 : vector<1x1024xf32> to vector<4x1024xf32>
    %258 = arith.mulf %255, %257 : vector<4x1024xf32>
    %259 = vector.extract_strided_slice %222 {offsets = [0, 16], sizes = [4, 1008], strides = [1, 1]} : vector<4x1024xf32> to vector<4x1008xf32>
    %260 = vector.extract_strided_slice %222 {offsets = [0, 0], sizes = [4, 16], strides = [1, 1]} : vector<4x1024xf32> to vector<4x16xf32>
    %261 = tpu.concatenate %259, %260 in 1 : vector<4x1008xf32>, vector<4x16xf32> -> vector<4x1024xf32>
    %262 = vector.extract_strided_slice %2 {offsets = [7, 0], sizes = [1, 1024], strides = [1, 1]} : vector<9x1024xf32> to vector<1x1024xf32>
    %263 = vector.broadcast %262 : vector<1x1024xf32> to vector<4x1024xf32>
    %264 = arith.mulf %261, %263 : vector<4x1024xf32>
    %265 = vector.extract_strided_slice %222 {offsets = [0, 17], sizes = [4, 1007], strides = [1, 1]} : vector<4x1024xf32> to vector<4x1007xf32>
    %266 = vector.extract_strided_slice %222 {offsets = [0, 0], sizes = [4, 17], strides = [1, 1]} : vector<4x1024xf32> to vector<4x17xf32>
    %267 = tpu.concatenate %265, %266 in 1 : vector<4x1007xf32>, vector<4x17xf32> -> vector<4x1024xf32>
    %268 = vector.extract_strided_slice %2 {offsets = [8, 0], sizes = [1, 1024], strides = [1, 1]} : vector<9x1024xf32> to vector<1x1024xf32>
    %269 = vector.broadcast %268 : vector<1x1024xf32> to vector<4x1024xf32>
    %270 = arith.mulf %267, %269 : vector<4x1024xf32>
    %271 = tpu.concatenate %228, %234, %240, %246, %222, %252, %258, %264, %270 in 0 : vector<4x1024xf32>, vector<4x1024xf32>, vector<4x1024xf32>, vector<4x1024xf32>, vector<4x1024xf32>, vector<4x1024xf32>, vector<4x1024xf32>, vector<4x1024xf32>, vector<4x1024xf32> -> vector<36x1024xf32>
    %cst_61 = arith.constant dense<0.000000e+00> : vector<8x1024xf32>
    %272 = tpu.matmul %4, %271, %cst_61 {dimension_numbers = #tpu.dot_dimension_numbers<[1], [0], [0], [1], [0, 0, 1, 1], [], []>} : vector<8x36xf32>, vector<36x1024xf32>, vector<8x1024xf32> -> vector<8x1024xf32>
    %273 = vector.broadcast %6 : vector<8x1xf32> to vector<8x1024xf32>
    %274 = arith.addf %272, %273 : vector<8x1024xf32>
    %275 = vector.extract_strided_slice %274 {offsets = [0, 0], sizes = [8, 512], strides = [1, 1]} : vector<8x1024xf32> to vector<8x512xf32>
    %c0_62 = arith.constant 0 : index
    %c0_63 = arith.constant 0 : index
    %276 = vector.load %arg15[%c0_62, %c0_63] : memref<8x1xf32, #tpu.memory_space<vmem>>, vector<8x1xf32>
    %c0_64 = arith.constant 0 : index
    %c0_65 = arith.constant 0 : index
    %277 = vector.load %arg16[%c0_64, %c0_65] : memref<8x1xf32, #tpu.memory_space<vmem>>, vector<8x1xf32>
    %cst_66 = arith.constant dense<0.000000e+00> : vector<8xf32>
    %278 = vector.multi_reduction <add>, %275, %cst_66 [1] : vector<8x512xf32> to vector<8xf32>
    %279 = vector.shape_cast %278 : vector<8xf32> to vector<8x1xf32>
    %cst_67 = arith.constant 5.120000e+02 : f32
    %280 = vector.broadcast %cst_67 : f32 to vector<8x1xf32>
    %281 = arith.divf %279, %280 : vector<8x1xf32>
    %282 = vector.broadcast %281 : vector<8x1xf32> to vector<8x512xf32>
    %283 = arith.subf %275, %282 : vector<8x512xf32>
    %284 = arith.mulf %283, %283 : vector<8x512xf32>
    %cst_68 = arith.constant dense<0.000000e+00> : vector<8xf32>
    %285 = vector.multi_reduction <add>, %284, %cst_68 [1] : vector<8x512xf32> to vector<8xf32>
    %286 = vector.shape_cast %285 : vector<8xf32> to vector<8x1xf32>
    %cst_69 = arith.constant 5.120000e+02 : f32
    %287 = vector.broadcast %cst_69 : f32 to vector<8x1xf32>
    %288 = arith.divf %286, %287 : vector<8x1xf32>
    %289 = vector.broadcast %281 : vector<8x1xf32> to vector<8x512xf32>
    %290 = arith.subf %275, %289 : vector<8x512xf32>
    %cst_70 = arith.constant 9.99999974E-6 : f32
    %291 = vector.broadcast %cst_70 : f32 to vector<8x1xf32>
    %292 = arith.addf %288, %291 : vector<8x1xf32>
    %293 = math.rsqrt %292 : vector<8x1xf32>
    %294 = vector.broadcast %293 : vector<8x1xf32> to vector<8x512xf32>
    %295 = arith.mulf %290, %294 : vector<8x512xf32>
    %296 = vector.broadcast %276 : vector<8x1xf32> to vector<8x512xf32>
    %297 = arith.mulf %295, %296 : vector<8x512xf32>
    %298 = vector.broadcast %277 : vector<8x1xf32> to vector<8x512xf32>
    %299 = arith.addf %297, %298 : vector<8x512xf32>
    %cst_71 = arith.constant 0.000000e+00 : f32
    %300 = vector.broadcast %cst_71 : f32 to vector<8x512xf32>
    %301 = arith.maximumf %299, %300 : vector<8x512xf32>
    %302 = vector.extract_strided_slice %274 {offsets = [0, 512], sizes = [8, 512], strides = [1, 1]} : vector<8x1024xf32> to vector<8x512xf32>
    %c0_72 = arith.constant 0 : index
    %c0_73 = arith.constant 0 : index
    %303 = vector.load %arg17[%c0_72, %c0_73] : memref<8x1xf32, #tpu.memory_space<vmem>>, vector<8x1xf32>
    %c0_74 = arith.constant 0 : index
    %c0_75 = arith.constant 0 : index
    %304 = vector.load %arg18[%c0_74, %c0_75] : memref<8x1xf32, #tpu.memory_space<vmem>>, vector<8x1xf32>
    %cst_76 = arith.constant dense<0.000000e+00> : vector<8xf32>
    %305 = vector.multi_reduction <add>, %302, %cst_76 [1] : vector<8x512xf32> to vector<8xf32>
    %306 = vector.shape_cast %305 : vector<8xf32> to vector<8x1xf32>
    %cst_77 = arith.constant 5.120000e+02 : f32
    %307 = vector.broadcast %cst_77 : f32 to vector<8x1xf32>
    %308 = arith.divf %306, %307 : vector<8x1xf32>
    %309 = vector.broadcast %308 : vector<8x1xf32> to vector<8x512xf32>
    %310 = arith.subf %302, %309 : vector<8x512xf32>
    %311 = arith.mulf %310, %310 : vector<8x512xf32>
    %cst_78 = arith.constant dense<0.000000e+00> : vector<8xf32>
    %312 = vector.multi_reduction <add>, %311, %cst_78 [1] : vector<8x512xf32> to vector<8xf32>
    %313 = vector.shape_cast %312 : vector<8xf32> to vector<8x1xf32>
    %cst_79 = arith.constant 5.120000e+02 : f32
    %314 = vector.broadcast %cst_79 : f32 to vector<8x1xf32>
    %315 = arith.divf %313, %314 : vector<8x1xf32>
    %316 = vector.broadcast %308 : vector<8x1xf32> to vector<8x512xf32>
    %317 = arith.subf %302, %316 : vector<8x512xf32>
    %cst_80 = arith.constant 9.99999974E-6 : f32
    %318 = vector.broadcast %cst_80 : f32 to vector<8x1xf32>
    %319 = arith.addf %315, %318 : vector<8x1xf32>
    %320 = math.rsqrt %319 : vector<8x1xf32>
    %321 = vector.broadcast %320 : vector<8x1xf32> to vector<8x512xf32>
    %322 = arith.mulf %317, %321 : vector<8x512xf32>
    %323 = vector.broadcast %303 : vector<8x1xf32> to vector<8x512xf32>
    %324 = arith.mulf %322, %323 : vector<8x512xf32>
    %325 = vector.broadcast %304 : vector<8x1xf32> to vector<8x512xf32>
    %326 = arith.addf %324, %325 : vector<8x512xf32>
    %cst_81 = arith.constant 0.000000e+00 : f32
    %327 = vector.broadcast %cst_81 : f32 to vector<8x512xf32>
    %328 = arith.maximumf %326, %327 : vector<8x512xf32>
    %329 = arith.addf %301, %328 : vector<8x512xf32>
    %330 = vector.extract_strided_slice %329 {offsets = [0, 0], sizes = [8, 256], strides = [1, 1]} : vector<8x512xf32> to vector<8x256xf32>
    %c0_82 = arith.constant 0 : index
    %c0_83 = arith.constant 0 : index
    %c0_84 = arith.constant 0 : index
    %331 = vector.load %arg19[%c0_82, %c0_83, %c0_84] : memref<2x8x256xf32, #tpu.memory_space<vmem>>, vector<1x8x256xf32>
    %332 = vector.shape_cast %331 : vector<1x8x256xf32> to vector<8x256xf32>
    %333 = vector.shape_cast %330 : vector<8x256xf32> to vector<1x8x256xf32>
    tpu.vector_store %arg19[%c0_82, %c0_83, %c0_84], %333 {strides = array<i32>} : memref<2x8x256xf32, #tpu.memory_space<vmem>>, vector<1x8x256xf32>,
    %334 = vector.extract_strided_slice %329 {offsets = [0, 256], sizes = [8, 256], strides = [1, 1]} : vector<8x512xf32> to vector<8x256xf32>
    %c1_85 = arith.constant 1 : index
    %c0_86 = arith.constant 0 : index
    %c0_87 = arith.constant 0 : index
    %335 = vector.load %arg19[%c1_85, %c0_86, %c0_87] : memref<2x8x256xf32, #tpu.memory_space<vmem>>, vector<1x8x256xf32>
    %336 = vector.shape_cast %335 : vector<1x8x256xf32> to vector<8x256xf32>
    %337 = vector.shape_cast %334 : vector<8x256xf32> to vector<1x8x256xf32>
    tpu.vector_store %arg19[%c1_85, %c0_86, %c0_87], %337 {strides = array<i32>} : memref<2x8x256xf32, #tpu.memory_space<vmem>>, vector<1x8x256xf32>,
    return
  }
}

</mosaic_0001>

<llo_original>
// kernel: attention_forward.1
$region0: #{attention_forward.1}
  #allocation0 [shape = 'u32[]', space=smem, size = 0x4, offset = 0x4, fixed_abs, tag = 'smem constant byte address 0x4 - core index']
  #allocation1 [shape = 'u32[144,128]{1,0:T(1,128)}', space=vmem, size = 0x12000, scoped, tag = 'internal scratch']
  %s0 = inlined_call_operand.vmem [shape: f32[2,4,256], index: 0, kind: input, shape index: {}]
  %s1 = inlined_call_operand.hbm [shape: f32[9,256], index: 1, kind: input, shape index: {}]
  %s2 = inlined_call_operand.vmem [shape: f32[256,256], index: 2, kind: input, shape index: {}]
  %s3 = inlined_call_operand.vmem [shape: f32[4,36], index: 3, kind: input, shape index: {}]
  %s4 = inlined_call_operand.vmem [shape: f32[4,1], index: 4, kind: input, shape index: {}]
  %s5 = inlined_call_operand.vmem [shape: f32[8,36], index: 5, kind: input, shape index: {}]
  %s6 = inlined_call_operand.vmem [shape: f32[8,1], index: 6, kind: input, shape index: {}]
  %s7 = inlined_call_operand.vmem [shape: f32[256,48], index: 7, kind: input, shape index: {}]
  %s8 = inlined_call_operand.hbm [shape: f32[1,48], index: 8, kind: input, shape index: {}]
  %s9 = inlined_call_operand.hbm [shape: f32[16,256], index: 9, kind: input, shape index: {}]
  %s10 = inlined_call_operand.vmem [shape: f32[1,256], index: 10, kind: input, shape index: {}]
  %s11 = inlined_call_operand.vmem [shape: f32[4,1], index: 11, kind: input, shape index: {}]
  %s12 = inlined_call_operand.vmem [shape: f32[4,1], index: 12, kind: input, shape index: {}]
  %s13 = inlined_call_operand.vmem [shape: f32[4,1], index: 13, kind: input, shape index: {}]
  %s14 = inlined_call_operand.vmem [shape: f32[4,1], index: 14, kind: input, shape index: {}]
  %s15 = inlined_call_operand.vmem [shape: f32[8,1], index: 15, kind: input, shape index: {}]
  %s16 = inlined_call_operand.vmem [shape: f32[8,1], index: 16, kind: input, shape index: {}]
  %s17 = inlined_call_operand.vmem [shape: f32[8,1], index: 17, kind: input, shape index: {}]
  %s18 = inlined_call_operand.vmem [shape: f32[8,1], index: 18, kind: input, shape index: {}]
  %s19 = inlined_call_operand.vmem [shape: f32[2,8,256], index: 19, kind: output, shape index: {}]
  %s20 = sld [smem:[#allocation0]]
  $region98: #{attention_forward.1} parent=0
    _
  %s22 = ssub.s32 1, %s20
  %s23 = scalar_select 0, %s22, %s20
  $region1: #{attention_forward.1} parent=0
    #allocation2 [shape = 'u8[16384]{0}', space=vmem, size = 0x4000, scoped, tag = 'input window, operand 1, single buffered']
    #allocation3 [shape = 's32[1]{0}', space=sflag, size = 0x4, scoped, tag = 'scoped memory for attention_forward.1']
    #allocation4 [shape = 'u8[512]{0}', space=vmem, size = 0x400, scoped, tag = 'input window, operand 8, single buffered']
    #allocation5 [shape = 's32[1]{0}', space=sflag, size = 0x4, scoped, tag = 'scoped memory for attention_forward.1']
    #allocation6 [shape = 'u8[16384]{0}', space=vmem, size = 0x4000, scoped, tag = 'input window, operand 9, single buffered']
    %24 = vsyncpa [#allocation3], 0
    %25 = vsyncpa [#allocation5], 0
    // Predicated region
    $region2: #{attention_forward.1} parent=1 // pred_check
      _
    $region3: #{attention_forward.1} parent=1 // pred_check_branch
      %27 = sbr.rel (0) target = $region5
    $region4: #{attention_forward.1} parent=1 // pred_region
      _
    $region5: #{attention_forward.1} parent=1 // pred_fallthru
      _
    // Predicated region
    $region6: #{attention_forward.1} parent=1 // pred_check
      _
    $region7: #{attention_forward.1} parent=1 // pred_check_branch
      %29 = sbr.rel (0) target = $region9
    $region8: #{attention_forward.1} parent=1 // pred_region
      %s31 = ssub.s32 512, 512
      %32 = vsyncadd [#allocation3], %s31
      %s33 = sshll.u32 [#allocation2], 4
      %s34 = int_to_ptr.vmem [resolvable:$true] %s33
      %39 = dma.hbm_to_vmem [thread:$0]  %s1, 512, %s34, [#allocation3], 256, 256, 16
    $region9: #{attention_forward.1} parent=1 // pred_fallthru
      _
    // Predicated region
    $region10: #{attention_forward.1} parent=1 // pred_check
      _
    $region11: #{attention_forward.1} parent=1 // pred_check_branch
      %41 = sbr.rel (0) target = $region13
    $region12: #{attention_forward.1} parent=1 // pred_region
      _
    $region13: #{attention_forward.1} parent=1 // pred_fallthru
      _
    // Predicated region
    $region14: #{attention_forward.1} parent=1 // pred_check
      _
    $region15: #{attention_forward.1} parent=1 // pred_check_branch
      %43 = sbr.rel (0) target = $region17
    $region16: #{attention_forward.1} parent=1 // pred_region
      _
    $region17: #{attention_forward.1} parent=1 // pred_fallthru
      _
    // Predicated region
    $region18: #{attention_forward.1} parent=1 // pred_check
      _
    $region19: #{attention_forward.1} parent=1 // pred_check_branch
      %45 = sbr.rel (0) target = $region21
    $region20: #{attention_forward.1} parent=1 // pred_region
      _
    $region21: #{attention_forward.1} parent=1 // pred_fallthru
      _
    // Predicated region
    $region22: #{attention_forward.1} parent=1 // pred_check
      _
    $region23: #{attention_forward.1} parent=1 // pred_check_branch
      %47 = sbr.rel (0) target = $region25
    $region24: #{attention_forward.1} parent=1 // pred_region
      _
    $region25: #{attention_forward.1} parent=1 // pred_fallthru
      _
    // Predicated region
    $region26: #{attention_forward.1} parent=1 // pred_check
      _
    $region27: #{attention_forward.1} parent=1 // pred_check_branch
      %49 = sbr.rel (0) target = $region29
    $region28: #{attention_forward.1} parent=1 // pred_region
      _
    $region29: #{attention_forward.1} parent=1 // pred_fallthru
      _
    // Predicated region
    $region30: #{attention_forward.1} parent=1 // pred_check
      _
    $region31: #{attention_forward.1} parent=1 // pred_check_branch
      %51 = sbr.rel (0) target = $region33
    $region32: #{attention_forward.1} parent=1 // pred_region
      _
    $region33: #{attention_forward.1} parent=1 // pred_fallthru
      _
    // Predicated region
    $region34: #{attention_forward.1} parent=1 // pred_check
      _
    $region35: #{attention_forward.1} parent=1 // pred_check_branch
      %53 = sbr.rel (0) target = $region37
    $region36: #{attention_forward.1} parent=1 // pred_region
      %s55 = ssub.s32 16, 16
      %56 = vsyncadd [#allocation5], %s55
      %s58 = sshll.u32 [#allocation4], 4
      %s59 = int_to_ptr.vmem [resolvable:$true] %s58
      %61 = dma.hbm_to_vmem [thread:$0]  %s8, 16, %s59, [#allocation5]
    $region37: #{attention_forward.1} parent=1 // pred_fallthru
      _
    // Predicated region
    $region38: #{attention_forward.1} parent=1 // pred_check
      _
    $region39: #{attention_forward.1} parent=1 // pred_check_branch
      %63 = sbr.rel (0) target = $region41
    $region40: #{attention_forward.1} parent=1 // pred_region
      %s65 = ssub.s32 512, 512
      %66 = vsyncadd [#allocation5], %s65
      %s67 = sshll.u32 [#allocation6], 4
      %s68 = int_to_ptr.vmem [resolvable:$true] %s67
      %73 = dma.hbm_to_vmem [thread:$0]  %s9, 512, %s68, [#allocation5], 256, 256, 16
    $region41: #{attention_forward.1} parent=1 // pred_fallthru
      _
    // Predicated region
    $region42: #{attention_forward.1} parent=1 // pred_check
      _
    $region43: #{attention_forward.1} parent=1 // pred_check_branch
      %75 = sbr.rel (0) target = $region45
    $region44: #{attention_forward.1} parent=1 // pred_region
      _
    $region45: #{attention_forward.1} parent=1 // pred_fallthru
      _
    // Predicated region
    $region46: #{attention_forward.1} parent=1 // pred_check
      _
    $region47: #{attention_forward.1} parent=1 // pred_check_branch
      %77 = sbr.rel (0) target = $region49
    $region48: #{attention_forward.1} parent=1 // pred_region
      _
    $region49: #{attention_forward.1} parent=1 // pred_fallthru
      _
    // Predicated region
    $region50: #{attention_forward.1} parent=1 // pred_check
      _
    $region51: #{attention_forward.1} parent=1 // pred_check_branch
      %79 = sbr.rel (0) target = $region53
    $region52: #{attention_forward.1} parent=1 // pred_region
      _
    $region53: #{attention_forward.1} parent=1 // pred_fallthru
      _
    // Predicated region
    $region54: #{attention_forward.1} parent=1 // pred_check
      _
    $region55: #{attention_forward.1} parent=1 // pred_check_branch
      %81 = sbr.rel (0) target = $region57
    $region56: #{attention_forward.1} parent=1 // pred_region
      _
    $region57: #{attention_forward.1} parent=1 // pred_fallthru
      _
    // Predicated region
    $region58: #{attention_forward.1} parent=1 // pred_check
      _
    $region59: #{attention_forward.1} parent=1 // pred_check_branch
      %83 = sbr.rel (0) target = $region61
    $region60: #{attention_forward.1} parent=1 // pred_region
      _
    $region61: #{attention_forward.1} parent=1 // pred_fallthru
      _
    // Predicated region
    $region62: #{attention_forward.1} parent=1 // pred_check
      _
    $region63: #{attention_forward.1} parent=1 // pred_check_branch
      %85 = sbr.rel (0) target = $region65
    $region64: #{attention_forward.1} parent=1 // pred_region
      _
    $region65: #{attention_forward.1} parent=1 // pred_fallthru
      _
    // Predicated region
    $region66: #{attention_forward.1} parent=1 // pred_check
      _
    $region67: #{attention_forward.1} parent=1 // pred_check_branch
      %87 = sbr.rel (0) target = $region69
    $region68: #{attention_forward.1} parent=1 // pred_region
      _
    $region69: #{attention_forward.1} parent=1 // pred_fallthru
      _
    // Predicated region
    $region70: #{attention_forward.1} parent=1 // pred_check
      _
    $region71: #{attention_forward.1} parent=1 // pred_check_branch
      %89 = sbr.rel (0) target = $region73
    $region72: #{attention_forward.1} parent=1 // pred_region
      _
    $region73: #{attention_forward.1} parent=1 // pred_fallthru
      _
    // Predicated region
    $region74: #{attention_forward.1} parent=1 // pred_check
      _
    $region75: #{attention_forward.1} parent=1 // pred_check_branch
      %91 = sbr.rel (0) target = $region77
    $region76: #{attention_forward.1} parent=1 // pred_region
      _
    $region77: #{attention_forward.1} parent=1 // pred_fallthru
      _
    // Predicated region
    $region78: #{attention_forward.1} parent=1 // pred_check
      _
    $region79: #{attention_forward.1} parent=1 // pred_check_branch
      %93 = sbr.rel (0) target = $region81
    $region80: #{attention_forward.1} parent=1 // pred_region
      %94 = dma.done [#allocation3], 512
    $region81: #{attention_forward.1} parent=1 // pred_fallthru
      _
    // Predicated region
    $region82: #{attention_forward.1} parent=1 // pred_check
      _
    $region83: #{attention_forward.1} parent=1 // pred_check_branch
      %96 = sbr.rel (0) target = $region85
    $region84: #{attention_forward.1} parent=1 // pred_region
      %97 = dma.done [#allocation5], 16
    $region85: #{attention_forward.1} parent=1 // pred_fallthru
      _
    // Predicated region
    $region86: #{attention_forward.1} parent=1 // pred_check
      _
    $region87: #{attention_forward.1} parent=1 // pred_check_branch
      %99 = sbr.rel (0) target = $region89
    $region88: #{attention_forward.1} parent=1 // pred_region
      %100 = dma.done [#allocation5], 512
    $region89: #{attention_forward.1} parent=1 // pred_fallthru
      _
    %v101 = vld [vmem:[#allocation2] sm:$0xff]
    %v102 = vld [vmem:[#allocation2 + $0x8] sm:$0xff]
    %v103 = vld [vmem:[#allocation2 + $0x10] sm:$0x1]
    %v104 = vld [vmem:[#allocation2 + $0x18] sm:$0x1]
    %v105 = vld [vmem:[%s3] sm:$0xf]
    %v106 = vld [vmem:[%s5] sm:$0xff]
    %v107 = vld [vmem:[%s4] sm:$0xf]
    %v108 = vld [vmem:[%s6] sm:$0xff]
    %v109 = vld [vmem:[#allocation4] sm:$0x1]
    %v110 = vld [vmem:[%s10] sm:$0x3]
    %v111 = vld [vmem:[%s2] sm:$0xff]
    %v112 = vld [vmem:[%s2 + $0x8] sm:$0xff]
    %v113 = vld [vmem:[%s2 + $0x10] sm:$0xff]
    %v114 = vld [vmem:[%s2 + $0x18] sm:$0xff]
    %v115 = vld [vmem:[%s2 + $0x20] sm:$0xff]
    %v116 = vld [vmem:[%s2 + $0x28] sm:$0xff]
    %v117 = vld [vmem:[%s2 + $0x30] sm:$0xff]
    %v118 = vld [vmem:[%s2 + $0x38] sm:$0xff]
    %v119 = vld [vmem:[%s2 + $0x40] sm:$0xff]
    %v120 = vld [vmem:[%s2 + $0x48] sm:$0xff]
    %v121 = vld [vmem:[%s2 + $0x50] sm:$0xff]
    %v122 = vld [vmem:[%s2 + $0x58] sm:$0xff]
    %v123 = vld [vmem:[%s2 + $0x60] sm:$0xff]
    %v124 = vld [vmem:[%s2 + $0x68] sm:$0xff]
    %v125 = vld [vmem:[%s2 + $0x70] sm:$0xff]
    %v126 = vld [vmem:[%s2 + $0x78] sm:$0xff]
    %v127 = vld [vmem:[%s2 + $0x80] sm:$0xff]
    %v128 = vld [vmem:[%s2 + $0x88] sm:$0xff]
    %v129 = vld [vmem:[%s2 + $0x90] sm:$0xff]
    %v130 = vld [vmem:[%s2 + $0x98] sm:$0xff]
    %v131 = vld [vmem:[%s2 + $0xa0] sm:$0xff]
    %v132 = vld [vmem:[%s2 + $0xa8] sm:$0xff]
    %v133 = vld [vmem:[%s2 + $0xb0] sm:$0xff]
    %v134 = vld [vmem:[%s2 + $0xb8] sm:$0xff]
    %v135 = vld [vmem:[%s2 + $0xc0] sm:$0xff]
    %v136 = vld [vmem:[%s2 + $0xc8] sm:$0xff]
    %v137 = vld [vmem:[%s2 + $0xd0] sm:$0xff]
    %v138 = vld [vmem:[%s2 + $0xd8] sm:$0xff]
    %v139 = vld [vmem:[%s2 + $0xe0] sm:$0xff]
    %v140 = vld [vmem:[%s2 + $0xe8] sm:$0xff]
    %v141 = vld [vmem:[%s2 + $0xf0] sm:$0xff]
    %v142 = vld [vmem:[%s2 + $0xf8] sm:$0xff]
    %v143 = vld [vmem:[%s2 + $0x100] sm:$0xff]
    %v144 = vld [vmem:[%s2 + $0x108] sm:$0xff]
    %v145 = vld [vmem:[%s2 + $0x110] sm:$0xff]
    %v146 = vld [vmem:[%s2 + $0x118] sm:$0xff]
    %v147 = vld [vmem:[%s2 + $0x120] sm:$0xff]
    %v148 = vld [vmem:[%s2 + $0x128] sm:$0xff]
    %v149 = vld [vmem:[%s2 + $0x130] sm:$0xff]
    %v150 = vld [vmem:[%s2 + $0x138] sm:$0xff]
    %v151 = vld [vmem:[%s2 + $0x140] sm:$0xff]
    %v152 = vld [vmem:[%s2 + $0x148] sm:$0xff]
    %v153 = vld [vmem:[%s2 + $0x150] sm:$0xff]
    %v154 = vld [vmem:[%s2 + $0x158] sm:$0xff]
    %v155 = vld [vmem:[%s2 + $0x160] sm:$0xff]
    %v156 = vld [vmem:[%s2 + $0x168] sm:$0xff]
    %v157 = vld [vmem:[%s2 + $0x170] sm:$0xff]
    %v158 = vld [vmem:[%s2 + $0x178] sm:$0xff]
    %v159 = vld [vmem:[%s2 + $0x180] sm:$0xff]
    %v160 = vld [vmem:[%s2 + $0x188] sm:$0xff]
    %v161 = vld [vmem:[%s2 + $0x190] sm:$0xff]
    %v162 = vld [vmem:[%s2 + $0x198] sm:$0xff]
    %v163 = vld [vmem:[%s2 + $0x1a0] sm:$0xff]
    %v164 = vld [vmem:[%s2 + $0x1a8] sm:$0xff]
    %v165 = vld [vmem:[%s2 + $0x1b0] sm:$0xff]
    %v166 = vld [vmem:[%s2 + $0x1b8] sm:$0xff]
    %v167 = vld [vmem:[%s2 + $0x1c0] sm:$0xff]
    %v168 = vld [vmem:[%s2 + $0x1c8] sm:$0xff]
    %v169 = vld [vmem:[%s2 + $0x1d0] sm:$0xff]
    %v170 = vld [vmem:[%s2 + $0x1d8] sm:$0xff]
    %v171 = vld [vmem:[%s2 + $0x1e0] sm:$0xff]
    %v172 = vld [vmem:[%s2 + $0x1e8] sm:$0xff]
    %v173 = vld [vmem:[%s2 + $0x1f0] sm:$0xff]
    %v174 = vld [vmem:[%s2 + $0x1f8] sm:$0xff]
    %v175 = vld [vmem:[%s0] sm:$0xff]
    %s176 = scalar_lea.vmem %s0, 8
    %v177 = vld [vmem:[%s176] sm:$0xff]
    %v179 = vcombine.high %v175, %v175
    %v182 = vcombine.high %v177, %v177
    %184 = vrot.lane.b32.xlu0 %v182, 17
    %v185 = vpop.permute.xlu0 %184
    %187 = vrot.lane.b32.xlu0 %v175, 17
    %v188 = vpop.permute.xlu0 %187
    %189 = vrot.lane.b32.xlu0 %v179, 17
    %v190 = vpop.permute.xlu0 %189
    %191 = vrot.lane.b32.xlu0 %v177, 17
    %v192 = vpop.permute.xlu0 %191
    %vm193 = vcmask 138240
    %v194 = vsel %vm193, %v188, %v190
    %v195 = vsel %vm193, %v190, %v192
    %v196 = vsel %vm193, %v192, %v185
    %v201 = vsel %vm193, %v185, %v188
    %v202 = vlaneseq
    %v203 = vshrl.u32 %v202, 7
    %v204 = vsub.s32 0, %v203
    %v205 = vrot.slane %v101, %v204
    %v206 = vlaneseq
    %v207 = vshrl.u32 %v206, 7
    %v208 = vsub.s32 0, %v207
    %v209 = vrot.slane %v102, %v208
    %v210 = vmul.f32 %v201, %v205
    %v211 = vmul.f32 %v194, %v209
    %v212 = vmul.f32 %v195, %v205
    %v213 = vmul.f32 %v196, %v209
    %214 = vrot.lane.b32.xlu0 %v182, 16
    %v215 = vpop.permute.xlu0 %214
    %217 = vrot.lane.b32.xlu0 %v175, 16
    %v218 = vpop.permute.xlu0 %217
    %219 = vrot.lane.b32.xlu0 %v179, 16
    %v220 = vpop.permute.xlu0 %219
    %221 = vrot.lane.b32.xlu0 %v177, 16
    %v222 = vpop.permute.xlu0 %221
    %vm223 = vcmask 130048
    %v224 = vsel %vm223, %v218, %v220
    %v225 = vsel %vm223, %v220, %v222
    %v226 = vsel %vm223, %v222, %v215
    %v231 = vsel %vm223, %v215, %v218
    %v232 = vlaneseq
    %v233 = vshrl.u32 %v232, 7
    %v234 = vsub.s32 1, %v233
    %v235 = vrot.slane %v101, %v234
    %v236 = vlaneseq
    %v237 = vshrl.u32 %v236, 7
    %v238 = vsub.s32 1, %v237
    %v239 = vrot.slane %v102, %v238
    %v240 = vmul.f32 %v231, %v235
    %v241 = vmul.f32 %v224, %v239
    %v242 = vmul.f32 %v225, %v235
    %v243 = vmul.f32 %v226, %v239
    %244 = vrot.lane.b32.xlu0 %v182, 15
    %v245 = vpop.permute.xlu0 %244
    %247 = vrot.lane.b32.xlu0 %v175, 15
    %v248 = vpop.permute.xlu0 %247
    %249 = vrot.lane.b32.xlu0 %v179, 15
    %v250 = vpop.permute.xlu0 %249
    %251 = vrot.lane.b32.xlu0 %v177, 15
    %v252 = vpop.permute.xlu0 %251
    %vm253 = vcmask 121856
    %v254 = vsel %vm253, %v248, %v250
    %v255 = vsel %vm253, %v250, %v252
    %v256 = vsel %vm253, %v252, %v245
    %v261 = vsel %vm253, %v245, %v248
    %v262 = vlaneseq
    %v263 = vshrl.u32 %v262, 7
    %v264 = vsub.s32 2, %v263
    %v265 = vrot.slane %v101, %v264
    %v266 = vlaneseq
    %v267 = vshrl.u32 %v266, 7
    %v268 = vsub.s32 2, %v267
    %v269 = vrot.slane %v102, %v268
    %v270 = vmul.f32 %v261, %v265
    %v271 = vmul.f32 %v254, %v269
    %v272 = vmul.f32 %v255, %v265
    %v273 = vmul.f32 %v256, %v269
    %274 = vrot.lane.b32.xlu0 %v182, 1
    %v275 = vpop.permute.xlu0 %274
    %277 = vrot.lane.b32.xlu0 %v175, 1
    %v278 = vpop.permute.xlu0 %277
    %279 = vrot.lane.b32.xlu0 %v179, 1
    %v280 = vpop.permute.xlu0 %279
    %281 = vrot.lane.b32.xlu0 %v177, 1
    %v282 = vpop.permute.xlu0 %281
    %vm283 = vcmask 7168
    %v284 = vsel %vm283, %v278, %v280
    %v285 = vsel %vm283, %v280, %v282
    %v286 = vsel %vm283, %v282, %v275
    %v291 = vsel %vm283, %v275, %v278
    %v292 = vlaneseq
    %v293 = vshrl.u32 %v292, 7
    %v294 = vsub.s32 3, %v293
    %v295 = vrot.slane %v101, %v294
    %v296 = vlaneseq
    %v297 = vshrl.u32 %v296, 7
    %v298 = vsub.s32 3, %v297
    %v299 = vrot.slane %v102, %v298
    %v300 = vmul.f32 %v291, %v295
    %v301 = vmul.f32 %v284, %v299
    %v302 = vmul.f32 %v285, %v295
    %v303 = vmul.f32 %v286, %v299
    %304 = vrot.lane.b32.xlu0 %v175, 127
    %v305 = vpop.permute.xlu0 %304
    %306 = vrot.lane.b32.xlu0 %v179, 127
    %v307 = vpop.permute.xlu0 %306
    %308 = vrot.lane.b32.xlu0 %v177, 127
    %v309 = vpop.permute.xlu0 %308
    %310 = vrot.lane.b32.xlu0 %v182, 127
    %v311 = vpop.permute.xlu0 %310
    %vm312 = vcmask 1039360
    %v313 = vsel %vm312, %v305, %v307
    %v314 = vsel %vm312, %v307, %v309
    %v315 = vsel %vm312, %v309, %v311
    %v321 = vsel %vm312, %v311, %v305
    %v322 = vlaneseq
    %v323 = vshrl.u32 %v322, 7
    %v324 = vsub.s32 5, %v323
    %v325 = vrot.slane %v101, %v324
    %v326 = vlaneseq
    %v327 = vshrl.u32 %v326, 7
    %v328 = vsub.s32 5, %v327
    %v329 = vrot.slane %v102, %v328
    %v330 = vmul.f32 %v313, %v325
    %v331 = vmul.f32 %v314, %v329
    %v332 = vmul.f32 %v315, %v325
    %v333 = vmul.f32 %v321, %v329
    %334 = vrot.lane.b32.xlu0 %v175, 113
    %v335 = vpop.permute.xlu0 %334
    %336 = vrot.lane.b32.xlu0 %v179, 113
    %v337 = vpop.permute.xlu0 %336
    %338 = vrot.lane.b32.xlu0 %v177, 113
    %v339 = vpop.permute.xlu0 %338
    %340 = vrot.lane.b32.xlu0 %v182, 113
    %v341 = vpop.permute.xlu0 %340
    %vm342 = vcmask 924672
    %v343 = vsel %vm342, %v335, %v337
    %v344 = vsel %vm342, %v337, %v339
    %v345 = vsel %vm342, %v339, %v341
    %v351 = vsel %vm342, %v341, %v335
    %v352 = vlaneseq
    %v353 = vshrl.u32 %v352, 7
    %v354 = vsub.s32 6, %v353
    %v355 = vrot.slane %v101, %v354
    %v356 = vlaneseq
    %v357 = vshrl.u32 %v356, 7
    %v358 = vsub.s32 6, %v357
    %v359 = vrot.slane %v102, %v358
    %v360 = vmul.f32 %v343, %v355
    %v361 = vmul.f32 %v344, %v359
    %v362 = vmul.f32 %v345, %v355
    %v363 = vmul.f32 %v351, %v359
    %364 = vrot.lane.b32.xlu0 %v175, 112
    %v365 = vpop.permute.xlu0 %364
    %366 = vrot.lane.b32.xlu0 %v179, 112
    %v367 = vpop.permute.xlu0 %366
    %368 = vrot.lane.b32.xlu0 %v177, 112
    %v369 = vpop.permute.xlu0 %368
    %370 = vrot.lane.b32.xlu0 %v182, 112
    %v371 = vpop.permute.xlu0 %370
    %vm372 = vcmask 916480
    %v373 = vsel %vm372, %v365, %v367
    %v374 = vsel %vm372, %v367, %v369
    %v375 = vsel %vm372, %v369, %v371
    %v381 = vsel %vm372, %v371, %v365
    %v382 = vlaneseq
    %v383 = vshrl.u32 %v382, 7
    %v384 = vsub.s32 7, %v383
    %v385 = vrot.slane %v101, %v384
    %v386 = vlaneseq
    %v387 = vshrl.u32 %v386, 7
    %v388 = vsub.s32 7, %v387
    %v389 = vrot.slane %v102, %v388
    %v390 = vmul.f32 %v373, %v385
    %v391 = vmul.f32 %v374, %v389
    %v392 = vmul.f32 %v375, %v385
    %v393 = vmul.f32 %v381, %v389
    %394 = vrot.lane.b32.xlu0 %v175, 111
    %v395 = vpop.permute.xlu0 %394
    %396 = vrot.lane.b32.xlu0 %v179, 111
    %v397 = vpop.permute.xlu0 %396
    %398 = vrot.lane.b32.xlu0 %v177, 111
    %v399 = vpop.permute.xlu0 %398
    %400 = vrot.lane.b32.xlu0 %v182, 111
    %v401 = vpop.permute.xlu0 %400
    %vm402 = vcmask 908288
    %v403 = vsel %vm402, %v395, %v397
    %v404 = vsel %vm402, %v397, %v399
    %v405 = vsel %vm402, %v399, %v401
    %v411 = vsel %vm402, %v401, %v395
    %v412 = vlaneseq
    %v413 = vshrl.u32 %v412, 7
    %v414 = vsub.s32 0, %v413
    %v415 = vrot.slane %v103, %v414
    %v416 = vlaneseq
    %v417 = vshrl.u32 %v416, 7
    %v418 = vsub.s32 0, %v417
    %v419 = vrot.slane %v104, %v418
    %v420 = vmul.f32 %v403, %v415
    %v421 = vmul.f32 %v404, %v419
    %v422 = vmul.f32 %v405, %v415
    %v423 = vmul.f32 %v411, %v419
    %v428 = vrot.slane %v240, 4
    %v429 = vrot.slane %v241, 4
    %v430 = vrot.slane %v242, 4
    %v431 = vrot.slane %v243, 4
    %v440 = vrot.slane %v300, 4
    %v441 = vrot.slane %v301, 4
    %v442 = vrot.slane %v302, 4
    %v443 = vrot.slane %v303, 4
    %v452 = vrot.slane %v330, 4
    %v453 = vrot.slane %v331, 4
    %v454 = vrot.slane %v332, 4
    %v455 = vrot.slane %v333, 4
    %v464 = vrot.slane %v390, 4
    %v465 = vrot.slane %v391, 4
    %v466 = vrot.slane %v392, 4
    %v467 = vrot.slane %v393, 4
    %vm472 = vcmask 1043456
    %v473 = vsel %vm472, %v210, %v428
    %v474 = vsel %vm472, %v211, %v429
    %v475 = vsel %vm472, %v212, %v430
    %v476 = vsel %vm472, %v213, %v431
    %v477 = vsel %vm472, %v270, %v440
    %v478 = vsel %vm472, %v271, %v441
    %v479 = vsel %vm472, %v272, %v442
    %v480 = vsel %vm472, %v273, %v443
    %v481 = vsel %vm472, %v175, %v452
    %v482 = vsel %vm472, %v179, %v453
    %v483 = vsel %vm472, %v177, %v454
    %v484 = vsel %vm472, %v182, %v455
    %v485 = vsel %vm472, %v360, %v464
    %v486 = vsel %vm472, %v361, %v465
    %v487 = vsel %vm472, %v362, %v466
    %v488 = vsel %vm472, %v363, %v467
    %490 = vset.pattern.permute.xlu0 0
    %491 = vperm.xlu0 %490, %v107
    %v492 = vpop.permute.xlu0 %491
    %vm494 = vcmask 293888
    %v496 = vsel %vm494, %v105, 0
    %v499 = vsel %vm472, %v420, 0
    %v502 = vsel %vm472, %v421, 0
    %v505 = vsel %vm472, %v422, 0
    %v508 = vsel %vm472, %v423, 0
    %510 = vmatprep.subr.mxu0 %v474
    %511 = vmatpush1.msra.mxu0 %v473
    %512 = vmatprep.subr.mxu0 %v478
    %513 = vmatpush1.msra.mxu0 %v477
    %514 = vmatprep.subr.mxu0 %v482
    %515 = vmatpush1.msra.mxu0 %v481
    %516 = vmatprep.subr.mxu0 %v486
    %517 = vmatpush1.msra.mxu0 %v485
    %518 = vmatprep.subr.mxu0 %v502
    %519 = vmatpush1.msra.mxu0 %v499
    %520 = vmatprep.subr.mxu0 0.0
    %521 = vmatpush1.msra.mxu0 0.0
    %522 = vmatprep.subr.mxu0 0.0
    %523 = vmatpush1.msra.mxu0 0.0
    %524 = vmatprep.subr.mxu0 0.0
    %525 = vmatpush1.msra.mxu0 0.0
    %526 = vmatprep.subr.mxu0 0.0
    %527 = vmatpush1.msra.mxu0 0.0
    %528 = vmatprep.subr.mxu0 0.0
    %529 = vmatpush1.msra.mxu0 0.0
    %530 = vmatprep.subr.mxu0 0.0
    %531 = vmatpush1.msra.mxu0 0.0
    %532 = vmatprep.subr.mxu0 0.0
    %533 = vmatpush1.msra.mxu0 0.0
    %534 = vmatprep.subr.mxu0 0.0
    %535 = vmatpush1.msra.mxu0 0.0
    %536 = vmatprep.subr.mxu0 0.0
    %537 = vmatpush1.msra.mxu0 0.0
    %538 = vmatprep.subr.mxu0 0.0
    %539 = vmatpush1.msra.mxu0 0.0
    %540 = vmatprep.subr.mxu0 0.0
    %541 = vmatpush1.msra.mxu0 0.0
    %542 = vmatprep.subr.mxu0 0.0
    %543 = vmatpush1.msra.mxu0 0.0
    %544 = vmatprep.subr.mxu0 0.0
    %545 = vmatpush1.msra.mxu0 0.0
    %546 = vmatprep.subr.mxu0 0.0
    %547 = vmatpush1.msra.mxu0 0.0
    %548 = vmatprep.subr.mxu0 0.0
    %549 = vmatpush1.msra.mxu0 0.0
    %550 = vmatprep.subr.mxu0 0.0
    %551 = vmatpush1.msra.mxu0 0.0
    %552 = vmatprep.subr.mxu0 0.0
    %553 = vmatpush1.msra.mxu0 0.0
    %554 = vmatprep.subr.mxu0 0.0
    %555 = vmatpush1.msra.mxu0 0.0
    %556 = vmatprep.subr.mxu0 0.0
    %557 = vmatpush1.msra.mxu0 0.0
    %558 = vmatprep.subr.mxu0 0.0
    %559 = vmatpush1.msra.mxu0 0.0
    %560 = vmatprep.subr.mxu0 0.0
    %561 = vmatpush1.msra.mxu0 0.0
    %562 = vmatprep.subr.mxu0 0.0
    %563 = vmatpush1.msra.mxu0 0.0
    %564 = vmatprep.subr.mxu0 0.0
    %565 = vmatpush1.msra.mxu0 0.0
    %566 = vmatprep.subr.mxu0 0.0
    %567 = vmatpush1.msra.mxu0 0.0
    %568 = vmatprep.subr.mxu0 0.0
    %569 = vmatpush1.msra.mxu0 0.0
    %570 = vmatprep.subr.mxu0 0.0
    %571 = vmatpush1.msra.mxu0 0.0
    %572 = vmatprep.subr.mxu0 0.0
    %573 = vmatpush1.msra.mxu0 0.0
    %574 = vmatprep.mubr.f32.mxu0 0.0
    %575 = vmatmul.mubr.f32.gmra.mrb[0].mxu0 %v496
    %v576 = vpop.f32.mrb[0].mxu0
    %v577 = vadd.f32 %v492, %v576
    %v578 = vpop.f32.mrb[0].mxu0
    %v579 = vadd.f32 %v492, %v578
    %580 = vdwg.mxu0
    %581 = vmatprep.subr.mxu0 %v476
    %582 = vmatpush1.msra.mxu0 %v475
    %583 = vmatprep.subr.mxu0 %v480
    %584 = vmatpush1.msra.mxu0 %v479
    %585 = vmatprep.subr.mxu0 %v484
    %586 = vmatpush1.msra.mxu0 %v483
    %587 = vmatprep.subr.mxu0 %v488
    %588 = vmatpush1.msra.mxu0 %v487
    %589 = vmatprep.subr.mxu0 %v508
    %590 = vmatpush1.msra.mxu0 %v505
    %591 = vmatprep.subr.mxu0 0.0
    %592 = vmatpush1.msra.mxu0 0.0
    %593 = vmatprep.subr.mxu0 0.0
    %594 = vmatpush1.msra.mxu0 0.0
    %595 = vmatprep.subr.mxu0 0.0
    %596 = vmatpush1.msra.mxu0 0.0
    %597 = vmatprep.subr.mxu0 0.0
    %598 = vmatpush1.msra.mxu0 0.0
    %599 = vmatprep.subr.mxu0 0.0
    %600 = vmatpush1.msra.mxu0 0.0
    %601 = vmatprep.subr.mxu0 0.0
    %602 = vmatpush1.msra.mxu0 0.0
    %603 = vmatprep.subr.mxu0 0.0
    %604 = vmatpush1.msra.mxu0 0.0
    %605 = vmatprep.subr.mxu0 0.0
    %606 = vmatpush1.msra.mxu0 0.0
    %607 = vmatprep.subr.mxu0 0.0
    %608 = vmatpush1.msra.mxu0 0.0
    %609 = vmatprep.subr.mxu0 0.0
    %610 = vmatpush1.msra.mxu0 0.0
    %611 = vmatprep.subr.mxu0 0.0
    %612 = vmatpush1.msra.mxu0 0.0
    %613 = vmatprep.subr.mxu0 0.0
    %614 = vmatpush1.msra.mxu0 0.0
    %615 = vmatprep.subr.mxu0 0.0
    %616 = vmatpush1.msra.mxu0 0.0
    %617 = vmatprep.subr.mxu0 0.0
    %618 = vmatpush1.msra.mxu0 0.0
    %619 = vmatprep.subr.mxu0 0.0
    %620 = vmatpush1.msra.mxu0 0.0
    %621 = vmatprep.subr.mxu0 0.0
    %622 = vmatpush1.msra.mxu0 0.0
    %623 = vmatprep.subr.mxu0 0.0
    %624 = vmatpush1.msra.mxu0 0.0
    %625 = vmatprep.subr.mxu0 0.0
    %626 = vmatpush1.msra.mxu0 0.0
    %627 = vmatprep.subr.mxu0 0.0
    %628 = vmatpush1.msra.mxu0 0.0
    %629 = vmatprep.subr.mxu0 0.0
    %630 = vmatpush1.msra.mxu0 0.0
    %631 = vmatprep.subr.mxu0 0.0
    %632 = vmatpush1.msra.mxu0 0.0
    %633 = vmatprep.subr.mxu0 0.0
    %634 = vmatpush1.msra.mxu0 0.0
    %635 = vmatprep.subr.mxu0 0.0
    %636 = vmatpush1.msra.mxu0 0.0
    %637 = vmatprep.subr.mxu0 0.0
    %638 = vmatpush1.msra.mxu0 0.0
    %639 = vmatprep.subr.mxu0 0.0
    %640 = vmatpush1.msra.mxu0 0.0
    %641 = vmatprep.subr.mxu0 0.0
    %642 = vmatpush1.msra.mxu0 0.0
    %643 = vmatprep.subr.mxu0 0.0
    %644 = vmatpush1.msra.mxu0 0.0
    %645 = vmatprep.mubr.f32.mxu0 0.0
    %646 = vmatmul.mubr.f32.gmra.mrb[0].mxu0 %v496
    %v647 = vpop.f32.mrb[0].mxu0
    %v648 = vadd.f32 %v492, %v647
    %v649 = vpop.f32.mrb[0].mxu0
    %v650 = vadd.f32 %v492, %v649
    %651 = vdwg.mxu0
    %v652 = vld [vmem:[%s11] sm:$0xf]
    %v653 = vld [vmem:[%s12] sm:$0xf]
    %v654 = vsel %vm472, %v577, 0.0
    %v655 = vsel %vm472, %v579, 0.0
    %v656 = vadd.f32 %v654, %v655
    %v657 = vsel %vm472, %v648, 0.0
    %v658 = vadd.f32 %v656, %v657
    %v659 = vsel %vm472, %v650, 0.0
    %v660 = vadd.f32 %v658, %v659
    %661 = vadd.xlane.f32.xlu0 %v660
    %v662 = vpop.xlane.xlu0 %661
    %v663 = vrcp.pop 512.0
    %v664 = vmul.f32 %v662, %v663
    %v665 = vsub.f32 %v577, %v664
    %v666 = vsub.f32 %v579, %v664
    %v667 = vsub.f32 %v648, %v664
    %v668 = vsub.f32 %v650, %v664
    %v669 = vmul.f32 %v665, %v665
    %v670 = vmul.f32 %v666, %v666
    %v671 = vmul.f32 %v667, %v667
    %v672 = vmul.f32 %v668, %v668
    %v673 = vsel %vm472, %v669, 0.0
    %v674 = vsel %vm472, %v670, 0.0
    %v675 = vadd.f32 %v673, %v674
    %v676 = vsel %vm472, %v671, 0.0
    %v677 = vadd.f32 %v675, %v676
    %v678 = vsel %vm472, %v672, 0.0
    %v679 = vadd.f32 %v677, %v678
    %680 = vadd.xlane.f32.xlu0 %v679
    %v681 = vpop.xlane.xlu0 %680
    %v682 = vmul.f32 %v681, %v663
    %v683 = vadd.f32 %v682, 1e-05
    %v684 = vrsqrt.pop %v683
    %v685 = vmul.f32 %v665, %v684
    %v686 = vmul.f32 %v666, %v684
    %v687 = vmul.f32 %v667, %v684
    %v688 = vmul.f32 %v668, %v684
    %690 = vset.pattern.permute.xlu0 0
    %691 = vperm.xlu0 %690, %v652
    %v692 = vpop.permute.xlu0 %691
    %v694 = vmul.f32 %v685, %v692
    %v695 = vmul.f32 %v686, %v692
    %v696 = vmul.f32 %v687, %v692
    %v697 = vmul.f32 %v688, %v692
    %699 = vset.pattern.permute.xlu0 0
    %700 = vperm.xlu0 %699, %v653
    %v701 = vpop.permute.xlu0 %700
    %v703 = vadd.f32 %v694, %v701
    %v704 = vadd.f32 %v695, %v701
    %v705 = vadd.f32 %v696, %v701
    %v706 = vadd.f32 %v697, %v701
    %v707 = vmax.f32 %v703, 0.0
    %v708 = vmax.f32 %v704, 0.0
    %v709 = vmax.f32 %v705, 0.0
    %v710 = vmax.f32 %v706, 0.0
    %v711 = vld [vmem:[%s13] sm:$0xf]
    %v712 = vld [vmem:[%s14] sm:$0xf]
    %714 = vset.pattern.permute.xlu0 0
    %715 = vperm.xlu0 %714, %v711
    %v716 = vpop.permute.xlu0 %715
    %v718 = vmul.f32 %v685, %v716
    %v719 = vmul.f32 %v686, %v716
    %v720 = vmul.f32 %v687, %v716
    %v721 = vmul.f32 %v688, %v716
    %723 = vset.pattern.permute.xlu0 0
    %724 = vperm.xlu0 %723, %v712
    %v725 = vpop.permute.xlu0 %724
    %v727 = vadd.f32 %v718, %v725
    %v728 = vadd.f32 %v719, %v725
    %v729 = vadd.f32 %v720, %v725
    %v730 = vadd.f32 %v721, %v725
    %v731 = vmax.f32 %v727, 0.0
    %v732 = vmax.f32 %v728, 0.0
    %v733 = vmax.f32 %v729, 0.0
    %v734 = vmax.f32 %v730, 0.0
    %v737 = vrot.slane %v709, 4
    %v738 = vrot.slane %v710, 4
    %v741 = vsel %vm472, %v707, %v737
    %v742 = vsel %vm472, %v708, %v738
    %743 = vmatprep.subr.mxu0 %v112
    %744 = vmatpush1.msra.mxu0 %v111
    %745 = vmatprep.subr.mxu0 %v114
    %746 = vmatpush1.msra.mxu0 %v113
    %747 = vmatprep.subr.mxu0 %v116
    %748 = vmatpush1.msra.mxu0 %v115
    %749 = vmatprep.subr.mxu0 %v118
    %750 = vmatpush1.msra.mxu0 %v117
    %751 = vmatprep.subr.mxu0 %v120
    %752 = vmatpush1.msra.mxu0 %v119
    %753 = vmatprep.subr.mxu0 %v122
    %754 = vmatpush1.msra.mxu0 %v121
    %755 = vmatprep.subr.mxu0 %v124
    %756 = vmatpush1.msra.mxu0 %v123
    %757 = vmatprep.subr.mxu0 %v126
    %758 = vmatpush1.msra.mxu0 %v125
    %759 = vmatprep.subr.mxu0 %v128
    %760 = vmatpush1.msra.mxu0 %v127
    %761 = vmatprep.subr.mxu0 %v130
    %762 = vmatpush1.msra.mxu0 %v129
    %763 = vmatprep.subr.mxu0 %v132
    %764 = vmatpush1.msra.mxu0 %v131
    %765 = vmatprep.subr.mxu0 %v134
    %766 = vmatpush1.msra.mxu0 %v133
    %767 = vmatprep.subr.mxu0 %v136
    %768 = vmatpush1.msra.mxu0 %v135
    %769 = vmatprep.subr.mxu0 %v138
    %770 = vmatpush1.msra.mxu0 %v137
    %771 = vmatprep.subr.mxu0 %v140
    %772 = vmatpush1.msra.mxu0 %v139
    %773 = vmatprep.subr.mxu0 %v142
    %774 = vmatpush1.msra.mxu0 %v141
    %775 = vmatprep.subr.mxu0 %v144
    %776 = vmatpush1.msra.mxu0 %v143
    %777 = vmatprep.subr.mxu0 %v146
    %778 = vmatpush1.msra.mxu0 %v145
    %779 = vmatprep.subr.mxu0 %v148
    %780 = vmatpush1.msra.mxu0 %v147
    %781 = vmatprep.subr.mxu0 %v150
    %782 = vmatpush1.msra.mxu0 %v149
    %783 = vmatprep.subr.mxu0 %v152
    %784 = vmatpush1.msra.mxu0 %v151
    %785 = vmatprep.subr.mxu0 %v154
    %786 = vmatpush1.msra.mxu0 %v153
    %787 = vmatprep.subr.mxu0 %v156
    %788 = vmatpush1.msra.mxu0 %v155
    %789 = vmatprep.subr.mxu0 %v158
    %790 = vmatpush1.msra.mxu0 %v157
    %791 = vmatprep.subr.mxu0 %v160
    %792 = vmatpush1.msra.mxu0 %v159
    %793 = vmatprep.subr.mxu0 %v162
    %794 = vmatpush1.msra.mxu0 %v161
    %795 = vmatprep.subr.mxu0 %v164
    %796 = vmatpush1.msra.mxu0 %v163
    %797 = vmatprep.subr.mxu0 %v166
    %798 = vmatpush1.msra.mxu0 %v165
    %799 = vmatprep.subr.mxu0 %v168
    %800 = vmatpush1.msra.mxu0 %v167
    %801 = vmatprep.subr.mxu0 %v170
    %802 = vmatpush1.msra.mxu0 %v169
    %803 = vmatprep.subr.mxu0 %v172
    %804 = vmatpush1.msra.mxu0 %v171
    %805 = vmatprep.subr.mxu0 %v174
    %806 = vmatpush1.msra.mxu0 %v173
    %807 = vmatprep.mubr.f32.mxu0 %v742
    %808 = vmatmul.mubr.f32.gmra.mrb[0].mxu0 %v741
    %v809 = vpop.f32.mrb[0].mxu0
    %v810 = vadd.f32 0.0, %v809
    %v811 = vpop.f32.mrb[0].mxu0
    %v812 = vadd.f32 0.0, %v811
    %813 = vdwg.mxu0
    %v815 = vrot.slane %v810, 1
    %816 = vrot.lane.b32.xlu0 %v815, 64
    %v817 = vpop.permute.xlu0 %816
    %v819 = vrot.slane %v810, 2
    %v821 = vrot.slane %v810, 3
    %822 = vrot.lane.b32.xlu0 %v821, 64
    %v823 = vpop.permute.xlu0 %822
    %vm825 = vcmask 523264
    %v826 = vsel %vm825, %v810, %v817
    %v827 = vsel %vm825, %v819, %v823
    %828 = vrot.lane.b32.xlu0 %v810, 64
    %v829 = vpop.permute.xlu0 %828
    %832 = vrot.lane.b32.xlu0 %v819, 64
    %v833 = vpop.permute.xlu0 %832
    %v836 = vsel %vm825, %v829, %v815
    %v837 = vsel %vm825, %v833, %v821
    %v839 = vrot.slane %v812, 1
    %840 = vrot.lane.b32.xlu0 %v839, 64
    %v841 = vpop.permute.xlu0 %840
    %v843 = vrot.slane %v812, 2
    %v845 = vrot.slane %v812, 3
    %846 = vrot.lane.b32.xlu0 %v845, 64
    %v847 = vpop.permute.xlu0 %846
    %v849 = vsel %vm825, %v812, %v841
    %v850 = vsel %vm825, %v843, %v847
    %851 = vrot.lane.b32.xlu0 %v812, 64
    %v852 = vpop.permute.xlu0 %851
    %855 = vrot.lane.b32.xlu0 %v843, 64
    %v856 = vpop.permute.xlu0 %855
    %v859 = vsel %vm825, %v852, %v839
    %v860 = vsel %vm825, %v856, %v845
    %v863 = vrot.slane %v836, 7
    %v864 = vrot.slane %v837, 7
    %v869 = vrot.slane %v849, 6
    %v870 = vrot.slane %v850, 6
    %v875 = vrot.slane %v859, 5
    %v876 = vrot.slane %v860, 5
    %vm879 = vcmask 1040384
    %v880 = vsel %vm879, %v826, %v863
    %v881 = vsel %vm879, %v827, %v864
    %vm882 = vcmask 1041408
    %v883 = vsel %vm882, %v880, %v869
    %v884 = vsel %vm882, %v881, %v870
    %vm885 = vcmask 1042432
    %v886 = vsel %vm885, %v883, %v875
    %v887 = vsel %vm885, %v884, %v876
    %888 = vmatprep.subr.mxu0 %v887
    %889 = vmatpush1.xpose.msra.mxu0 %v886
    %890 = vmatprep.subr.mxu0 0.0
    %891 = vmatpush1.xpose.msra.mxu0 0.0
    %892 = vmatprep.subr.mxu0 0.0
    %893 = vmatpush1.xpose.msra.mxu0 0.0
    %894 = vmatprep.subr.mxu0 0.0
    %895 = vmatpush1.xpose.msra.mxu0 0.0
    %896 = vmatprep.subr.mxu0 0.0
    %897 = vmatpush1.xpose.msra.mxu0 0.0
    %898 = vmatprep.subr.mxu0 0.0
    %899 = vmatpush1.xpose.msra.mxu0 0.0
    %900 = vmatprep.subr.mxu0 0.0
    %901 = vmatpush1.xpose.msra.mxu0 0.0
    %902 = vmatprep.subr.mxu0 0.0
    %903 = vmatpush1.xpose.msra.mxu0 0.0
    %904 = vmatprep.subr.mxu0 0.0
    %905 = vmatpush1.xpose.msra.mxu0 0.0
    %906 = vmatprep.subr.mxu0 0.0
    %907 = vmatpush1.xpose.msra.mxu0 0.0
    %908 = vmatprep.subr.mxu0 0.0
    %909 = vmatpush1.xpose.msra.mxu0 0.0
    %910 = vmatprep.subr.mxu0 0.0
    %911 = vmatpush1.xpose.msra.mxu0 0.0
    %912 = vmatprep.subr.mxu0 0.0
    %913 = vmatpush1.xpose.msra.mxu0 0.0
    %914 = vmatprep.subr.mxu0 0.0
    %915 = vmatpush1.xpose.msra.mxu0 0.0
    %916 = vmatprep.subr.mxu0 0.0
    %917 = vmatpush1.xpose.msra.mxu0 0.0
    %918 = vmatprep.subr.mxu0 0.0
    %919 = vmatpush1.xpose.msra.mxu0 0.0
    %920 = vmatprep.subr.mxu0 0.0
    %921 = vmatpush1.xpose.msra.mxu0 0.0
    %922 = vmatprep.subr.mxu0 0.0
    %923 = vmatpush1.xpose.msra.mxu0 0.0
    %924 = vmatprep.subr.mxu0 0.0
    %925 = vmatpush1.xpose.msra.mxu0 0.0
    %926 = vmatprep.subr.mxu0 0.0
    %927 = vmatpush1.xpose.msra.mxu0 0.0
    %928 = vmatprep.subr.mxu0 0.0
    %929 = vmatpush1.xpose.msra.mxu0 0.0
    %930 = vmatprep.subr.mxu0 0.0
    %931 = vmatpush1.xpose.msra.mxu0 0.0
    %932 = vmatprep.subr.mxu0 0.0
    %933 = vmatpush1.xpose.msra.mxu0 0.0
    %934 = vmatprep.subr.mxu0 0.0
    %935 = vmatpush1.xpose.msra.mxu0 0.0
    %936 = vmatprep.subr.mxu0 0.0
    %937 = vmatpush1.xpose.msra.mxu0 0.0
    %938 = vmatprep.subr.mxu0 0.0
    %939 = vmatpush1.xpose.msra.mxu0 0.0
    %940 = vmatprep.subr.mxu0 0.0
    %941 = vmatpush1.xpose.msra.mxu0 0.0
    %942 = vmatprep.subr.mxu0 0.0
    %943 = vmatpush1.xpose.msra.mxu0 0.0
    %944 = vmatprep.subr.mxu0 0.0
    %945 = vmatpush1.xpose.msra.mxu0 0.0
    %946 = vmatprep.subr.mxu0 0.0
    %947 = vmatpush1.xpose.msra.mxu0 0.0
    %948 = vmatprep.subr.mxu0 0.0
    %949 = vmatpush1.xpose.msra.mxu0 0.0
    %950 = vmatprep.subr.mxu0 0.0
    %951 = vmatpush1.xpose.msra.mxu0 0.0
    %952 = vmatprep.mubr.f32.mxu0 %v742
    %953 = vmatmul.mubr.f32.gmra.mrb[0].mxu0 %v741
    %v954 = vpop.f32.mrb[0].mxu0
    %v955 = vadd.f32 0.0, %v954
    %v956 = vpop.f32.mrb[0].mxu0
    %957 = vdwg.mxu0
    %vm958 = vcmask 31744
    %v960 = vsel %vm958, %v955, 0
    %v963 = vsel %vm472, %v741, 0
    %v966 = vsel %vm472, %v742, 0
    %968 = vmatprep.subr.mxu0 %v966
    %969 = vmatpush1.msra.mxu0 %v963
    %970 = vmatprep.subr.mxu0 0.0
    %971 = vmatpush1.msra.mxu0 0.0
    %972 = vmatprep.subr.mxu0 0.0
    %973 = vmatpush1.msra.mxu0 0.0
    %974 = vmatprep.subr.mxu0 0.0
    %975 = vmatpush1.msra.mxu0 0.0
    %976 = vmatprep.subr.mxu0 0.0
    %977 = vmatpush1.msra.mxu0 0.0
    %978 = vmatprep.subr.mxu0 0.0
    %979 = vmatpush1.msra.mxu0 0.0
    %980 = vmatprep.subr.mxu0 0.0
    %981 = vmatpush1.msra.mxu0 0.0
    %982 = vmatprep.subr.mxu0 0.0
    %983 = vmatpush1.msra.mxu0 0.0
    %984 = vmatprep.subr.mxu0 0.0
    %985 = vmatpush1.msra.mxu0 0.0
    %986 = vmatprep.subr.mxu0 0.0
    %987 = vmatpush1.msra.mxu0 0.0
    %988 = vmatprep.subr.mxu0 0.0
    %989 = vmatpush1.msra.mxu0 0.0
    %990 = vmatprep.subr.mxu0 0.0
    %991 = vmatpush1.msra.mxu0 0.0
    %992 = vmatprep.subr.mxu0 0.0
    %993 = vmatpush1.msra.mxu0 0.0
    %994 = vmatprep.subr.mxu0 0.0
    %995 = vmatpush1.msra.mxu0 0.0
    %996 = vmatprep.subr.mxu0 0.0
    %997 = vmatpush1.msra.mxu0 0.0
    %998 = vmatprep.subr.mxu0 0.0
    %999 = vmatpush1.msra.mxu0 0.0
    %1000 = vmatprep.subr.mxu0 0.0
    %1001 = vmatpush1.msra.mxu0 0.0
    %1002 = vmatprep.subr.mxu0 0.0
    %1003 = vmatpush1.msra.mxu0 0.0
    %1004 = vmatprep.subr.mxu0 0.0
    %1005 = vmatpush1.msra.mxu0 0.0
    %1006 = vmatprep.subr.mxu0 0.0
    %1007 = vmatpush1.msra.mxu0 0.0
    %1008 = vmatprep.subr.mxu0 0.0
    %1009 = vmatpush1.msra.mxu0 0.0
    %1010 = vmatprep.subr.mxu0 0.0
    %1011 = vmatpush1.msra.mxu0 0.0
    %1012 = vmatprep.subr.mxu0 0.0
    %1013 = vmatpush1.msra.mxu0 0.0
    %1014 = vmatprep.subr.mxu0 0.0
    %1015 = vmatpush1.msra.mxu0 0.0
    %1016 = vmatprep.subr.mxu0 0.0
    %1017 = vmatpush1.msra.mxu0 0.0
    %1018 = vmatprep.subr.mxu0 0.0
    %1019 = vmatpush1.msra.mxu0 0.0
    %1020 = vmatprep.subr.mxu0 0.0
    %1021 = vmatpush1.msra.mxu0 0.0
    %1022 = vmatprep.subr.mxu0 0.0
    %1023 = vmatpush1.msra.mxu0 0.0
    %1024 = vmatprep.subr.mxu0 0.0
    %1025 = vmatpush1.msra.mxu0 0.0
    %1026 = vmatprep.subr.mxu0 0.0
    %1027 = vmatpush1.msra.mxu0 0.0
    %1028 = vmatprep.subr.mxu0 0.0
    %1029 = vmatpush1.msra.mxu0 0.0
    %1030 = vmatprep.subr.mxu0 0.0
    %1031 = vmatpush1.msra.mxu0 0.0
    %1032 = vmatprep.mubr.f32.mxu0 0.0
    %1033 = vmatmul.mubr.f32.gmra.mrb[0].mxu0 %v960
    %v1034 = vpop.f32.mrb[0].mxu0
    %v1035 = vadd.f32 0.0, %v1034
    %v1036 = vpop.f32.mrb[0].mxu0
    %v1037 = vadd.f32 0.0, %v1036
    %1038 = vdwg.mxu0
    %v1039 = vadd.f32 %v741, %v1035
    %v1040 = vadd.f32 %v742, %v1037
    %v1043 = vrot.slane %v826, 4
    %v1044 = vrot.slane %v827, 4
    %v1047 = vrot.slane %v836, 3
    %v1048 = vrot.slane %v837, 3
    %v1051 = vrot.slane %v849, 2
    %v1052 = vrot.slane %v850, 2
    %v1055 = vrot.slane %v859, 1
    %v1056 = vrot.slane %v860, 1
    %v1059 = vsel %vm879, %v1043, %v1047
    %v1060 = vsel %vm879, %v1044, %v1048
    %v1061 = vsel %vm882, %v1059, %v1051
    %v1062 = vsel %vm882, %v1060, %v1052
    %v1063 = vsel %vm885, %v1061, %v1055
    %v1064 = vsel %vm885, %v1062, %v1056
    %v1065 = vrot.slane %v741, 4
    %v1066 = vrot.slane %v742, 4
    %1069 = vmatprep.subr.mxu0 %v1064
    %1070 = vmatpush1.xpose.msra.mxu0 %v1063
    %1071 = vmatprep.subr.mxu0 0.0
    %1072 = vmatpush1.xpose.msra.mxu0 0.0
    %1073 = vmatprep.subr.mxu0 0.0
    %1074 = vmatpush1.xpose.msra.mxu0 0.0
    %1075 = vmatprep.subr.mxu0 0.0
    %1076 = vmatpush1.xpose.msra.mxu0 0.0
    %1077 = vmatprep.subr.mxu0 0.0
    %1078 = vmatpush1.xpose.msra.mxu0 0.0
    %1079 = vmatprep.subr.mxu0 0.0
    %1080 = vmatpush1.xpose.msra.mxu0 0.0
    %1081 = vmatprep.subr.mxu0 0.0
    %1082 = vmatpush1.xpose.msra.mxu0 0.0
    %1083 = vmatprep.subr.mxu0 0.0
    %1084 = vmatpush1.xpose.msra.mxu0 0.0
    %1085 = vmatprep.subr.mxu0 0.0
    %1086 = vmatpush1.xpose.msra.mxu0 0.0
    %1087 = vmatprep.subr.mxu0 0.0
    %1088 = vmatpush1.xpose.msra.mxu0 0.0
    %1089 = vmatprep.subr.mxu0 0.0
    %1090 = vmatpush1.xpose.msra.mxu0 0.0
    %1091 = vmatprep.subr.mxu0 0.0
    %1092 = vmatpush1.xpose.msra.mxu0 0.0
    %1093 = vmatprep.subr.mxu0 0.0
    %1094 = vmatpush1.xpose.msra.mxu0 0.0
    %1095 = vmatprep.subr.mxu0 0.0
    %1096 = vmatpush1.xpose.msra.mxu0 0.0
    %1097 = vmatprep.subr.mxu0 0.0
    %1098 = vmatpush1.xpose.msra.mxu0 0.0
    %1099 = vmatprep.subr.mxu0 0.0
    %1100 = vmatpush1.xpose.msra.mxu0 0.0
    %1101 = vmatprep.subr.mxu0 0.0
    %1102 = vmatpush1.xpose.msra.mxu0 0.0
    %1103 = vmatprep.subr.mxu0 0.0
    %1104 = vmatpush1.xpose.msra.mxu0 0.0
    %1105 = vmatprep.subr.mxu0 0.0
    %1106 = vmatpush1.xpose.msra.mxu0 0.0
    %1107 = vmatprep.subr.mxu0 0.0
    %1108 = vmatpush1.xpose.msra.mxu0 0.0
    %1109 = vmatprep.subr.mxu0 0.0
    %1110 = vmatpush1.xpose.msra.mxu0 0.0
    %1111 = vmatprep.subr.mxu0 0.0
    %1112 = vmatpush1.xpose.msra.mxu0 0.0
    %1113 = vmatprep.subr.mxu0 0.0
    %1114 = vmatpush1.xpose.msra.mxu0 0.0
    %1115 = vmatprep.subr.mxu0 0.0
    %1116 = vmatpush1.xpose.msra.mxu0 0.0
    %1117 = vmatprep.subr.mxu0 0.0
    %1118 = vmatpush1.xpose.msra.mxu0 0.0
    %1119 = vmatprep.subr.mxu0 0.0
    %1120 = vmatpush1.xpose.msra.mxu0 0.0
    %1121 = vmatprep.subr.mxu0 0.0
    %1122 = vmatpush1.xpose.msra.mxu0 0.0
    %1123 = vmatprep.subr.mxu0 0.0
    %1124 = vmatpush1.xpose.msra.mxu0 0.0
    %1125 = vmatprep.subr.mxu0 0.0
    %1126 = vmatpush1.xpose.msra.mxu0 0.0
    %1127 = vmatprep.subr.mxu0 0.0
    %1128 = vmatpush1.xpose.msra.mxu0 0.0
    %1129 = vmatprep.subr.mxu0 0.0
    %1130 = vmatpush1.xpose.msra.mxu0 0.0
    %1131 = vmatprep.subr.mxu0 0.0
    %1132 = vmatpush1.xpose.msra.mxu0 0.0
    %1133 = vmatprep.mubr.f32.mxu0 %v1066
    %1134 = vmatmul.mubr.f32.gmra.mrb[0].mxu0 %v1065
    %v1135 = vpop.f32.mrb[0].mxu0
    %v1136 = vadd.f32 0.0, %v1135
    %v1137 = vpop.f32.mrb[0].mxu0
    %1138 = vdwg.mxu0
    %v1140 = vsel %vm958, %v1136, 0
    %v1142 = vsel %vm472, %v1065, 0
    %v1144 = vsel %vm472, %v1066, 0
    %1146 = vmatprep.subr.mxu0 %v1144
    %1147 = vmatpush1.msra.mxu0 %v1142
    %1148 = vmatprep.subr.mxu0 0.0
    %1149 = vmatpush1.msra.mxu0 0.0
    %1150 = vmatprep.subr.mxu0 0.0
    %1151 = vmatpush1.msra.mxu0 0.0
    %1152 = vmatprep.subr.mxu0 0.0
    %1153 = vmatpush1.msra.mxu0 0.0
    %1154 = vmatprep.subr.mxu0 0.0
    %1155 = vmatpush1.msra.mxu0 0.0
    %1156 = vmatprep.subr.mxu0 0.0
    %1157 = vmatpush1.msra.mxu0 0.0
    %1158 = vmatprep.subr.mxu0 0.0
    %1159 = vmatpush1.msra.mxu0 0.0
    %1160 = vmatprep.subr.mxu0 0.0
    %1161 = vmatpush1.msra.mxu0 0.0
    %1162 = vmatprep.subr.mxu0 0.0
    %1163 = vmatpush1.msra.mxu0 0.0
    %1164 = vmatprep.subr.mxu0 0.0
    %1165 = vmatpush1.msra.mxu0 0.0
    %1166 = vmatprep.subr.mxu0 0.0
    %1167 = vmatpush1.msra.mxu0 0.0
    %1168 = vmatprep.subr.mxu0 0.0
    %1169 = vmatpush1.msra.mxu0 0.0
    %1170 = vmatprep.subr.mxu0 0.0
    %1171 = vmatpush1.msra.mxu0 0.0
    %1172 = vmatprep.subr.mxu0 0.0
    %1173 = vmatpush1.msra.mxu0 0.0
    %1174 = vmatprep.subr.mxu0 0.0
    %1175 = vmatpush1.msra.mxu0 0.0
    %1176 = vmatprep.subr.mxu0 0.0
    %1177 = vmatpush1.msra.mxu0 0.0
    %1178 = vmatprep.subr.mxu0 0.0
    %1179 = vmatpush1.msra.mxu0 0.0
    %1180 = vmatprep.subr.mxu0 0.0
    %1181 = vmatpush1.msra.mxu0 0.0
    %1182 = vmatprep.subr.mxu0 0.0
    %1183 = vmatpush1.msra.mxu0 0.0
    %1184 = vmatprep.subr.mxu0 0.0
    %1185 = vmatpush1.msra.mxu0 0.0
    %1186 = vmatprep.subr.mxu0 0.0
    %1187 = vmatpush1.msra.mxu0 0.0
    %1188 = vmatprep.subr.mxu0 0.0
    %1189 = vmatpush1.msra.mxu0 0.0
    %1190 = vmatprep.subr.mxu0 0.0
    %1191 = vmatpush1.msra.mxu0 0.0
    %1192 = vmatprep.subr.mxu0 0.0
    %1193 = vmatpush1.msra.mxu0 0.0
    %1194 = vmatprep.subr.mxu0 0.0
    %1195 = vmatpush1.msra.mxu0 0.0
    %1196 = vmatprep.subr.mxu0 0.0
    %1197 = vmatpush1.msra.mxu0 0.0
    %1198 = vmatprep.subr.mxu0 0.0
    %1199 = vmatpush1.msra.mxu0 0.0
    %1200 = vmatprep.subr.mxu0 0.0
    %1201 = vmatpush1.msra.mxu0 0.0
    %1202 = vmatprep.subr.mxu0 0.0
    %1203 = vmatpush1.msra.mxu0 0.0
    %1204 = vmatprep.subr.mxu0 0.0
    %1205 = vmatpush1.msra.mxu0 0.0
    %1206 = vmatprep.subr.mxu0 0.0
    %1207 = vmatpush1.msra.mxu0 0.0
    %1208 = vmatprep.subr.mxu0 0.0
    %1209 = vmatpush1.msra.mxu0 0.0
    %1210 = vmatprep.mubr.f32.mxu0 0.0
    %1211 = vmatmul.mubr.f32.gmra.mrb[0].mxu0 %v1140
    %v1212 = vpop.f32.mrb[0].mxu0
    %v1213 = vadd.f32 0.0, %v1212
    %v1214 = vpop.f32.mrb[0].mxu0
    %v1215 = vadd.f32 0.0, %v1214
    %1216 = vdwg.mxu0
    %v1219 = vrot.slane %v1213, 4
    %v1220 = vrot.slane %v1215, 4
    %v1223 = vadd.f32 %v741, %v1219
    %v1224 = vadd.f32 %v742, %v1220
    %v1227 = vrot.slane %v1223, 4
    %v1228 = vrot.slane %v1224, 4
    %v1233 = vrot.slane %v733, 4
    %v1234 = vrot.slane %v734, 4
    %v1237 = vsel %vm472, %v731, %v1233
    %v1238 = vsel %vm472, %v732, %v1234
    %v1239 = vld [vmem:[%s7] sm:$0xff]
    %v1240 = vld [vmem:[%s7 + $0x8] sm:$0xff]
    %v1241 = vld [vmem:[%s7 + $0x10] sm:$0xff]
    %v1242 = vld [vmem:[%s7 + $0x18] sm:$0xff]
    %v1243 = vld [vmem:[%s7 + $0x20] sm:$0xff]
    %v1244 = vld [vmem:[%s7 + $0x28] sm:$0xff]
    %v1245 = vld [vmem:[%s7 + $0x30] sm:$0xff]
    %v1246 = vld [vmem:[%s7 + $0x38] sm:$0xff]
    %v1247 = vld [vmem:[%s7 + $0x40] sm:$0xff]
    %v1248 = vld [vmem:[%s7 + $0x48] sm:$0xff]
    %v1249 = vld [vmem:[%s7 + $0x50] sm:$0xff]
    %v1250 = vld [vmem:[%s7 + $0x58] sm:$0xff]
    %v1251 = vld [vmem:[%s7 + $0x60] sm:$0xff]
    %v1252 = vld [vmem:[%s7 + $0x68] sm:$0xff]
    %v1253 = vld [vmem:[%s7 + $0x70] sm:$0xff]
    %v1254 = vld [vmem:[%s7 + $0x78] sm:$0xff]
    %v1255 = vld [vmem:[%s7 + $0x80] sm:$0xff]
    %v1256 = vld [vmem:[%s7 + $0x88] sm:$0xff]
    %v1257 = vld [vmem:[%s7 + $0x90] sm:$0xff]
    %v1258 = vld [vmem:[%s7 + $0x98] sm:$0xff]
    %v1259 = vld [vmem:[%s7 + $0xa0] sm:$0xff]
    %v1260 = vld [vmem:[%s7 + $0xa8] sm:$0xff]
    %v1261 = vld [vmem:[%s7 + $0xb0] sm:$0xff]
    %v1262 = vld [vmem:[%s7 + $0xb8] sm:$0xff]
    %v1263 = vld [vmem:[%s7 + $0xc0] sm:$0xff]
    %v1264 = vld [vmem:[%s7 + $0xc8] sm:$0xff]
    %v1265 = vld [vmem:[%s7 + $0xd0] sm:$0xff]
    %v1266 = vld [vmem:[%s7 + $0xd8] sm:$0xff]
    %v1267 = vld [vmem:[%s7 + $0xe0] sm:$0xff]
    %v1268 = vld [vmem:[%s7 + $0xe8] sm:$0xff]
    %v1269 = vld [vmem:[%s7 + $0xf0] sm:$0xff]
    %v1270 = vld [vmem:[%s7 + $0xf8] sm:$0xff]
    %v1272 = vlaneseq
    %v1273 = vshrl.u32 %v1272, 7
    %v1274 = vsub.s32 0, %v1273
    %v1275 = vrot.slane %v109, %v1274
    %1277 = vmatprep.subr.mxu0 0.0
    %1278 = vmatpush1.msra.mxu0 %v1239
    %1279 = vmatprep.subr.mxu0 0.0
    %1280 = vmatpush1.msra.mxu0 %v1240
    %1281 = vmatprep.subr.mxu0 0.0
    %1282 = vmatpush1.msra.mxu0 %v1241
    %1283 = vmatprep.subr.mxu0 0.0
    %1284 = vmatpush1.msra.mxu0 %v1242
    %1285 = vmatprep.subr.mxu0 0.0
    %1286 = vmatpush1.msra.mxu0 %v1243
    %1287 = vmatprep.subr.mxu0 0.0
    %1288 = vmatpush1.msra.mxu0 %v1244
    %1289 = vmatprep.subr.mxu0 0.0
    %1290 = vmatpush1.msra.mxu0 %v1245
    %1291 = vmatprep.subr.mxu0 0.0
    %1292 = vmatpush1.msra.mxu0 %v1246
    %1293 = vmatprep.subr.mxu0 0.0
    %1294 = vmatpush1.msra.mxu0 %v1247
    %1295 = vmatprep.subr.mxu0 0.0
    %1296 = vmatpush1.msra.mxu0 %v1248
    %1297 = vmatprep.subr.mxu0 0.0
    %1298 = vmatpush1.msra.mxu0 %v1249
    %1299 = vmatprep.subr.mxu0 0.0
    %1300 = vmatpush1.msra.mxu0 %v1250
    %1301 = vmatprep.subr.mxu0 0.0
    %1302 = vmatpush1.msra.mxu0 %v1251
    %1303 = vmatprep.subr.mxu0 0.0
    %1304 = vmatpush1.msra.mxu0 %v1252
    %1305 = vmatprep.subr.mxu0 0.0
    %1306 = vmatpush1.msra.mxu0 %v1253
    %1307 = vmatprep.subr.mxu0 0.0
    %1308 = vmatpush1.msra.mxu0 %v1254
    %1309 = vmatprep.subr.mxu0 0.0
    %1310 = vmatpush1.msra.mxu0 %v1255
    %1311 = vmatprep.subr.mxu0 0.0
    %1312 = vmatpush1.msra.mxu0 %v1256
    %1313 = vmatprep.subr.mxu0 0.0
    %1314 = vmatpush1.msra.mxu0 %v1257
    %1315 = vmatprep.subr.mxu0 0.0
    %1316 = vmatpush1.msra.mxu0 %v1258
    %1317 = vmatprep.subr.mxu0 0.0
    %1318 = vmatpush1.msra.mxu0 %v1259
    %1319 = vmatprep.subr.mxu0 0.0
    %1320 = vmatpush1.msra.mxu0 %v1260
    %1321 = vmatprep.subr.mxu0 0.0
    %1322 = vmatpush1.msra.mxu0 %v1261
    %1323 = vmatprep.subr.mxu0 0.0
    %1324 = vmatpush1.msra.mxu0 %v1262
    %1325 = vmatprep.subr.mxu0 0.0
    %1326 = vmatpush1.msra.mxu0 %v1263
    %1327 = vmatprep.subr.mxu0 0.0
    %1328 = vmatpush1.msra.mxu0 %v1264
    %1329 = vmatprep.subr.mxu0 0.0
    %1330 = vmatpush1.msra.mxu0 %v1265
    %1331 = vmatprep.subr.mxu0 0.0
    %1332 = vmatpush1.msra.mxu0 %v1266
    %1333 = vmatprep.subr.mxu0 0.0
    %1334 = vmatpush1.msra.mxu0 %v1267
    %1335 = vmatprep.subr.mxu0 0.0
    %1336 = vmatpush1.msra.mxu0 %v1268
    %1337 = vmatprep.subr.mxu0 0.0
    %1338 = vmatpush1.msra.mxu0 %v1269
    %1339 = vmatprep.subr.mxu0 0.0
    %1340 = vmatpush1.msra.mxu0 %v1270
    %1341 = vmatprep.mubr.f32.mxu0 %v1238
    %1342 = vmatmul.mubr.f32.gmra.mrb[0].mxu0 %v1237
    %v1343 = vpop.f32.mrb[0].mxu0
    %v1344 = vadd.f32 %v1275, %v1343
    %v1345 = vpop.f32.mrb[0].mxu0
    %1346 = vdwg.mxu0
    %vm1347 = vcmp.gt.f32.partialorder %v1344, 20.0
    %v1348 = vmin.f32 %v1344, 20.0
    %v1349 = vmul.f32 %v1348, 1.442695
    %v1350 = vpow.pop %v1349
    %v1351 = vadd.f32 %v1350, 1.0
    %v1352 = vlog2.pop %v1351
    %v1353 = vmul.f32 %v1352, 0.6931472
    %v1354 = vsel %vm1347, %v1344, %v1353
    %1356 = vrot.lane.b32.xlu0 %v1354, 112
    %v1357 = vpop.permute.xlu0 %1356
    %v1358 = vsel %vm223, %v1357, 0
    %v1360 = vsel %vm223, %v1354, 0
    %1362 = vmatprep.subr.mxu0 0.0
    %1363 = vmatpush1.xpose.msra.mxu0 %v1360
    %1364 = vmatprep.subr.mxu0 0.0
    %1365 = vmatpush1.xpose.msra.mxu0 0.0
    %1366 = vmatprep.subr.mxu0 0.0
    %1367 = vmatpush1.xpose.msra.mxu0 0.0
    %1368 = vmatprep.subr.mxu0 0.0
    %1369 = vmatpush1.xpose.msra.mxu0 0.0
    %1370 = vmatprep.subr.mxu0 0.0
    %1371 = vmatpush1.xpose.msra.mxu0 0.0
    %1372 = vmatprep.subr.mxu0 0.0
    %1373 = vmatpush1.xpose.msra.mxu0 0.0
    %1374 = vmatprep.subr.mxu0 0.0
    %1375 = vmatpush1.xpose.msra.mxu0 0.0
    %1376 = vmatprep.subr.mxu0 0.0
    %1377 = vmatpush1.xpose.msra.mxu0 0.0
    %1378 = vmatprep.subr.mxu0 0.0
    %1379 = vmatpush1.xpose.msra.mxu0 0.0
    %1380 = vmatprep.subr.mxu0 0.0
    %1381 = vmatpush1.xpose.msra.mxu0 0.0
    %1382 = vmatprep.subr.mxu0 0.0
    %1383 = vmatpush1.xpose.msra.mxu0 0.0
    %1384 = vmatprep.subr.mxu0 0.0
    %1385 = vmatpush1.xpose.msra.mxu0 0.0
    %1386 = vmatprep.subr.mxu0 0.0
    %1387 = vmatpush1.xpose.msra.mxu0 0.0
    %1388 = vmatprep.subr.mxu0 0.0
    %1389 = vmatpush1.xpose.msra.mxu0 0.0
    %1390 = vmatprep.subr.mxu0 0.0
    %1391 = vmatpush1.xpose.msra.mxu0 0.0
    %1392 = vmatprep.subr.mxu0 0.0
    %1393 = vmatpush1.xpose.msra.mxu0 0.0
    %1394 = vmatprep.subr.mxu0 0.0
    %1395 = vmatpush1.xpose.msra.mxu0 0.0
    %1396 = vmatprep.subr.mxu0 0.0
    %1397 = vmatpush1.xpose.msra.mxu0 0.0
    %1398 = vmatprep.subr.mxu0 0.0
    %1399 = vmatpush1.xpose.msra.mxu0 0.0
    %1400 = vmatprep.subr.mxu0 0.0
    %1401 = vmatpush1.xpose.msra.mxu0 0.0
    %1402 = vmatprep.subr.mxu0 0.0
    %1403 = vmatpush1.xpose.msra.mxu0 0.0
    %1404 = vmatprep.subr.mxu0 0.0
    %1405 = vmatpush1.xpose.msra.mxu0 0.0
    %1406 = vmatprep.subr.mxu0 0.0
    %1407 = vmatpush1.xpose.msra.mxu0 0.0
    %1408 = vmatprep.subr.mxu0 0.0
    %1409 = vmatpush1.xpose.msra.mxu0 0.0
    %1410 = vmatprep.subr.mxu0 0.0
    %1411 = vmatpush1.xpose.msra.mxu0 0.0
    %1412 = vmatprep.subr.mxu0 0.0
    %1413 = vmatpush1.xpose.msra.mxu0 0.0
    %1414 = vmatprep.subr.mxu0 0.0
    %1415 = vmatpush1.xpose.msra.mxu0 0.0
    %1416 = vmatprep.subr.mxu0 0.0
    %1417 = vmatpush1.xpose.msra.mxu0 0.0
    %1418 = vmatprep.subr.mxu0 0.0
    %1419 = vmatpush1.xpose.msra.mxu0 0.0
    %1420 = vmatprep.subr.mxu0 0.0
    %1421 = vmatpush1.xpose.msra.mxu0 0.0
    %1422 = vmatprep.subr.mxu0 0.0
    %1423 = vmatpush1.xpose.msra.mxu0 0.0
    %1424 = vmatprep.subr.mxu0 0.0
    %1425 = vmatpush1.xpose.msra.mxu0 0.0
    %1426 = vmatprep.mubr.f32.mxu0 0.0
    %1427 = vmatmul.mubr.f32.gmra.mrb[0].mxu0 %v1358
    %v1428 = vpop.f32.mrb[0].mxu0
    %v1429 = vadd.f32 0.0, %v1428
    %v1430 = vpop.f32.mrb[0].mxu0
    %1431 = vdwg.mxu0
    %1433 = vrot.lane.b32.xlu0 %v1344, 96
    %v1434 = vpop.permute.xlu0 %1433
    %v1436 = vsel %vm958, %v1429, 0
    %v1438 = vsel %vm472, %v1434, 0
    %1440 = vmatprep.subr.mxu0 0.0
    %1441 = vmatpush1.msra.mxu0 %v1438
    %1442 = vmatprep.subr.mxu0 0.0
    %1443 = vmatpush1.msra.mxu0 0.0
    %1444 = vmatprep.subr.mxu0 0.0
    %1445 = vmatpush1.msra.mxu0 0.0
    %1446 = vmatprep.subr.mxu0 0.0
    %1447 = vmatpush1.msra.mxu0 0.0
    %1448 = vmatprep.subr.mxu0 0.0
    %1449 = vmatpush1.msra.mxu0 0.0
    %1450 = vmatprep.subr.mxu0 0.0
    %1451 = vmatpush1.msra.mxu0 0.0
    %1452 = vmatprep.subr.mxu0 0.0
    %1453 = vmatpush1.msra.mxu0 0.0
    %1454 = vmatprep.subr.mxu0 0.0
    %1455 = vmatpush1.msra.mxu0 0.0
    %1456 = vmatprep.subr.mxu0 0.0
    %1457 = vmatpush1.msra.mxu0 0.0
    %1458 = vmatprep.subr.mxu0 0.0
    %1459 = vmatpush1.msra.mxu0 0.0
    %1460 = vmatprep.subr.mxu0 0.0
    %1461 = vmatpush1.msra.mxu0 0.0
    %1462 = vmatprep.subr.mxu0 0.0
    %1463 = vmatpush1.msra.mxu0 0.0
    %1464 = vmatprep.subr.mxu0 0.0
    %1465 = vmatpush1.msra.mxu0 0.0
    %1466 = vmatprep.subr.mxu0 0.0
    %1467 = vmatpush1.msra.mxu0 0.0
    %1468 = vmatprep.subr.mxu0 0.0
    %1469 = vmatpush1.msra.mxu0 0.0
    %1470 = vmatprep.subr.mxu0 0.0
    %1471 = vmatpush1.msra.mxu0 0.0
    %1472 = vmatprep.subr.mxu0 0.0
    %1473 = vmatpush1.msra.mxu0 0.0
    %1474 = vmatprep.subr.mxu0 0.0
    %1475 = vmatpush1.msra.mxu0 0.0
    %1476 = vmatprep.subr.mxu0 0.0
    %1477 = vmatpush1.msra.mxu0 0.0
    %1478 = vmatprep.subr.mxu0 0.0
    %1479 = vmatpush1.msra.mxu0 0.0
    %1480 = vmatprep.subr.mxu0 0.0
    %1481 = vmatpush1.msra.mxu0 0.0
    %1482 = vmatprep.subr.mxu0 0.0
    %1483 = vmatpush1.msra.mxu0 0.0
    %1484 = vmatprep.subr.mxu0 0.0
    %1485 = vmatpush1.msra.mxu0 0.0
    %1486 = vmatprep.subr.mxu0 0.0
    %1487 = vmatpush1.msra.mxu0 0.0
    %1488 = vmatprep.subr.mxu0 0.0
    %1489 = vmatpush1.msra.mxu0 0.0
    %1490 = vmatprep.subr.mxu0 0.0
    %1491 = vmatpush1.msra.mxu0 0.0
    %1492 = vmatprep.subr.mxu0 0.0
    %1493 = vmatpush1.msra.mxu0 0.0
    %1494 = vmatprep.subr.mxu0 0.0
    %1495 = vmatpush1.msra.mxu0 0.0
    %1496 = vmatprep.subr.mxu0 0.0
    %1497 = vmatpush1.msra.mxu0 0.0
    %1498 = vmatprep.subr.mxu0 0.0
    %1499 = vmatpush1.msra.mxu0 0.0
    %1500 = vmatprep.subr.mxu0 0.0
    %1501 = vmatpush1.msra.mxu0 0.0
    %1502 = vmatprep.subr.mxu0 0.0
    %1503 = vmatpush1.msra.mxu0 0.0
    %1504 = vmatprep.mubr.f32.mxu0 0.0
    %1505 = vmatmul.mubr.f32.gmra.mrb[0].mxu0 %v1436
    %v1506 = vpop.f32.mrb[0].mxu0
    %v1507 = vadd.f32 0.0, %v1506
    %v1508 = vpop.f32.mrb[0].mxu0
    %1509 = vdwg.mxu0
    %v1510 = vrot.slane %v1354, 4
    %1511 = vrot.lane.b32.xlu0 %v1510, 112
    %v1512 = vpop.permute.xlu0 %1511
    %v1513 = vsel %vm223, %v1512, 0
    %v1515 = vsel %vm223, %v1510, 0
    %1517 = vmatprep.subr.mxu0 0.0
    %1518 = vmatpush1.xpose.msra.mxu0 %v1515
    %1519 = vmatprep.subr.mxu0 0.0
    %1520 = vmatpush1.xpose.msra.mxu0 0.0
    %1521 = vmatprep.subr.mxu0 0.0
    %1522 = vmatpush1.xpose.msra.mxu0 0.0
    %1523 = vmatprep.subr.mxu0 0.0
    %1524 = vmatpush1.xpose.msra.mxu0 0.0
    %1525 = vmatprep.subr.mxu0 0.0
    %1526 = vmatpush1.xpose.msra.mxu0 0.0
    %1527 = vmatprep.subr.mxu0 0.0
    %1528 = vmatpush1.xpose.msra.mxu0 0.0
    %1529 = vmatprep.subr.mxu0 0.0
    %1530 = vmatpush1.xpose.msra.mxu0 0.0
    %1531 = vmatprep.subr.mxu0 0.0
    %1532 = vmatpush1.xpose.msra.mxu0 0.0
    %1533 = vmatprep.subr.mxu0 0.0
    %1534 = vmatpush1.xpose.msra.mxu0 0.0
    %1535 = vmatprep.subr.mxu0 0.0
    %1536 = vmatpush1.xpose.msra.mxu0 0.0
    %1537 = vmatprep.subr.mxu0 0.0
    %1538 = vmatpush1.xpose.msra.mxu0 0.0
    %1539 = vmatprep.subr.mxu0 0.0
    %1540 = vmatpush1.xpose.msra.mxu0 0.0
    %1541 = vmatprep.subr.mxu0 0.0
    %1542 = vmatpush1.xpose.msra.mxu0 0.0
    %1543 = vmatprep.subr.mxu0 0.0
    %1544 = vmatpush1.xpose.msra.mxu0 0.0
    %1545 = vmatprep.subr.mxu0 0.0
    %1546 = vmatpush1.xpose.msra.mxu0 0.0
    %1547 = vmatprep.subr.mxu0 0.0
    %1548 = vmatpush1.xpose.msra.mxu0 0.0
    %1549 = vmatprep.subr.mxu0 0.0
    %1550 = vmatpush1.xpose.msra.mxu0 0.0
    %1551 = vmatprep.subr.mxu0 0.0
    %1552 = vmatpush1.xpose.msra.mxu0 0.0
    %1553 = vmatprep.subr.mxu0 0.0
    %1554 = vmatpush1.xpose.msra.mxu0 0.0
    %1555 = vmatprep.subr.mxu0 0.0
    %1556 = vmatpush1.xpose.msra.mxu0 0.0
    %1557 = vmatprep.subr.mxu0 0.0
    %1558 = vmatpush1.xpose.msra.mxu0 0.0
    %1559 = vmatprep.subr.mxu0 0.0
    %1560 = vmatpush1.xpose.msra.mxu0 0.0
    %1561 = vmatprep.subr.mxu0 0.0
    %1562 = vmatpush1.xpose.msra.mxu0 0.0
    %1563 = vmatprep.subr.mxu0 0.0
    %1564 = vmatpush1.xpose.msra.mxu0 0.0
    %1565 = vmatprep.subr.mxu0 0.0
    %1566 = vmatpush1.xpose.msra.mxu0 0.0
    %1567 = vmatprep.subr.mxu0 0.0
    %1568 = vmatpush1.xpose.msra.mxu0 0.0
    %1569 = vmatprep.subr.mxu0 0.0
    %1570 = vmatpush1.xpose.msra.mxu0 0.0
    %1571 = vmatprep.subr.mxu0 0.0
    %1572 = vmatpush1.xpose.msra.mxu0 0.0
    %1573 = vmatprep.subr.mxu0 0.0
    %1574 = vmatpush1.xpose.msra.mxu0 0.0
    %1575 = vmatprep.subr.mxu0 0.0
    %1576 = vmatpush1.xpose.msra.mxu0 0.0
    %1577 = vmatprep.subr.mxu0 0.0
    %1578 = vmatpush1.xpose.msra.mxu0 0.0
    %1579 = vmatprep.subr.mxu0 0.0
    %1580 = vmatpush1.xpose.msra.mxu0 0.0
    %1581 = vmatprep.mubr.f32.mxu0 0.0
    %1582 = vmatmul.mubr.f32.gmra.mrb[0].mxu0 %v1513
    %v1583 = vpop.f32.mrb[0].mxu0
    %v1584 = vadd.f32 0.0, %v1583
    %v1585 = vpop.f32.mrb[0].mxu0
    %1586 = vdwg.mxu0
    %v1587 = vrot.slane %v1344, 4
    %1588 = vrot.lane.b32.xlu0 %v1587, 96
    %v1589 = vpop.permute.xlu0 %1588
    %v1591 = vsel %vm958, %v1584, 0
    %v1593 = vsel %vm472, %v1589, 0
    %1595 = vmatprep.subr.mxu0 0.0
    %1596 = vmatpush1.msra.mxu0 %v1593
    %1597 = vmatprep.subr.mxu0 0.0
    %1598 = vmatpush1.msra.mxu0 0.0
    %1599 = vmatprep.subr.mxu0 0.0
    %1600 = vmatpush1.msra.mxu0 0.0
    %1601 = vmatprep.subr.mxu0 0.0
    %1602 = vmatpush1.msra.mxu0 0.0
    %1603 = vmatprep.subr.mxu0 0.0
    %1604 = vmatpush1.msra.mxu0 0.0
    %1605 = vmatprep.subr.mxu0 0.0
    %1606 = vmatpush1.msra.mxu0 0.0
    %1607 = vmatprep.subr.mxu0 0.0
    %1608 = vmatpush1.msra.mxu0 0.0
    %1609 = vmatprep.subr.mxu0 0.0
    %1610 = vmatpush1.msra.mxu0 0.0
    %1611 = vmatprep.subr.mxu0 0.0
    %1612 = vmatpush1.msra.mxu0 0.0
    %1613 = vmatprep.subr.mxu0 0.0
    %1614 = vmatpush1.msra.mxu0 0.0
    %1615 = vmatprep.subr.mxu0 0.0
    %1616 = vmatpush1.msra.mxu0 0.0
    %1617 = vmatprep.subr.mxu0 0.0
    %1618 = vmatpush1.msra.mxu0 0.0
    %1619 = vmatprep.subr.mxu0 0.0
    %1620 = vmatpush1.msra.mxu0 0.0
    %1621 = vmatprep.subr.mxu0 0.0
    %1622 = vmatpush1.msra.mxu0 0.0
    %1623 = vmatprep.subr.mxu0 0.0
    %1624 = vmatpush1.msra.mxu0 0.0
    %1625 = vmatprep.subr.mxu0 0.0
    %1626 = vmatpush1.msra.mxu0 0.0
    %1627 = vmatprep.subr.mxu0 0.0
    %1628 = vmatpush1.msra.mxu0 0.0
    %1629 = vmatprep.subr.mxu0 0.0
    %1630 = vmatpush1.msra.mxu0 0.0
    %1631 = vmatprep.subr.mxu0 0.0
    %1632 = vmatpush1.msra.mxu0 0.0
    %1633 = vmatprep.subr.mxu0 0.0
    %1634 = vmatpush1.msra.mxu0 0.0
    %1635 = vmatprep.subr.mxu0 0.0
    %1636 = vmatpush1.msra.mxu0 0.0
    %1637 = vmatprep.subr.mxu0 0.0
    %1638 = vmatpush1.msra.mxu0 0.0
    %1639 = vmatprep.subr.mxu0 0.0
    %1640 = vmatpush1.msra.mxu0 0.0
    %1641 = vmatprep.subr.mxu0 0.0
    %1642 = vmatpush1.msra.mxu0 0.0
    %1643 = vmatprep.subr.mxu0 0.0
    %1644 = vmatpush1.msra.mxu0 0.0
    %1645 = vmatprep.subr.mxu0 0.0
    %1646 = vmatpush1.msra.mxu0 0.0
    %1647 = vmatprep.subr.mxu0 0.0
    %1648 = vmatpush1.msra.mxu0 0.0
    %1649 = vmatprep.subr.mxu0 0.0
    %1650 = vmatpush1.msra.mxu0 0.0
    %1651 = vmatprep.subr.mxu0 0.0
    %1652 = vmatpush1.msra.mxu0 0.0
    %1653 = vmatprep.subr.mxu0 0.0
    %1654 = vmatpush1.msra.mxu0 0.0
    %1655 = vmatprep.subr.mxu0 0.0
    %1656 = vmatpush1.msra.mxu0 0.0
    %1657 = vmatprep.subr.mxu0 0.0
    %1658 = vmatpush1.msra.mxu0 0.0
    %1659 = vmatprep.mubr.f32.mxu0 0.0
    %1660 = vmatmul.mubr.f32.gmra.mrb[0].mxu0 %v1591
    %v1661 = vpop.f32.mrb[0].mxu0
    %v1662 = vadd.f32 0.0, %v1661
    %v1663 = vpop.f32.mrb[0].mxu0
    %1664 = vdwg.mxu0
    %v1666 = vrot.slane %v1662, 4
    %v1668 = vsel %vm472, %v1507, %v1666
    %v1669 = vld [vmem:[#allocation6] sm:$0xff]
    %v1670 = vld [vmem:[#allocation6 + $0x8] sm:$0xff]
    %v1671 = vld [vmem:[#allocation6 + $0x10] sm:$0xff]
    %v1672 = vld [vmem:[#allocation6 + $0x18] sm:$0xff]
    %v1674 = vlaneseq
    %v1675 = vshrl.u32 %v1674, 7
    %v1676 = vsub.s32 0, %v1675
    %v1677 = vrot.slane %v110, %v1676
    %v1678 = vlaneseq
    %v1679 = vshrl.u32 %v1678, 7
    %v1680 = vsub.s32 1, %v1679
    %v1681 = vrot.slane %v110, %v1680
    %v1685 = vsel %vm223, %v1668, 0
    %1687 = vmatprep.subr.mxu0 %v1670
    %1688 = vmatpush1.msra.mxu0 %v1669
    %1689 = vmatprep.subr.mxu0 %v1672
    %1690 = vmatpush1.msra.mxu0 %v1671
    %1691 = vmatprep.subr.mxu0 0.0
    %1692 = vmatpush1.msra.mxu0 0.0
    %1693 = vmatprep.subr.mxu0 0.0
    %1694 = vmatpush1.msra.mxu0 0.0
    %1695 = vmatprep.subr.mxu0 0.0
    %1696 = vmatpush1.msra.mxu0 0.0
    %1697 = vmatprep.subr.mxu0 0.0
    %1698 = vmatpush1.msra.mxu0 0.0
    %1699 = vmatprep.subr.mxu0 0.0
    %1700 = vmatpush1.msra.mxu0 0.0
    %1701 = vmatprep.subr.mxu0 0.0
    %1702 = vmatpush1.msra.mxu0 0.0
    %1703 = vmatprep.subr.mxu0 0.0
    %1704 = vmatpush1.msra.mxu0 0.0
    %1705 = vmatprep.subr.mxu0 0.0
    %1706 = vmatpush1.msra.mxu0 0.0
    %1707 = vmatprep.subr.mxu0 0.0
    %1708 = vmatpush1.msra.mxu0 0.0
    %1709 = vmatprep.subr.mxu0 0.0
    %1710 = vmatpush1.msra.mxu0 0.0
    %1711 = vmatprep.subr.mxu0 0.0
    %1712 = vmatpush1.msra.mxu0 0.0
    %1713 = vmatprep.subr.mxu0 0.0
    %1714 = vmatpush1.msra.mxu0 0.0
    %1715 = vmatprep.subr.mxu0 0.0
    %1716 = vmatpush1.msra.mxu0 0.0
    %1717 = vmatprep.subr.mxu0 0.0
    %1718 = vmatpush1.msra.mxu0 0.0
    %1719 = vmatprep.subr.mxu0 0.0
    %1720 = vmatpush1.msra.mxu0 0.0
    %1721 = vmatprep.subr.mxu0 0.0
    %1722 = vmatpush1.msra.mxu0 0.0
    %1723 = vmatprep.subr.mxu0 0.0
    %1724 = vmatpush1.msra.mxu0 0.0
    %1725 = vmatprep.subr.mxu0 0.0
    %1726 = vmatpush1.msra.mxu0 0.0
    %1727 = vmatprep.subr.mxu0 0.0
    %1728 = vmatpush1.msra.mxu0 0.0
    %1729 = vmatprep.subr.mxu0 0.0
    %1730 = vmatpush1.msra.mxu0 0.0
    %1731 = vmatprep.subr.mxu0 0.0
    %1732 = vmatpush1.msra.mxu0 0.0
    %1733 = vmatprep.subr.mxu0 0.0
    %1734 = vmatpush1.msra.mxu0 0.0
    %1735 = vmatprep.subr.mxu0 0.0
    %1736 = vmatpush1.msra.mxu0 0.0
    %1737 = vmatprep.subr.mxu0 0.0
    %1738 = vmatpush1.msra.mxu0 0.0
    %1739 = vmatprep.subr.mxu0 0.0
    %1740 = vmatpush1.msra.mxu0 0.0
    %1741 = vmatprep.subr.mxu0 0.0
    %1742 = vmatpush1.msra.mxu0 0.0
    %1743 = vmatprep.subr.mxu0 0.0
    %1744 = vmatpush1.msra.mxu0 0.0
    %1745 = vmatprep.subr.mxu0 0.0
    %1746 = vmatpush1.msra.mxu0 0.0
    %1747 = vmatprep.subr.mxu0 0.0
    %1748 = vmatpush1.msra.mxu0 0.0
    %1749 = vmatprep.subr.mxu0 0.0
    %1750 = vmatpush1.msra.mxu0 0.0
    %1751 = vmatprep.mubr.f32.mxu0 0.0
    %1752 = vmatmul.mubr.f32.gmra.mrb[0].mxu0 %v1685
    %v1753 = vpop.f32.mrb[0].mxu0
    %v1754 = vadd.f32 %v1677, %v1753
    %v1755 = vpop.f32.mrb[0].mxu0
    %v1756 = vadd.f32 %v1681, %v1755
    %1757 = vdwg.mxu0
    %v1760 = vrot.slane %v1754, 4
    %v1761 = vrot.slane %v1756, 4
    %1764 = vrot.lane.b32.xlu0 %v1761, 17
    %v1765 = vpop.permute.xlu0 %1764
    %1769 = vrot.lane.b32.xlu0 %v1039, 17
    %v1770 = vpop.permute.xlu0 %1769
    %1771 = vrot.lane.b32.xlu0 %v1040, 17
    %v1772 = vpop.permute.xlu0 %1771
    %1773 = vrot.lane.b32.xlu0 %v1227, 17
    %v1774 = vpop.permute.xlu0 %1773
    %1775 = vrot.lane.b32.xlu0 %v1228, 17
    %v1776 = vpop.permute.xlu0 %1775
    %1777 = vrot.lane.b32.xlu0 %v1754, 17
    %v1778 = vpop.permute.xlu0 %1777
    %1779 = vrot.lane.b32.xlu0 %v1756, 17
    %v1780 = vpop.permute.xlu0 %1779
    %1781 = vrot.lane.b32.xlu0 %v1760, 17
    %v1782 = vpop.permute.xlu0 %1781
    %v1783 = vsel %vm193, %v1770, %v1772
    %v1784 = vsel %vm193, %v1772, %v1774
    %v1785 = vsel %vm193, %v1774, %v1776
    %v1786 = vsel %vm193, %v1776, %v1778
    %v1787 = vsel %vm193, %v1778, %v1780
    %v1788 = vsel %vm193, %v1780, %v1782
    %v1789 = vsel %vm193, %v1782, %v1765
    %v1798 = vsel %vm193, %v1765, %v1770
    %v1799 = vmul.f32 %v1798, %v205
    %v1800 = vmul.f32 %v1783, %v209
    %v1801 = vmul.f32 %v1784, %v205
    %v1802 = vmul.f32 %v1785, %v209
    %v1803 = vmul.f32 %v1786, %v205
    %v1804 = vmul.f32 %v1787, %v209
    %v1805 = vmul.f32 %v1788, %v205
    %v1806 = vmul.f32 %v1789, %v209
    %1807 = vrot.lane.b32.xlu0 %v1761, 16
    %v1808 = vpop.permute.xlu0 %1807
    %1810 = vrot.lane.b32.xlu0 %v1039, 16
    %v1811 = vpop.permute.xlu0 %1810
    %1812 = vrot.lane.b32.xlu0 %v1040, 16
    %v1813 = vpop.permute.xlu0 %1812
    %1814 = vrot.lane.b32.xlu0 %v1227, 16
    %v1815 = vpop.permute.xlu0 %1814
    %1816 = vrot.lane.b32.xlu0 %v1228, 16
    %v1817 = vpop.permute.xlu0 %1816
    %1818 = vrot.lane.b32.xlu0 %v1754, 16
    %v1819 = vpop.permute.xlu0 %1818
    %1820 = vrot.lane.b32.xlu0 %v1756, 16
    %v1821 = vpop.permute.xlu0 %1820
    %1822 = vrot.lane.b32.xlu0 %v1760, 16
    %v1823 = vpop.permute.xlu0 %1822
    %v1824 = vsel %vm223, %v1811, %v1813
    %v1825 = vsel %vm223, %v1813, %v1815
    %v1826 = vsel %vm223, %v1815, %v1817
    %v1827 = vsel %vm223, %v1817, %v1819
    %v1828 = vsel %vm223, %v1819, %v1821
    %v1829 = vsel %vm223, %v1821, %v1823
    %v1830 = vsel %vm223, %v1823, %v1808
    %v1839 = vsel %vm223, %v1808, %v1811
    %v1840 = vmul.f32 %v1839, %v235
    %v1841 = vmul.f32 %v1824, %v239
    %v1842 = vmul.f32 %v1825, %v235
    %v1843 = vmul.f32 %v1826, %v239
    %v1844 = vmul.f32 %v1827, %v235
    %v1845 = vmul.f32 %v1828, %v239
    %v1846 = vmul.f32 %v1829, %v235
    %v1847 = vmul.f32 %v1830, %v239
    %1848 = vrot.lane.b32.xlu0 %v1761, 15
    %v1849 = vpop.permute.xlu0 %1848
    %1851 = vrot.lane.b32.xlu0 %v1039, 15
    %v1852 = vpop.permute.xlu0 %1851
    %1853 = vrot.lane.b32.xlu0 %v1040, 15
    %v1854 = vpop.permute.xlu0 %1853
    %1855 = vrot.lane.b32.xlu0 %v1227, 15
    %v1856 = vpop.permute.xlu0 %1855
    %1857 = vrot.lane.b32.xlu0 %v1228, 15
    %v1858 = vpop.permute.xlu0 %1857
    %1859 = vrot.lane.b32.xlu0 %v1754, 15
    %v1860 = vpop.permute.xlu0 %1859
    %1861 = vrot.lane.b32.xlu0 %v1756, 15
    %v1862 = vpop.permute.xlu0 %1861
    %1863 = vrot.lane.b32.xlu0 %v1760, 15
    %v1864 = vpop.permute.xlu0 %1863
    %v1865 = vsel %vm253, %v1852, %v1854
    %v1866 = vsel %vm253, %v1854, %v1856
    %v1867 = vsel %vm253, %v1856, %v1858
    %v1868 = vsel %vm253, %v1858, %v1860
    %v1869 = vsel %vm253, %v1860, %v1862
    %v1870 = vsel %vm253, %v1862, %v1864
    %v1871 = vsel %vm253, %v1864, %v1849
    %v1880 = vsel %vm253, %v1849, %v1852
    %v1881 = vmul.f32 %v1880, %v265
    %v1882 = vmul.f32 %v1865, %v269
    %v1883 = vmul.f32 %v1866, %v265
    %v1884 = vmul.f32 %v1867, %v269
    %v1885 = vmul.f32 %v1868, %v265
    %v1886 = vmul.f32 %v1869, %v269
    %v1887 = vmul.f32 %v1870, %v265
    %v1888 = vmul.f32 %v1871, %v269
    %1889 = vrot.lane.b32.xlu0 %v1761, 1
    %v1890 = vpop.permute.xlu0 %1889
    %1892 = vrot.lane.b32.xlu0 %v1039, 1
    %v1893 = vpop.permute.xlu0 %1892
    %1894 = vrot.lane.b32.xlu0 %v1040, 1
    %v1895 = vpop.permute.xlu0 %1894
    %1896 = vrot.lane.b32.xlu0 %v1227, 1
    %v1897 = vpop.permute.xlu0 %1896
    %1898 = vrot.lane.b32.xlu0 %v1228, 1
    %v1899 = vpop.permute.xlu0 %1898
    %1900 = vrot.lane.b32.xlu0 %v1754, 1
    %v1901 = vpop.permute.xlu0 %1900
    %1902 = vrot.lane.b32.xlu0 %v1756, 1
    %v1903 = vpop.permute.xlu0 %1902
    %1904 = vrot.lane.b32.xlu0 %v1760, 1
    %v1905 = vpop.permute.xlu0 %1904
    %v1906 = vsel %vm283, %v1893, %v1895
    %v1907 = vsel %vm283, %v1895, %v1897
    %v1908 = vsel %vm283, %v1897, %v1899
    %v1909 = vsel %vm283, %v1899, %v1901
    %v1910 = vsel %vm283, %v1901, %v1903
    %v1911 = vsel %vm283, %v1903, %v1905
    %v1912 = vsel %vm283, %v1905, %v1890
    %v1921 = vsel %vm283, %v1890, %v1893
    %v1922 = vmul.f32 %v1921, %v295
    %v1923 = vmul.f32 %v1906, %v299
    %v1924 = vmul.f32 %v1907, %v295
    %v1925 = vmul.f32 %v1908, %v299
    %v1926 = vmul.f32 %v1909, %v295
    %v1927 = vmul.f32 %v1910, %v299
    %v1928 = vmul.f32 %v1911, %v295
    %v1929 = vmul.f32 %v1912, %v299
    %1930 = vrot.lane.b32.xlu0 %v1039, 127
    %v1931 = vpop.permute.xlu0 %1930
    %1932 = vrot.lane.b32.xlu0 %v1040, 127
    %v1933 = vpop.permute.xlu0 %1932
    %1934 = vrot.lane.b32.xlu0 %v1227, 127
    %v1935 = vpop.permute.xlu0 %1934
    %1936 = vrot.lane.b32.xlu0 %v1228, 127
    %v1937 = vpop.permute.xlu0 %1936
    %1938 = vrot.lane.b32.xlu0 %v1754, 127
    %v1939 = vpop.permute.xlu0 %1938
    %1940 = vrot.lane.b32.xlu0 %v1756, 127
    %v1941 = vpop.permute.xlu0 %1940
    %1942 = vrot.lane.b32.xlu0 %v1760, 127
    %v1943 = vpop.permute.xlu0 %1942
    %1944 = vrot.lane.b32.xlu0 %v1761, 127
    %v1945 = vpop.permute.xlu0 %1944
    %v1946 = vsel %vm312, %v1931, %v1933
    %v1947 = vsel %vm312, %v1933, %v1935
    %v1948 = vsel %vm312, %v1935, %v1937
    %v1949 = vsel %vm312, %v1937, %v1939
    %v1950 = vsel %vm312, %v1939, %v1941
    %v1951 = vsel %vm312, %v1941, %v1943
    %v1952 = vsel %vm312, %v1943, %v1945
    %v1962 = vsel %vm312, %v1945, %v1931
    %v1963 = vmul.f32 %v1946, %v325
    %v1964 = vmul.f32 %v1947, %v329
    %v1965 = vmul.f32 %v1948, %v325
    %v1966 = vmul.f32 %v1949, %v329
    %v1967 = vmul.f32 %v1950, %v325
    %v1968 = vmul.f32 %v1951, %v329
    %v1969 = vmul.f32 %v1952, %v325
    %v1970 = vmul.f32 %v1962, %v329
    %1971 = vrot.lane.b32.xlu0 %v1039, 113
    %v1972 = vpop.permute.xlu0 %1971
    %1973 = vrot.lane.b32.xlu0 %v1040, 113
    %v1974 = vpop.permute.xlu0 %1973
    %1975 = vrot.lane.b32.xlu0 %v1227, 113
    %v1976 = vpop.permute.xlu0 %1975
    %1977 = vrot.lane.b32.xlu0 %v1228, 113
    %v1978 = vpop.permute.xlu0 %1977
    %1979 = vrot.lane.b32.xlu0 %v1754, 113
    %v1980 = vpop.permute.xlu0 %1979
    %1981 = vrot.lane.b32.xlu0 %v1756, 113
    %v1982 = vpop.permute.xlu0 %1981
    %1983 = vrot.lane.b32.xlu0 %v1760, 113
    %v1984 = vpop.permute.xlu0 %1983
    %1985 = vrot.lane.b32.xlu0 %v1761, 113
    %v1986 = vpop.permute.xlu0 %1985
    %v1987 = vsel %vm342, %v1972, %v1974
    %v1988 = vsel %vm342, %v1974, %v1976
    %v1989 = vsel %vm342, %v1976, %v1978
    %v1990 = vsel %vm342, %v1978, %v1980
    %v1991 = vsel %vm342, %v1980, %v1982
    %v1992 = vsel %vm342, %v1982, %v1984
    %v1993 = vsel %vm342, %v1984, %v1986
    %v2003 = vsel %vm342, %v1986, %v1972
    %v2004 = vmul.f32 %v1987, %v355
    %v2005 = vmul.f32 %v1988, %v359
    %v2006 = vmul.f32 %v1989, %v355
    %v2007 = vmul.f32 %v1990, %v359
    %v2008 = vmul.f32 %v1991, %v355
    %v2009 = vmul.f32 %v1992, %v359
    %v2010 = vmul.f32 %v1993, %v355
    %v2011 = vmul.f32 %v2003, %v359
    %2012 = vrot.lane.b32.xlu0 %v1039, 112
    %v2013 = vpop.permute.xlu0 %2012
    %2014 = vrot.lane.b32.xlu0 %v1040, 112
    %v2015 = vpop.permute.xlu0 %2014
    %2016 = vrot.lane.b32.xlu0 %v1227, 112
    %v2017 = vpop.permute.xlu0 %2016
    %2018 = vrot.lane.b32.xlu0 %v1228, 112
    %v2019 = vpop.permute.xlu0 %2018
    %2020 = vrot.lane.b32.xlu0 %v1754, 112
    %v2021 = vpop.permute.xlu0 %2020
    %2022 = vrot.lane.b32.xlu0 %v1756, 112
    %v2023 = vpop.permute.xlu0 %2022
    %2024 = vrot.lane.b32.xlu0 %v1760, 112
    %v2025 = vpop.permute.xlu0 %2024
    %2026 = vrot.lane.b32.xlu0 %v1761, 112
    %v2027 = vpop.permute.xlu0 %2026
    %v2028 = vsel %vm372, %v2013, %v2015
    %v2029 = vsel %vm372, %v2015, %v2017
    %v2030 = vsel %vm372, %v2017, %v2019
    %v2031 = vsel %vm372, %v2019, %v2021
    %v2032 = vsel %vm372, %v2021, %v2023
    %v2033 = vsel %vm372, %v2023, %v2025
    %v2034 = vsel %vm372, %v2025, %v2027
    %v2044 = vsel %vm372, %v2027, %v2013
    %v2045 = vmul.f32 %v2028, %v385
    %v2046 = vmul.f32 %v2029, %v389
    %v2047 = vmul.f32 %v2030, %v385
    %v2048 = vmul.f32 %v2031, %v389
    %v2049 = vmul.f32 %v2032, %v385
    %v2050 = vmul.f32 %v2033, %v389
    %v2051 = vmul.f32 %v2034, %v385
    %v2052 = vmul.f32 %v2044, %v389
    %2053 = vrot.lane.b32.xlu0 %v1039, 111
    %v2054 = vpop.permute.xlu0 %2053
    %2055 = vrot.lane.b32.xlu0 %v1040, 111
    %v2056 = vpop.permute.xlu0 %2055
    %2057 = vrot.lane.b32.xlu0 %v1227, 111
    %v2058 = vpop.permute.xlu0 %2057
    %2059 = vrot.lane.b32.xlu0 %v1228, 111
    %v2060 = vpop.permute.xlu0 %2059
    %2061 = vrot.lane.b32.xlu0 %v1754, 111
    %v2062 = vpop.permute.xlu0 %2061
    %2063 = vrot.lane.b32.xlu0 %v1756, 111
    %v2064 = vpop.permute.xlu0 %2063
    %2065 = vrot.lane.b32.xlu0 %v1760, 111
    %v2066 = vpop.permute.xlu0 %2065
    %2067 = vrot.lane.b32.xlu0 %v1761, 111
    %v2068 = vpop.permute.xlu0 %2067
    %v2069 = vsel %vm402, %v2054, %v2056
    %v2070 = vsel %vm402, %v2056, %v2058
    %v2071 = vsel %vm402, %v2058, %v2060
    %v2072 = vsel %vm402, %v2060, %v2062
    %v2073 = vsel %vm402, %v2062, %v2064
    %v2074 = vsel %vm402, %v2064, %v2066
    %v2075 = vsel %vm402, %v2066, %v2068
    %v2085 = vsel %vm402, %v2068, %v2054
    %v2086 = vmul.f32 %v2069, %v415
    %v2087 = vmul.f32 %v2070, %v419
    %v2088 = vmul.f32 %v2071, %v415
    %v2089 = vmul.f32 %v2072, %v419
    %v2090 = vmul.f32 %v2073, %v415
    %v2091 = vmul.f32 %v2074, %v419
    %v2092 = vmul.f32 %v2075, %v415
    %v2093 = vmul.f32 %v2085, %v419
    %v2102 = vrot.slane %v1840, 4
    %v2103 = vrot.slane %v1841, 4
    %v2104 = vrot.slane %v1842, 4
    %v2105 = vrot.slane %v1843, 4
    %v2106 = vrot.slane %v1844, 4
    %v2107 = vrot.slane %v1845, 4
    %v2108 = vrot.slane %v1846, 4
    %v2109 = vrot.slane %v1847, 4
    %v2126 = vrot.slane %v1922, 4
    %v2127 = vrot.slane %v1923, 4
    %v2128 = vrot.slane %v1924, 4
    %v2129 = vrot.slane %v1925, 4
    %v2130 = vrot.slane %v1926, 4
    %v2131 = vrot.slane %v1927, 4
    %v2132 = vrot.slane %v1928, 4
    %v2133 = vrot.slane %v1929, 4
    %v2150 = vrot.slane %v1963, 4
    %v2151 = vrot.slane %v1964, 4
    %v2152 = vrot.slane %v1965, 4
    %v2153 = vrot.slane %v1966, 4
    %v2154 = vrot.slane %v1967, 4
    %v2155 = vrot.slane %v1968, 4
    %v2156 = vrot.slane %v1969, 4
    %v2157 = vrot.slane %v1970, 4
    %v2174 = vrot.slane %v2045, 4
    %v2175 = vrot.slane %v2046, 4
    %v2176 = vrot.slane %v2047, 4
    %v2177 = vrot.slane %v2048, 4
    %v2178 = vrot.slane %v2049, 4
    %v2179 = vrot.slane %v2050, 4
    %v2180 = vrot.slane %v2051, 4
    %v2181 = vrot.slane %v2052, 4
    %v2190 = vsel %vm472, %v1799, %v2102
    %v2191 = vsel %vm472, %v1800, %v2103
    %v2192 = vsel %vm472, %v1801, %v2104
    %v2193 = vsel %vm472, %v1802, %v2105
    %v2194 = vsel %vm472, %v1803, %v2106
    %v2195 = vsel %vm472, %v1804, %v2107
    %v2196 = vsel %vm472, %v1805, %v2108
    %v2197 = vsel %vm472, %v1806, %v2109
    %v2198 = vsel %vm472, %v1881, %v2126
    %v2199 = vsel %vm472, %v1882, %v2127
    %v2200 = vsel %vm472, %v1883, %v2128
    %v2201 = vsel %vm472, %v1884, %v2129
    %v2202 = vsel %vm472, %v1885, %v2130
    %v2203 = vsel %vm472, %v1886, %v2131
    %v2204 = vsel %vm472, %v1887, %v2132
    %v2205 = vsel %vm472, %v1888, %v2133
    %v2206 = vsel %vm472, %v1039, %v2150
    %v2207 = vsel %vm472, %v1040, %v2151
    %v2208 = vsel %vm472, %v1227, %v2152
    %v2209 = vsel %vm472, %v1228, %v2153
    %v2210 = vsel %vm472, %v1754, %v2154
    %v2211 = vsel %vm472, %v1756, %v2155
    %v2212 = vsel %vm472, %v1760, %v2156
    %v2213 = vsel %vm472, %v1761, %v2157
    %v2214 = vsel %vm472, %v2004, %v2174
    %v2215 = vsel %vm472, %v2005, %v2175
    %v2216 = vsel %vm472, %v2006, %v2176
    %v2217 = vsel %vm472, %v2007, %v2177
    %v2218 = vsel %vm472, %v2008, %v2178
    %v2219 = vsel %vm472, %v2009, %v2179
    %v2220 = vsel %vm472, %v2010, %v2180
    %v2221 = vsel %vm472, %v2011, %v2181
    %2223 = vset.pattern.permute.xlu0 0
    %2224 = vperm.xlu0 %2223, %v108
    %v2225 = vpop.permute.xlu0 %2224
    %v2228 = vsel %vm494, %v106, 0
    %v2231 = vsel %vm472, %v2086, 0
    %v2234 = vsel %vm472, %v2087, 0
    %v2237 = vsel %vm472, %v2088, 0
    %v2240 = vsel %vm472, %v2089, 0
    %v2243 = vsel %vm472, %v2090, 0
    %v2246 = vsel %vm472, %v2091, 0
    %v2249 = vsel %vm472, %v2092, 0
    %v2252 = vsel %vm472, %v2093, 0
    %2254 = vmatprep.subr.mxu0 %v2191
    %2255 = vmatpush1.msra.mxu0 %v2190
    %2256 = vmatprep.subr.mxu0 %v2199
    %2257 = vmatpush1.msra.mxu0 %v2198
    %2258 = vmatprep.subr.mxu0 %v2207
    %2259 = vmatpush1.msra.mxu0 %v2206
    %2260 = vmatprep.subr.mxu0 %v2215
    %2261 = vmatpush1.msra.mxu0 %v2214
    %2262 = vmatprep.subr.mxu0 %v2234
    %2263 = vmatpush1.msra.mxu0 %v2231
    %2264 = vmatprep.subr.mxu0 0.0
    %2265 = vmatpush1.msra.mxu0 0.0
    %2266 = vmatprep.subr.mxu0 0.0
    %2267 = vmatpush1.msra.mxu0 0.0
    %2268 = vmatprep.subr.mxu0 0.0
    %2269 = vmatpush1.msra.mxu0 0.0
    %2270 = vmatprep.subr.mxu0 0.0
    %2271 = vmatpush1.msra.mxu0 0.0
    %2272 = vmatprep.subr.mxu0 0.0
    %2273 = vmatpush1.msra.mxu0 0.0
    %2274 = vmatprep.subr.mxu0 0.0
    %2275 = vmatpush1.msra.mxu0 0.0
    %2276 = vmatprep.subr.mxu0 0.0
    %2277 = vmatpush1.msra.mxu0 0.0
    %2278 = vmatprep.subr.mxu0 0.0
    %2279 = vmatpush1.msra.mxu0 0.0
    %2280 = vmatprep.subr.mxu0 0.0
    %2281 = vmatpush1.msra.mxu0 0.0
    %2282 = vmatprep.subr.mxu0 0.0
    %2283 = vmatpush1.msra.mxu0 0.0
    %2284 = vmatprep.subr.mxu0 0.0
    %2285 = vmatpush1.msra.mxu0 0.0
    %2286 = vmatprep.subr.mxu0 0.0
    %2287 = vmatpush1.msra.mxu0 0.0
    %2288 = vmatprep.subr.mxu0 0.0
    %2289 = vmatpush1.msra.mxu0 0.0
    %2290 = vmatprep.subr.mxu0 0.0
    %2291 = vmatpush1.msra.mxu0 0.0
    %2292 = vmatprep.subr.mxu0 0.0
    %2293 = vmatpush1.msra.mxu0 0.0
    %2294 = vmatprep.subr.mxu0 0.0
    %2295 = vmatpush1.msra.mxu0 0.0
    %2296 = vmatprep.subr.mxu0 0.0
    %2297 = vmatpush1.msra.mxu0 0.0
    %2298 = vmatprep.subr.mxu0 0.0
    %2299 = vmatpush1.msra.mxu0 0.0
    %2300 = vmatprep.subr.mxu0 0.0
    %2301 = vmatpush1.msra.mxu0 0.0
    %2302 = vmatprep.subr.mxu0 0.0
    %2303 = vmatpush1.msra.mxu0 0.0
    %2304 = vmatprep.subr.mxu0 0.0
    %2305 = vmatpush1.msra.mxu0 0.0
    %2306 = vmatprep.subr.mxu0 0.0
    %2307 = vmatpush1.msra.mxu0 0.0
    %2308 = vmatprep.subr.mxu0 0.0
    %2309 = vmatpush1.msra.mxu0 0.0
    %2310 = vmatprep.subr.mxu0 0.0
    %2311 = vmatpush1.msra.mxu0 0.0
    %2312 = vmatprep.subr.mxu0 0.0
    %2313 = vmatpush1.msra.mxu0 0.0
    %2314 = vmatprep.subr.mxu0 0.0
    %2315 = vmatpush1.msra.mxu0 0.0
    %2316 = vmatprep.subr.mxu0 0.0
    %2317 = vmatpush1.msra.mxu0 0.0
    %2318 = vmatprep.mubr.f32.mxu0 0.0
    %2319 = vmatmul.mubr.f32.gmra.mrb[0].mxu0 %v2228
    %v2320 = vpop.f32.mrb[0].mxu0
    %v2321 = vadd.f32 %v2225, %v2320
    %v2322 = vpop.f32.mrb[0].mxu0
    %v2323 = vadd.f32 %v2225, %v2322
    %2324 = vdwg.mxu0
    %2325 = vmatprep.subr.mxu0 %v2193
    %2326 = vmatpush1.msra.mxu0 %v2192
    %2327 = vmatprep.subr.mxu0 %v2201
    %2328 = vmatpush1.msra.mxu0 %v2200
    %2329 = vmatprep.subr.mxu0 %v2209
    %2330 = vmatpush1.msra.mxu0 %v2208
    %2331 = vmatprep.subr.mxu0 %v2217
    %2332 = vmatpush1.msra.mxu0 %v2216
    %2333 = vmatprep.subr.mxu0 %v2240
    %2334 = vmatpush1.msra.mxu0 %v2237
    %2335 = vmatprep.subr.mxu0 0.0
    %2336 = vmatpush1.msra.mxu0 0.0
    %2337 = vmatprep.subr.mxu0 0.0
    %2338 = vmatpush1.msra.mxu0 0.0
    %2339 = vmatprep.subr.mxu0 0.0
    %2340 = vmatpush1.msra.mxu0 0.0
    %2341 = vmatprep.subr.mxu0 0.0
    %2342 = vmatpush1.msra.mxu0 0.0
    %2343 = vmatprep.subr.mxu0 0.0
    %2344 = vmatpush1.msra.mxu0 0.0
    %2345 = vmatprep.subr.mxu0 0.0
    %2346 = vmatpush1.msra.mxu0 0.0
    %2347 = vmatprep.subr.mxu0 0.0
    %2348 = vmatpush1.msra.mxu0 0.0
    %2349 = vmatprep.subr.mxu0 0.0
    %2350 = vmatpush1.msra.mxu0 0.0
    %2351 = vmatprep.subr.mxu0 0.0
    %2352 = vmatpush1.msra.mxu0 0.0
    %2353 = vmatprep.subr.mxu0 0.0
    %2354 = vmatpush1.msra.mxu0 0.0
    %2355 = vmatprep.subr.mxu0 0.0
    %2356 = vmatpush1.msra.mxu0 0.0
    %2357 = vmatprep.subr.mxu0 0.0
    %2358 = vmatpush1.msra.mxu0 0.0
    %2359 = vmatprep.subr.mxu0 0.0
    %2360 = vmatpush1.msra.mxu0 0.0
    %2361 = vmatprep.subr.mxu0 0.0
    %2362 = vmatpush1.msra.mxu0 0.0
    %2363 = vmatprep.subr.mxu0 0.0
    %2364 = vmatpush1.msra.mxu0 0.0
    %2365 = vmatprep.subr.mxu0 0.0
    %2366 = vmatpush1.msra.mxu0 0.0
    %2367 = vmatprep.subr.mxu0 0.0
    %2368 = vmatpush1.msra.mxu0 0.0
    %2369 = vmatprep.subr.mxu0 0.0
    %2370 = vmatpush1.msra.mxu0 0.0
    %2371 = vmatprep.subr.mxu0 0.0
    %2372 = vmatpush1.msra.mxu0 0.0
    %2373 = vmatprep.subr.mxu0 0.0
    %2374 = vmatpush1.msra.mxu0 0.0
    %2375 = vmatprep.subr.mxu0 0.0
    %2376 = vmatpush1.msra.mxu0 0.0
    %2377 = vmatprep.subr.mxu0 0.0
    %2378 = vmatpush1.msra.mxu0 0.0
    %2379 = vmatprep.subr.mxu0 0.0
    %2380 = vmatpush1.msra.mxu0 0.0
    %2381 = vmatprep.subr.mxu0 0.0
    %2382 = vmatpush1.msra.mxu0 0.0
    %2383 = vmatprep.subr.mxu0 0.0
    %2384 = vmatpush1.msra.mxu0 0.0
    %2385 = vmatprep.subr.mxu0 0.0
    %2386 = vmatpush1.msra.mxu0 0.0
    %2387 = vmatprep.subr.mxu0 0.0
    %2388 = vmatpush1.msra.mxu0 0.0
    %2389 = vmatprep.mubr.f32.mxu0 0.0
    %2390 = vmatmul.mubr.f32.gmra.mrb[0].mxu0 %v2228
    %v2391 = vpop.f32.mrb[0].mxu0
    %v2392 = vadd.f32 %v2225, %v2391
    %v2393 = vpop.f32.mrb[0].mxu0
    %v2394 = vadd.f32 %v2225, %v2393
    %2395 = vdwg.mxu0
    %2396 = vmatprep.subr.mxu0 %v2195
    %2397 = vmatpush1.msra.mxu0 %v2194
    %2398 = vmatprep.subr.mxu0 %v2203
    %2399 = vmatpush1.msra.mxu0 %v2202
    %2400 = vmatprep.subr.mxu0 %v2211
    %2401 = vmatpush1.msra.mxu0 %v2210
    %2402 = vmatprep.subr.mxu0 %v2219
    %2403 = vmatpush1.msra.mxu0 %v2218
    %2404 = vmatprep.subr.mxu0 %v2246
    %2405 = vmatpush1.msra.mxu0 %v2243
    %2406 = vmatprep.subr.mxu0 0.0
    %2407 = vmatpush1.msra.mxu0 0.0
    %2408 = vmatprep.subr.mxu0 0.0
    %2409 = vmatpush1.msra.mxu0 0.0
    %2410 = vmatprep.subr.mxu0 0.0
    %2411 = vmatpush1.msra.mxu0 0.0
    %2412 = vmatprep.subr.mxu0 0.0
    %2413 = vmatpush1.msra.mxu0 0.0
    %2414 = vmatprep.subr.mxu0 0.0
    %2415 = vmatpush1.msra.mxu0 0.0
    %2416 = vmatprep.subr.mxu0 0.0
    %2417 = vmatpush1.msra.mxu0 0.0
    %2418 = vmatprep.subr.mxu0 0.0
    %2419 = vmatpush1.msra.mxu0 0.0
    %2420 = vmatprep.subr.mxu0 0.0
    %2421 = vmatpush1.msra.mxu0 0.0
    %2422 = vmatprep.subr.mxu0 0.0
    %2423 = vmatpush1.msra.mxu0 0.0
    %2424 = vmatprep.subr.mxu0 0.0
    %2425 = vmatpush1.msra.mxu0 0.0
    %2426 = vmatprep.subr.mxu0 0.0
    %2427 = vmatpush1.msra.mxu0 0.0
    %2428 = vmatprep.subr.mxu0 0.0
    %2429 = vmatpush1.msra.mxu0 0.0
    %2430 = vmatprep.subr.mxu0 0.0
    %2431 = vmatpush1.msra.mxu0 0.0
    %2432 = vmatprep.subr.mxu0 0.0
    %2433 = vmatpush1.msra.mxu0 0.0
    %2434 = vmatprep.subr.mxu0 0.0
    %2435 = vmatpush1.msra.mxu0 0.0
    %2436 = vmatprep.subr.mxu0 0.0
    %2437 = vmatpush1.msra.mxu0 0.0
    %2438 = vmatprep.subr.mxu0 0.0
    %2439 = vmatpush1.msra.mxu0 0.0
    %2440 = vmatprep.subr.mxu0 0.0
    %2441 = vmatpush1.msra.mxu0 0.0
    %2442 = vmatprep.subr.mxu0 0.0
    %2443 = vmatpush1.msra.mxu0 0.0
    %2444 = vmatprep.subr.mxu0 0.0
    %2445 = vmatpush1.msra.mxu0 0.0
    %2446 = vmatprep.subr.mxu0 0.0
    %2447 = vmatpush1.msra.mxu0 0.0
    %2448 = vmatprep.subr.mxu0 0.0
    %2449 = vmatpush1.msra.mxu0 0.0
    %2450 = vmatprep.subr.mxu0 0.0
    %2451 = vmatpush1.msra.mxu0 0.0
    %2452 = vmatprep.subr.mxu0 0.0
    %2453 = vmatpush1.msra.mxu0 0.0
    %2454 = vmatprep.subr.mxu0 0.0
    %2455 = vmatpush1.msra.mxu0 0.0
    %2456 = vmatprep.subr.mxu0 0.0
    %2457 = vmatpush1.msra.mxu0 0.0
    %2458 = vmatprep.subr.mxu0 0.0
    %2459 = vmatpush1.msra.mxu0 0.0
    %2460 = vmatprep.mubr.f32.mxu0 0.0
    %2461 = vmatmul.mubr.f32.gmra.mrb[0].mxu0 %v2228
    %v2462 = vpop.f32.mrb[0].mxu0
    %v2463 = vadd.f32 %v2225, %v2462
    %v2464 = vpop.f32.mrb[0].mxu0
    %v2465 = vadd.f32 %v2225, %v2464
    %2466 = vdwg.mxu0
    %2467 = vmatprep.subr.mxu0 %v2197
    %2468 = vmatpush1.msra.mxu0 %v2196
    %2469 = vmatprep.subr.mxu0 %v2205
    %2470 = vmatpush1.msra.mxu0 %v2204
    %2471 = vmatprep.subr.mxu0 %v2213
    %2472 = vmatpush1.msra.mxu0 %v2212
    %2473 = vmatprep.subr.mxu0 %v2221
    %2474 = vmatpush1.msra.mxu0 %v2220
    %2475 = vmatprep.subr.mxu0 %v2252
    %2476 = vmatpush1.msra.mxu0 %v2249
    %2477 = vmatprep.subr.mxu0 0.0
    %2478 = vmatpush1.msra.mxu0 0.0
    %2479 = vmatprep.subr.mxu0 0.0
    %2480 = vmatpush1.msra.mxu0 0.0
    %2481 = vmatprep.subr.mxu0 0.0
    %2482 = vmatpush1.msra.mxu0 0.0
    %2483 = vmatprep.subr.mxu0 0.0
    %2484 = vmatpush1.msra.mxu0 0.0
    %2485 = vmatprep.subr.mxu0 0.0
    %2486 = vmatpush1.msra.mxu0 0.0
    %2487 = vmatprep.subr.mxu0 0.0
    %2488 = vmatpush1.msra.mxu0 0.0
    %2489 = vmatprep.subr.mxu0 0.0
    %2490 = vmatpush1.msra.mxu0 0.0
    %2491 = vmatprep.subr.mxu0 0.0
    %2492 = vmatpush1.msra.mxu0 0.0
    %2493 = vmatprep.subr.mxu0 0.0
    %2494 = vmatpush1.msra.mxu0 0.0
    %2495 = vmatprep.subr.mxu0 0.0
    %2496 = vmatpush1.msra.mxu0 0.0
    %2497 = vmatprep.subr.mxu0 0.0
    %2498 = vmatpush1.msra.mxu0 0.0
    %2499 = vmatprep.subr.mxu0 0.0
    %2500 = vmatpush1.msra.mxu0 0.0
    %2501 = vmatprep.subr.mxu0 0.0
    %2502 = vmatpush1.msra.mxu0 0.0
    %2503 = vmatprep.subr.mxu0 0.0
    %2504 = vmatpush1.msra.mxu0 0.0
    %2505 = vmatprep.subr.mxu0 0.0
    %2506 = vmatpush1.msra.mxu0 0.0
    %2507 = vmatprep.subr.mxu0 0.0
    %2508 = vmatpush1.msra.mxu0 0.0
    %2509 = vmatprep.subr.mxu0 0.0
    %2510 = vmatpush1.msra.mxu0 0.0
    %2511 = vmatprep.subr.mxu0 0.0
    %2512 = vmatpush1.msra.mxu0 0.0
    %2513 = vmatprep.subr.mxu0 0.0
    %2514 = vmatpush1.msra.mxu0 0.0
    %2515 = vmatprep.subr.mxu0 0.0
    %2516 = vmatpush1.msra.mxu0 0.0
    %2517 = vmatprep.subr.mxu0 0.0
    %2518 = vmatpush1.msra.mxu0 0.0
    %2519 = vmatprep.subr.mxu0 0.0
    %2520 = vmatpush1.msra.mxu0 0.0
    %2521 = vmatprep.subr.mxu0 0.0
    %2522 = vmatpush1.msra.mxu0 0.0
    %2523 = vmatprep.subr.mxu0 0.0
    %2524 = vmatpush1.msra.mxu0 0.0
    %2525 = vmatprep.subr.mxu0 0.0
    %2526 = vmatpush1.msra.mxu0 0.0
    %2527 = vmatprep.subr.mxu0 0.0
    %2528 = vmatpush1.msra.mxu0 0.0
    %2529 = vmatprep.subr.mxu0 0.0
    %2530 = vmatpush1.msra.mxu0 0.0
    %2531 = vmatprep.mubr.f32.mxu0 0.0
    %2532 = vmatmul.mubr.f32.gmra.mrb[0].mxu0 %v2228
    %v2533 = vpop.f32.mrb[0].mxu0
    %v2534 = vadd.f32 %v2225, %v2533
    %v2535 = vpop.f32.mrb[0].mxu0
    %v2536 = vadd.f32 %v2225, %v2535
    %2537 = vdwg.mxu0
    %v2538 = vld [vmem:[%s15] sm:$0xff]
    %v2539 = vld [vmem:[%s16] sm:$0xff]
    %v2540 = vadd.f32 %v2321, %v2323
    %v2541 = vadd.f32 %v2540, %v2392
    %v2542 = vadd.f32 %v2541, %v2394
    %2543 = vadd.xlane.f32.xlu0 %v2542
    %v2544 = vpop.xlane.xlu0 %2543
    %v2545 = vmul.f32 %v2544, %v663
    %v2546 = vsub.f32 %v2321, %v2545
    %v2547 = vsub.f32 %v2323, %v2545
    %v2548 = vsub.f32 %v2392, %v2545
    %v2549 = vsub.f32 %v2394, %v2545
    %v2550 = vmul.f32 %v2546, %v2546
    %v2551 = vmul.f32 %v2547, %v2547
    %v2552 = vmul.f32 %v2548, %v2548
    %v2553 = vmul.f32 %v2549, %v2549
    %v2554 = vadd.f32 %v2550, %v2551
    %v2555 = vadd.f32 %v2554, %v2552
    %v2556 = vadd.f32 %v2555, %v2553
    %2557 = vadd.xlane.f32.xlu0 %v2556
    %v2558 = vpop.xlane.xlu0 %2557
    %v2559 = vmul.f32 %v2558, %v663
    %v2560 = vadd.f32 %v2559, 1e-05
    %v2561 = vrsqrt.pop %v2560
    %v2562 = vmul.f32 %v2546, %v2561
    %v2563 = vmul.f32 %v2547, %v2561
    %v2564 = vmul.f32 %v2548, %v2561
    %v2565 = vmul.f32 %v2549, %v2561
    %2567 = vset.pattern.permute.xlu0 0
    %2568 = vperm.xlu0 %2567, %v2538
    %v2569 = vpop.permute.xlu0 %2568
    %v2571 = vmul.f32 %v2562, %v2569
    %v2572 = vmul.f32 %v2563, %v2569
    %v2573 = vmul.f32 %v2564, %v2569
    %v2574 = vmul.f32 %v2565, %v2569
    %2576 = vset.pattern.permute.xlu0 0
    %2577 = vperm.xlu0 %2576, %v2539
    %v2578 = vpop.permute.xlu0 %2577
    %v2580 = vadd.f32 %v2571, %v2578
    %v2581 = vadd.f32 %v2572, %v2578
    %v2582 = vadd.f32 %v2573, %v2578
    %v2583 = vadd.f32 %v2574, %v2578
    %v2584 = vmax.f32 %v2580, 0.0
    %v2585 = vmax.f32 %v2581, 0.0
    %v2586 = vmax.f32 %v2582, 0.0
    %v2587 = vmax.f32 %v2583, 0.0
    %v2588 = vld [vmem:[%s17] sm:$0xff]
    %v2589 = vld [vmem:[%s18] sm:$0xff]
    %v2590 = vadd.f32 %v2463, %v2465
    %v2591 = vadd.f32 %v2590, %v2534
    %v2592 = vadd.f32 %v2591, %v2536
    %2593 = vadd.xlane.f32.xlu0 %v2592
    %v2594 = vpop.xlane.xlu0 %2593
    %v2595 = vmul.f32 %v2594, %v663
    %v2596 = vsub.f32 %v2463, %v2595
    %v2597 = vsub.f32 %v2465, %v2595
    %v2598 = vsub.f32 %v2534, %v2595
    %v2599 = vsub.f32 %v2536, %v2595
    %v2600 = vmul.f32 %v2596, %v2596
    %v2601 = vmul.f32 %v2597, %v2597
    %v2602 = vmul.f32 %v2598, %v2598
    %v2603 = vmul.f32 %v2599, %v2599
    %v2604 = vadd.f32 %v2600, %v2601
    %v2605 = vadd.f32 %v2604, %v2602
    %v2606 = vadd.f32 %v2605, %v2603
    %2607 = vadd.xlane.f32.xlu0 %v2606
    %v2608 = vpop.xlane.xlu0 %2607
    %v2609 = vmul.f32 %v2608, %v663
    %v2610 = vadd.f32 %v2609, 1e-05
    %v2611 = vrsqrt.pop %v2610
    %v2612 = vmul.f32 %v2596, %v2611
    %v2613 = vmul.f32 %v2597, %v2611
    %v2614 = vmul.f32 %v2598, %v2611
    %v2615 = vmul.f32 %v2599, %v2611
    %2617 = vset.pattern.permute.xlu0 0
    %2618 = vperm.xlu0 %2617, %v2588
    %v2619 = vpop.permute.xlu0 %2618
    %v2621 = vmul.f32 %v2612, %v2619
    %v2622 = vmul.f32 %v2613, %v2619
    %v2623 = vmul.f32 %v2614, %v2619
    %v2624 = vmul.f32 %v2615, %v2619
    %2626 = vset.pattern.permute.xlu0 0
    %2627 = vperm.xlu0 %2626, %v2589
    %v2628 = vpop.permute.xlu0 %2627
    %v2630 = vadd.f32 %v2621, %v2628
    %v2631 = vadd.f32 %v2622, %v2628
    %v2632 = vadd.f32 %v2623, %v2628
    %v2633 = vadd.f32 %v2624, %v2628
    %v2634 = vmax.f32 %v2630, 0.0
    %v2635 = vmax.f32 %v2631, 0.0
    %v2636 = vmax.f32 %v2632, 0.0
    %v2637 = vmax.f32 %v2633, 0.0
    %v2638 = vadd.f32 %v2584, %v2634
    %v2639 = vadd.f32 %v2585, %v2635
    %v2640 = vadd.f32 %v2586, %v2636
    %v2641 = vadd.f32 %v2587, %v2637
    %2642 = vst [vmem:[%s19] sm:$0xff] %v2638
    %2643 = vst [vmem:[%s19 + $0x8] sm:$0xff] %v2639
    %s2644 = scalar_lea.vmem %s19, 16
    %2645 = vst [vmem:[%s2644] sm:$0xff] %v2640
    %2646 = vst [vmem:[%s2644 + $0x8] sm:$0xff] %v2641
    // Predicated region
    $region90: #{attention_forward.1} parent=1 // pred_check
      _
    $region91: #{attention_forward.1} parent=1 // pred_check_branch
      %2648 = sbr.rel (0) target = $region93
    $region92: #{attention_forward.1} parent=1 // pred_region
      _
    $region93: #{attention_forward.1} parent=1 // pred_fallthru
      _
    // Predicated region
    $region94: #{attention_forward.1} parent=1 // pred_check
      _
    $region95: #{attention_forward.1} parent=1 // pred_check_branch
      %2650 = sbr.rel (0) target = $region97
    $region96: #{attention_forward.1} parent=1 // pred_region
      _
    $region97: #{attention_forward.1} parent=1 // pred_fallthru
      _
    %2651 = vsyncpa [#allocation3], 1
    %2652 = vsyncpa [#allocation5], 1

</llo_original>
